<compile_context>
chip_gen: v5e
topology: v5e:2x2
jax: 0.10.0
libtpu: 0.0.40
codegen_flags: <defaults>
</compile_context>

<pallas_src>
import functools
import math

import jax
import jax.numpy as jnp
from jax import lax
from jax.experimental import pallas as pl
from jax.experimental.pallas import tpu as pltpu

# Contract lhs dim 1 with rhs dim 1 ("B transposed" matmul), as used by the
# TPU flash-attention reference kernel.
_NT_DIMS = (((1,), (1,)), ((), ()))


# --------------------------------------------------------------------------
# Kernel
# --------------------------------------------------------------------------

def _selayer_kernel(x_ref, fc1_ref, fc2_ref, w1_ref, w2_ref, o_ref,
                    xp_ref, hp_ref, *, H, W, C, Cr):
    # ---- zero-padded scratches: zero ONCE; interiors fully rewritten each
    #      grid step, so the zero border persists across steps. ------------
    @pl.when(pl.program_id(0) == 0)
    def _init():
        xp_ref[...] = jnp.zeros_like(xp_ref)
        hp_ref[...] = jnp.zeros_like(hp_ref)

    x = x_ref[0]                                    # (H, W, C) f32
    flat_x = x.reshape(H * W, C)                    # layout-preserving (W%8==0)

    # ---- channel path: GAP (f32) -> fc1 -> ReLU -> fc2 (bf16 MXU, f32 acc)
    gap = jnp.mean(flat_x, axis=0, keepdims=True)                       # (1, C)
    h = lax.dot_general(gap.astype(jnp.bfloat16), fc1_ref[...],
                        _NT_DIMS, preferred_element_type=jnp.float32)   # (1, Cr)
    h = jnp.maximum(h, 0.0)
    y = jnp.dot(h.astype(jnp.bfloat16), fc2_ref[...],
                preferred_element_type=jnp.float32)                     # (1, C)

    # ---- spatial path: conv3x3(pad=1) -> ReLU -> conv3x3(pad=1) -----------
    # interior write is UNCONDITIONAL (zero-border invariant depends on it)
    xp_ref[pl.ds(1, H), pl.ds(1, W), :] = x
    # im2col: 9 shifted taps concatenated on the 128-lane channel axis,
    # cast to bf16 -> one K = 9*C matmul against the (Cr, 9*C) dense weight.
    cols = jnp.concatenate(
        [xp_ref[pl.ds(ky, H), pl.ds(kx, W), :].reshape(H * W, C)
             .astype(jnp.bfloat16)
         for ky in range(3) for kx in range(3)],
        axis=-1)                                                        # (H*W, 9C)
    h1 = lax.dot_general(cols, w1_ref[...], _NT_DIMS,
                         preferred_element_type=jnp.float32)            # (H*W, Cr)
    h1 = jnp.maximum(h1, 0.0)

    # conv2 as ONE K = 9*Cr matmul (replaces nine K=Cr dots).
    hp_ref[pl.ds(1, H), pl.ds(1, W), :] = h1.reshape(H, W, Cr)
    cols2 = jnp.concatenate(
        [hp_ref[pl.ds(ky, H), pl.ds(kx, W), :].reshape(H * W, Cr)
             .astype(jnp.bfloat16)
         for ky in range(3) for kx in range(3)],
        axis=-1)                                                        # (H*W, 9Cr)
    y1 = jnp.dot(cols2, w2_ref[...], preferred_element_type=jnp.float32)  # (H*W, C)

    # ---- gate (f32, VMEM-resident): out = x * sigmoid(y * y1) -------------
    gate = jax.nn.sigmoid(y * y1)                                       # (H*W, C)
    o_ref[...] = (flat_x * gate).reshape(1, H, W, C).astype(o_ref.dtype)


# --------------------------------------------------------------------------
# Pallas wrapper (NHWC)
# --------------------------------------------------------------------------

def selayer_pallas(x_nhwc, fc1_w, fc2_w, conv1_w, conv2_w):
    """x_nhwc: (N,H,W,C) f32.
    Lane-dense weights: fc1_w (Cr, C); fc2_w (Cr, C); conv1_w (Cr, 9*C);
    conv2_w (9*Cr, C). All weights are cast to bf16 at the boundary."""
    N, H, W, C = x_nhwc.shape
    Cr = fc1_w.shape[0]
    kernel = functools.partial(_selayer_kernel, H=H, W=W, C=C, Cr=Cr)
    return pl.pallas_call(
        kernel,
        out_shape=jax.ShapeDtypeStruct((N, H, W, C), jnp.float32),
        grid_spec=pltpu.PrefetchScalarGridSpec(
            num_scalar_prefetch=0,
            grid=(N,),
            in_specs=[
                pl.BlockSpec((1, H, W, C), lambda n: (n, 0, 0, 0)),
                pl.BlockSpec((Cr, C), lambda n: (0, 0)),
                pl.BlockSpec((Cr, C), lambda n: (0, 0)),
                pl.BlockSpec((Cr, 9 * C), lambda n: (0, 0)),
                pl.BlockSpec((9 * Cr, C), lambda n: (0, 0)),
            ],
            out_specs=pl.BlockSpec((1, H, W, C), lambda n: (n, 0, 0, 0)),
            scratch_shapes=[
                pltpu.VMEM((H + 2, W + 2, C), jnp.float32),   # padded x
                pltpu.VMEM((H + 2, W + 2, Cr), jnp.float32),  # padded conv1 out
            ],
        ),
        compiler_params=pltpu.CompilerParams(
            # "arbitrary": required for the zero-once scratch init; a
            # "parallel" batch axis would skip program_id==0 on the second
            # TensorCore of multi-TC chips and leave its scratch garbage.
            dimension_semantics=("arbitrary",),
            vmem_limit_bytes=32 * 1024 * 1024),
    )(x_nhwc.astype(jnp.float32),
      fc1_w.astype(jnp.bfloat16), fc2_w.astype(jnp.bfloat16),
      conv1_w.astype(jnp.bfloat16), conv2_w.astype(jnp.bfloat16))


# --------------------------------------------------------------------------
# PyTorch-layout parameters and NCHW-facing forward
# --------------------------------------------------------------------------

def init_selayer_params(key, channel, reduction=16):
    """Deterministic weights in PyTorch layouts (Linear: (out,in); Conv: OIHW)."""
    cr = channel // reduction
    k1, k2, k3, k4 = jax.random.split(key, 4)

    def u(k, shape, fan_in):
        b = 1.0 / math.sqrt(fan_in)
        return jax.random.uniform(k, shape, jnp.float32, -b, b)

    return dict(
        fc1=u(k1, (cr, channel), channel),              # Linear(c, c//r).weight
        fc2=u(k2, (channel, cr), cr),                   # Linear(c//r, c).weight
        conv1=u(k3, (cr, channel, 3, 3), channel * 9),  # Conv2d(c, c//r, 3).weight
        conv2=u(k4, (channel, cr, 3, 3), cr * 9),       # Conv2d(c//r, c, 3).weight
    )


def _to_kernel_weights(p):
    """PyTorch layouts -> lane-dense kernel layouts (last dim is the long one)."""
    cr, c = p["fc1"].shape
    fc1 = p["fc1"]                                                # (Cr, C)
    fc2 = p["fc2"].T                                              # (Cr, C)
    # conv1 (O=Cr, I=C, kh, kw) -> (O, kh, kw, I) -> (Cr, 9*C)
    w1 = jnp.transpose(p["conv1"], (0, 2, 3, 1)).reshape(cr, 9 * c)
    # conv2 (O=C, I=Cr, kh, kw) -> (kh, kw, I, O) -> (9*Cr, C)
    w2 = jnp.transpose(p["conv2"], (2, 3, 1, 0)).reshape(9 * cr, c)
    return fc1, fc2, w1, w2


def selayer_forward(x_nchw, params):
    """Matches SELayer.forward on NCHW input."""
    fc1_w, fc2_w, w1, w2 = _to_kernel_weights(params)
    x = jnp.transpose(x_nchw, (0, 2, 3, 1))                       # NCHW -> NHWC
    y = selayer_pallas(x, fc1_w, fc2_w, w1, w2)
    return jnp.transpose(y, (0, 3, 1, 2))                         # NHWC -> NCHW


def selayer_ref(x_nchw, params):
    """Pure-JAX reference mirroring the PyTorch module (NCHW)."""
    y = jnp.mean(x_nchw, axis=(2, 3))                             # (b, c)
    y = jnp.maximum(y @ params["fc1"].T, 0.0) @ params["fc2"].T   # (b, c)
    y = y[:, :, None, None]
    dn = ("NCHW", "OIHW", "NCHW")
    y1 = lax.conv_general_dilated(x_nchw, params["conv1"], (1, 1), "SAME",
                                  dimension_numbers=dn)
    y1 = jnp.maximum(y1, 0.0)
    y1 = lax.conv_general_dilated(y1, params["conv2"], (1, 1), "SAME",
                                  dimension_numbers=dn)
    return x_nchw * jax.nn.sigmoid(y * y1)


# --------------------------------------------------------------------------

if __name__ == "__main__":
    key = jax.random.PRNGKey(0)
    kx, kp = jax.random.split(key)

    # channel=128 keeps the default reduction=16 non-degenerate (hidden=8) and
    # puts a full 128-lane tile on the channel axis (lane-dense I/O, aligned im2col).
    N, C, H, W = 2, 128, 16, 16
    x_nchw = jax.random.normal(kx, (N, C, H, W), jnp.float32)
    params = init_selayer_params(kp, C, reduction=16)

    fwd = jax.jit(selayer_forward)
    out = jax.block_until_ready(fwd(x_nchw, params))

    ref = jax.block_until_ready(jax.jit(selayer_ref)(x_nchw, params))

    assert out.shape == (N, C, H, W)
    assert bool(jnp.all(jnp.isfinite(out)))
    max_err = float(jnp.max(jnp.abs(out - ref)))
    # Tolerance sized for bf16 MXU operands with f32 accumulation (observed
    # max abs err here is ~1e-4; gate argument is tiny so sigmoid compresses
    # the bf16 error).  Tight enough to catch layout/indexing regressions.
    assert bool(jnp.allclose(out, ref, atol=2e-3, rtol=2e-3)), max_err
    print("KERNEL_OK")
</pallas_src>

<mosaic_0001>
module attributes {stable_mosaic.version = 11 : i64} {
  func.func @_selayer_kernel(%arg0: i32, %arg1: memref<1x16x16x128xf32, #tpu.memory_space<vmem>>, %arg2: memref<8x128xbf16, #tpu.memory_space<vmem>>, %arg3: memref<8x128xbf16, #tpu.memory_space<vmem>>, %arg4: memref<8x1152xbf16, #tpu.memory_space<vmem>>, %arg5: memref<72x128xbf16, #tpu.memory_space<vmem>>, %arg6: memref<1x16x16x128xf32, #tpu.memory_space<vmem>>, %arg7: memref<18x18x128xf32, #tpu.memory_space<vmem>>, %arg8: memref<18x18x8xf32, #tpu.memory_space<vmem>>) attributes {dimension_semantics = [#tpu.dimension_semantics<arbitrary>], iteration_bounds = array<i64: 2>, scalar_prefetch = 0 : i64, scratch_operands = 2 : i64, tpu.core_type = #tpu.core_type<tc>, window_params = [{transform_indices = @transform_0, window_bounds = array<i64: 1, 16, 16, 128>}, {pipeline_mode = #tpu.pipeline_mode<synchronous>, transform_indices = @transform_1, window_bounds = array<i64: 8, 128>}, {pipeline_mode = #tpu.pipeline_mode<synchronous>, transform_indices = @transform_2, window_bounds = array<i64: 8, 128>}, {pipeline_mode = #tpu.pipeline_mode<synchronous>, transform_indices = @transform_3, window_bounds = array<i64: 8, 1152>}, {pipeline_mode = #tpu.pipeline_mode<synchronous>, transform_indices = @transform_4, window_bounds = array<i64: 72, 128>}, {transform_indices = @transform_5, window_bounds = array<i64: 1, 16, 16, 128>}]} {
    %c0_i32 = arith.constant 0 : i32
    %0 = arith.cmpi eq, %arg0, %c0_i32 : i32
    %1 = arith.extui %0 : i1 to i32
    %c0_i32_0 = arith.constant 0 : i32
    %2 = arith.cmpi ne, %1, %c0_i32_0 : i32
    scf.if %2 {
      %cst_82 = arith.constant 0.000000e+00 : f32
      %93 = vector.broadcast %cst_82 : f32 to vector<18x18x128xf32>
      %c0_83 = arith.constant 0 : index
      %c0_84 = arith.constant 0 : index
      %c0_85 = arith.constant 0 : index
      %94 = vector.load %arg7[%c0_83, %c0_84, %c0_85] : memref<18x18x128xf32, #tpu.memory_space<vmem>>, vector<18x18x128xf32>
      tpu.vector_store %arg7[%c0_83, %c0_84, %c0_85], %93 {strides = array<i32>} : memref<18x18x128xf32, #tpu.memory_space<vmem>>, vector<18x18x128xf32>,
      %cst_86 = arith.constant 0.000000e+00 : f32
      %95 = vector.broadcast %cst_86 : f32 to vector<18x18x8xf32>
      %c0_87 = arith.constant 0 : index
      %c0_88 = arith.constant 0 : index
      %c0_89 = arith.constant 0 : index
      %96 = vector.load %arg8[%c0_87, %c0_88, %c0_89] : memref<18x18x8xf32, #tpu.memory_space<vmem>>, vector<18x18x8xf32>
      tpu.vector_store %arg8[%c0_87, %c0_88, %c0_89], %95 {strides = array<i32>} : memref<18x18x8xf32, #tpu.memory_space<vmem>>, vector<18x18x8xf32>,
    } else {
    }
    %c0 = arith.constant 0 : index
    %c0_1 = arith.constant 0 : index
    %c0_2 = arith.constant 0 : index
    %c0_3 = arith.constant 0 : index
    %3 = vector.load %arg1[%c0, %c0_1, %c0_2, %c0_3] : memref<1x16x16x128xf32, #tpu.memory_space<vmem>>, vector<1x16x16x128xf32>
    %4 = vector.shape_cast %3 : vector<1x16x16x128xf32> to vector<16x16x128xf32>
    %5 = vector.shape_cast %4 : vector<16x16x128xf32> to vector<256x128xf32>
    %cst = arith.constant dense<0.000000e+00> : vector<128xf32>
    %6 = vector.multi_reduction <add>, %5, %cst [0] : vector<256x128xf32> to vector<128xf32>
    %7 = vector.shape_cast %6 : vector<128xf32> to vector<1x128xf32>
    %cst_4 = arith.constant 2.560000e+02 : f32
    %8 = vector.broadcast %cst_4 : f32 to vector<1x128xf32>
    %9 = arith.divf %7, %8 : vector<1x128xf32>
    %10 = arith.truncf %9 : vector<1x128xf32> to vector<1x128xbf16>
    %c0_5 = arith.constant 0 : index
    %c0_6 = arith.constant 0 : index
    %11 = vector.load %arg2[%c0_5, %c0_6] : memref<8x128xbf16, #tpu.memory_space<vmem>>, vector<8x128xbf16>
    %cst_7 = arith.constant dense<0.000000e+00> : vector<1x8xf32>
    %12 = tpu.matmul %10, %11, %cst_7 {dimension_numbers = #tpu.dot_dimension_numbers<[1], [1], [0], [0], [0, 0, 1, 0], [], []>} : vector<1x128xbf16>, vector<8x128xbf16>, vector<1x8xf32> -> vector<1x8xf32>
    %cst_8 = arith.constant 0.000000e+00 : f32
    %13 = vector.broadcast %cst_8 : f32 to vector<1x8xf32>
    %14 = arith.maximumf %12, %13 : vector<1x8xf32>
    %15 = arith.truncf %14 : vector<1x8xf32> to vector<1x8xbf16>
    %c0_9 = arith.constant 0 : index
    %c0_10 = arith.constant 0 : index
    %16 = vector.load %arg3[%c0_9, %c0_10] : memref<8x128xbf16, #tpu.memory_space<vmem>>, vector<8x128xbf16>
    %cst_11 = arith.constant dense<0.000000e+00> : vector<1x128xf32>
    %17 = tpu.matmul %15, %16, %cst_11 {dimension_numbers = #tpu.dot_dimension_numbers<[1], [0], [0], [1], [0, 0, 1, 1], [], []>} : vector<1x8xbf16>, vector<8x128xbf16>, vector<1x128xf32> -> vector<1x128xf32>
    %c1 = arith.constant 1 : index
    %c1_12 = arith.constant 1 : index
    %c0_13 = arith.constant 0 : index
    %18 = vector.load %arg7[%c1, %c1_12, %c0_13] : memref<18x18x128xf32, #tpu.memory_space<vmem>>, vector<16x16x128xf32>
    tpu.vector_store %arg7[%c1, %c1_12, %c0_13], %4 {strides = array<i32>} : memref<18x18x128xf32, #tpu.memory_space<vmem>>, vector<16x16x128xf32>,
    %c0_14 = arith.constant 0 : index
    %c0_15 = arith.constant 0 : index
    %c0_16 = arith.constant 0 : index
    %19 = vector.load %arg7[%c0_14, %c0_15, %c0_16] : memref<18x18x128xf32, #tpu.memory_space<vmem>>, vector<16x16x128xf32>
    %20 = vector.shape_cast %19 : vector<16x16x128xf32> to vector<256x128xf32>
    %21 = arith.truncf %20 : vector<256x128xf32> to vector<256x128xbf16>
    %c0_17 = arith.constant 0 : index
    %c1_18 = arith.constant 1 : index
    %c0_19 = arith.constant 0 : index
    %22 = vector.load %arg7[%c0_17, %c1_18, %c0_19] : memref<18x18x128xf32, #tpu.memory_space<vmem>>, vector<16x16x128xf32>
    %23 = vector.shape_cast %22 : vector<16x16x128xf32> to vector<256x128xf32>
    %24 = arith.truncf %23 : vector<256x128xf32> to vector<256x128xbf16>
    %c0_20 = arith.constant 0 : index
    %c2 = arith.constant 2 : index
    %c0_21 = arith.constant 0 : index
    %25 = vector.load %arg7[%c0_20, %c2, %c0_21] : memref<18x18x128xf32, #tpu.memory_space<vmem>>, vector<16x16x128xf32>
    %26 = vector.shape_cast %25 : vector<16x16x128xf32> to vector<256x128xf32>
    %27 = arith.truncf %26 : vector<256x128xf32> to vector<256x128xbf16>
    %c1_22 = arith.constant 1 : index
    %c0_23 = arith.constant 0 : index
    %c0_24 = arith.constant 0 : index
    %28 = vector.load %arg7[%c1_22, %c0_23, %c0_24] : memref<18x18x128xf32, #tpu.memory_space<vmem>>, vector<16x16x128xf32>
    %29 = vector.shape_cast %28 : vector<16x16x128xf32> to vector<256x128xf32>
    %30 = arith.truncf %29 : vector<256x128xf32> to vector<256x128xbf16>
    %c1_25 = arith.constant 1 : index
    %c1_26 = arith.constant 1 : index
    %c0_27 = arith.constant 0 : index
    %31 = vector.load %arg7[%c1_25, %c1_26, %c0_27] : memref<18x18x128xf32, #tpu.memory_space<vmem>>, vector<16x16x128xf32>
    %32 = vector.shape_cast %31 : vector<16x16x128xf32> to vector<256x128xf32>
    %33 = arith.truncf %32 : vector<256x128xf32> to vector<256x128xbf16>
    %c1_28 = arith.constant 1 : index
    %c2_29 = arith.constant 2 : index
    %c0_30 = arith.constant 0 : index
    %34 = vector.load %arg7[%c1_28, %c2_29, %c0_30] : memref<18x18x128xf32, #tpu.memory_space<vmem>>, vector<16x16x128xf32>
    %35 = vector.shape_cast %34 : vector<16x16x128xf32> to vector<256x128xf32>
    %36 = arith.truncf %35 : vector<256x128xf32> to vector<256x128xbf16>
    %c2_31 = arith.constant 2 : index
    %c0_32 = arith.constant 0 : index
    %c0_33 = arith.constant 0 : index
    %37 = vector.load %arg7[%c2_31, %c0_32, %c0_33] : memref<18x18x128xf32, #tpu.memory_space<vmem>>, vector<16x16x128xf32>
    %38 = vector.shape_cast %37 : vector<16x16x128xf32> to vector<256x128xf32>
    %39 = arith.truncf %38 : vector<256x128xf32> to vector<256x128xbf16>
    %c2_34 = arith.constant 2 : index
    %c1_35 = arith.constant 1 : index
    %c0_36 = arith.constant 0 : index
    %40 = vector.load %arg7[%c2_34, %c1_35, %c0_36] : memref<18x18x128xf32, #tpu.memory_space<vmem>>, vector<16x16x128xf32>
    %41 = vector.shape_cast %40 : vector<16x16x128xf32> to vector<256x128xf32>
    %42 = arith.truncf %41 : vector<256x128xf32> to vector<256x128xbf16>
    %c2_37 = arith.constant 2 : index
    %c2_38 = arith.constant 2 : index
    %c0_39 = arith.constant 0 : index
    %43 = vector.load %arg7[%c2_37, %c2_38, %c0_39] : memref<18x18x128xf32, #tpu.memory_space<vmem>>, vector<16x16x128xf32>
    %44 = vector.shape_cast %43 : vector<16x16x128xf32> to vector<256x128xf32>
    %45 = arith.truncf %44 : vector<256x128xf32> to vector<256x128xbf16>
    %46 = tpu.concatenate %21, %24, %27, %30, %33, %36, %39, %42, %45 in 1 : vector<256x128xbf16>, vector<256x128xbf16>, vector<256x128xbf16>, vector<256x128xbf16>, vector<256x128xbf16>, vector<256x128xbf16>, vector<256x128xbf16>, vector<256x128xbf16>, vector<256x128xbf16> -> vector<256x1152xbf16>
    %c0_40 = arith.constant 0 : index
    %c0_41 = arith.constant 0 : index
    %47 = vector.load %arg4[%c0_40, %c0_41] : memref<8x1152xbf16, #tpu.memory_space<vmem>>, vector<8x1152xbf16>
    %cst_42 = arith.constant dense<0.000000e+00> : vector<256x8xf32>
    %48 = tpu.matmul %46, %47, %cst_42 {dimension_numbers = #tpu.dot_dimension_numbers<[1], [1], [0], [0], [0, 0, 1, 0], [], []>} : vector<256x1152xbf16>, vector<8x1152xbf16>, vector<256x8xf32> -> vector<256x8xf32>
    %cst_43 = arith.constant 0.000000e+00 : f32
    %49 = vector.broadcast %cst_43 : f32 to vector<256x8xf32>
    %50 = arith.maximumf %48, %49 : vector<256x8xf32>
    %51 = vector.shape_cast %50 : vector<256x8xf32> to vector<16x16x8xf32>
    %c1_44 = arith.constant 1 : index
    %c1_45 = arith.constant 1 : index
    %c0_46 = arith.constant 0 : index
    %52 = vector.load %arg8[%c1_44, %c1_45, %c0_46] : memref<18x18x8xf32, #tpu.memory_space<vmem>>, vector<16x16x8xf32>
    tpu.vector_store %arg8[%c1_44, %c1_45, %c0_46], %51 {strides = array<i32>} : memref<18x18x8xf32, #tpu.memory_space<vmem>>, vector<16x16x8xf32>,
    %c0_47 = arith.constant 0 : index
    %c0_48 = arith.constant 0 : index
    %c0_49 = arith.constant 0 : index
    %53 = vector.load %arg8[%c0_47, %c0_48, %c0_49] : memref<18x18x8xf32, #tpu.memory_space<vmem>>, vector<16x16x8xf32>
    %54 = vector.shape_cast %53 : vector<16x16x8xf32> to vector<256x8xf32>
    %55 = arith.truncf %54 : vector<256x8xf32> to vector<256x8xbf16>
    %c0_50 = arith.constant 0 : index
    %c1_51 = arith.constant 1 : index
    %c0_52 = arith.constant 0 : index
    %56 = vector.load %arg8[%c0_50, %c1_51, %c0_52] : memref<18x18x8xf32, #tpu.memory_space<vmem>>, vector<16x16x8xf32>
    %57 = vector.shape_cast %56 : vector<16x16x8xf32> to vector<256x8xf32>
    %58 = arith.truncf %57 : vector<256x8xf32> to vector<256x8xbf16>
    %c0_53 = arith.constant 0 : index
    %c2_54 = arith.constant 2 : index
    %c0_55 = arith.constant 0 : index
    %59 = vector.load %arg8[%c0_53, %c2_54, %c0_55] : memref<18x18x8xf32, #tpu.memory_space<vmem>>, vector<16x16x8xf32>
    %60 = vector.shape_cast %59 : vector<16x16x8xf32> to vector<256x8xf32>
    %61 = arith.truncf %60 : vector<256x8xf32> to vector<256x8xbf16>
    %c1_56 = arith.constant 1 : index
    %c0_57 = arith.constant 0 : index
    %c0_58 = arith.constant 0 : index
    %62 = vector.load %arg8[%c1_56, %c0_57, %c0_58] : memref<18x18x8xf32, #tpu.memory_space<vmem>>, vector<16x16x8xf32>
    %63 = vector.shape_cast %62 : vector<16x16x8xf32> to vector<256x8xf32>
    %64 = arith.truncf %63 : vector<256x8xf32> to vector<256x8xbf16>
    %c1_59 = arith.constant 1 : index
    %c1_60 = arith.constant 1 : index
    %c0_61 = arith.constant 0 : index
    %65 = vector.load %arg8[%c1_59, %c1_60, %c0_61] : memref<18x18x8xf32, #tpu.memory_space<vmem>>, vector<16x16x8xf32>
    %66 = vector.shape_cast %65 : vector<16x16x8xf32> to vector<256x8xf32>
    %67 = arith.truncf %66 : vector<256x8xf32> to vector<256x8xbf16>
    %c1_62 = arith.constant 1 : index
    %c2_63 = arith.constant 2 : index
    %c0_64 = arith.constant 0 : index
    %68 = vector.load %arg8[%c1_62, %c2_63, %c0_64] : memref<18x18x8xf32, #tpu.memory_space<vmem>>, vector<16x16x8xf32>
    %69 = vector.shape_cast %68 : vector<16x16x8xf32> to vector<256x8xf32>
    %70 = arith.truncf %69 : vector<256x8xf32> to vector<256x8xbf16>
    %c2_65 = arith.constant 2 : index
    %c0_66 = arith.constant 0 : index
    %c0_67 = arith.constant 0 : index
    %71 = vector.load %arg8[%c2_65, %c0_66, %c0_67] : memref<18x18x8xf32, #tpu.memory_space<vmem>>, vector<16x16x8xf32>
    %72 = vector.shape_cast %71 : vector<16x16x8xf32> to vector<256x8xf32>
    %73 = arith.truncf %72 : vector<256x8xf32> to vector<256x8xbf16>
    %c2_68 = arith.constant 2 : index
    %c1_69 = arith.constant 1 : index
    %c0_70 = arith.constant 0 : index
    %74 = vector.load %arg8[%c2_68, %c1_69, %c0_70] : memref<18x18x8xf32, #tpu.memory_space<vmem>>, vector<16x16x8xf32>
    %75 = vector.shape_cast %74 : vector<16x16x8xf32> to vector<256x8xf32>
    %76 = arith.truncf %75 : vector<256x8xf32> to vector<256x8xbf16>
    %c2_71 = arith.constant 2 : index
    %c2_72 = arith.constant 2 : index
    %c0_73 = arith.constant 0 : index
    %77 = vector.load %arg8[%c2_71, %c2_72, %c0_73] : memref<18x18x8xf32, #tpu.memory_space<vmem>>, vector<16x16x8xf32>
    %78 = vector.shape_cast %77 : vector<16x16x8xf32> to vector<256x8xf32>
    %79 = arith.truncf %78 : vector<256x8xf32> to vector<256x8xbf16>
    %80 = tpu.concatenate %55, %58, %61, %64, %67, %70, %73, %76, %79 in 1 : vector<256x8xbf16>, vector<256x8xbf16>, vector<256x8xbf16>, vector<256x8xbf16>, vector<256x8xbf16>, vector<256x8xbf16>, vector<256x8xbf16>, vector<256x8xbf16>, vector<256x8xbf16> -> vector<256x72xbf16>
    %c0_74 = arith.constant 0 : index
    %c0_75 = arith.constant 0 : index
    %81 = vector.load %arg5[%c0_74, %c0_75] : memref<72x128xbf16, #tpu.memory_space<vmem>>, vector<72x128xbf16>
    %cst_76 = arith.constant dense<0.000000e+00> : vector<256x128xf32>
    %82 = tpu.matmul %80, %81, %cst_76 {dimension_numbers = #tpu.dot_dimension_numbers<[1], [0], [0], [1], [0, 0, 1, 1], [], []>} : vector<256x72xbf16>, vector<72x128xbf16>, vector<256x128xf32> -> vector<256x128xf32>
    %83 = vector.broadcast %17 : vector<1x128xf32> to vector<256x128xf32>
    %84 = arith.mulf %83, %82 : vector<256x128xf32>
    %85 = arith.negf %84 : vector<256x128xf32>
    %86 = math.exp %85 : vector<256x128xf32>
    %cst_77 = arith.constant 1.000000e+00 : f32
    %87 = vector.broadcast %cst_77 : f32 to vector<256x128xf32>
    %88 = arith.addf %87, %86 : vector<256x128xf32>
    %89 = arith.divf %87, %88 : vector<256x128xf32>
    %90 = arith.mulf %5, %89 : vector<256x128xf32>
    %91 = vector.shape_cast %90 : vector<256x128xf32> to vector<1x16x16x128xf32>
    %c0_78 = arith.constant 0 : index
    %c0_79 = arith.constant 0 : index
    %c0_80 = arith.constant 0 : index
    %c0_81 = arith.constant 0 : index
    %92 = vector.load %arg6[%c0_78, %c0_79, %c0_80, %c0_81] : memref<1x16x16x128xf32, #tpu.memory_space<vmem>>, vector<1x16x16x128xf32>
    tpu.vector_store %arg6[%c0_78, %c0_79, %c0_80, %c0_81], %91 {strides = array<i32>} : memref<1x16x16x128xf32, #tpu.memory_space<vmem>>, vector<1x16x16x128xf32>,
    return
  }
  func.func @transform_0(%arg0: i32) -> (i32, i32, i32, i32) {
    %c0_i32 = arith.constant 0 : i32
    %c0_i32_0 = arith.constant 0 : i32
    %c0_i32_1 = arith.constant 0 : i32
    %c0_i32_2 = arith.constant 0 : i32
    return %arg0, %c0_i32, %c0_i32_0, %c0_i32_1 : i32, i32, i32, i32
  }
  func.func @transform_1(%arg0: i32) -> (i32, i32) {
    %c0_i32 = arith.constant 0 : i32
    %c0_i32_0 = arith.constant 0 : i32
    %c0_i32_1 = arith.constant 0 : i32
    return %c0_i32, %c0_i32_0 : i32, i32
  }
  func.func @transform_2(%arg0: i32) -> (i32, i32) {
    %c0_i32 = arith.constant 0 : i32
    %c0_i32_0 = arith.constant 0 : i32
    %c0_i32_1 = arith.constant 0 : i32
    return %c0_i32, %c0_i32_0 : i32, i32
  }
  func.func @transform_3(%arg0: i32) -> (i32, i32) {
    %c0_i32 = arith.constant 0 : i32
    %c0_i32_0 = arith.constant 0 : i32
    %c0_i32_1 = arith.constant 0 : i32
    return %c0_i32, %c0_i32_0 : i32, i32
  }
  func.func @transform_4(%arg0: i32) -> (i32, i32) {
    %c0_i32 = arith.constant 0 : i32
    %c0_i32_0 = arith.constant 0 : i32
    %c0_i32_1 = arith.constant 0 : i32
    return %c0_i32, %c0_i32_0 : i32, i32
  }
  func.func @transform_5(%arg0: i32) -> (i32, i32, i32, i32) {
    %c0_i32 = arith.constant 0 : i32
    %c0_i32_0 = arith.constant 0 : i32
    %c0_i32_1 = arith.constant 0 : i32
    %c0_i32_2 = arith.constant 0 : i32
    return %arg0, %c0_i32, %c0_i32_0, %c0_i32_1 : i32, i32, i32, i32
  }
}

</mosaic_0001>

<llo_original>
// kernel: selayer_forward.1
$region0: #{selayer_forward.1}
  #allocation0 [shape = 'u32[]', space=smem, size = 0x4, offset = 0x4, fixed_abs, tag = 'smem constant byte address 0x4 - core index']
  #allocation1 [shape = 'u32[72,128]{1,0:T(1,128)}', space=vmem, size = 0x9000, scoped, tag = 'internal scratch']
  #allocation2 [shape = 'f32[18,18,128]{2,1,0:T(8,128)}', space=vmem, size = 0x36000, scoped, tag = 'scratch operand']
  #allocation3 [shape = 'f32[18,18,8]{2,1,0:T(8,128)}', space=vmem, size = 0x36000, scoped, tag = 'scratch operand']
  %s0 = inlined_call_operand.hbm [shape: f32[2,16,16,128], index: 0, kind: input, shape index: {}]
  %s1 = inlined_call_operand.vmem [shape: bf16[8,128], index: 1, kind: input, shape index: {}]
  %s2 = inlined_call_operand.vmem [shape: bf16[8,128], index: 2, kind: input, shape index: {}]
  %s3 = inlined_call_operand.vmem [shape: bf16[8,1152], index: 3, kind: input, shape index: {}]
  %s4 = inlined_call_operand.vmem [shape: bf16[72,128], index: 4, kind: input, shape index: {}]
  %s5 = inlined_call_operand.hbm [shape: f32[2,16,16,128], index: 5, kind: output, shape index: {}]
  %s6 = sld [smem:[#allocation0]]
  $region61: #{selayer_forward.1} parent=0
    _
  %s8 = ssub.s32 1, %s6
  %s9 = scalar_select 0, %s8, %s6
  $region1: #{selayer_forward.1} parent=0
    #allocation4 [shape = 'u8[262144]{0}', space=vmem, size = 0x40000, scoped, tag = 'input window, operand 0']
    #allocation5 [shape = 's32[2]{0}', space=sflag, size = 0x8, scoped, tag = 'scoped memory for selayer_forward.1']
    #allocation6 [shape = 's32[2]{0}', space=sflag, size = 0x8, scoped, tag = 'scoped memory for selayer_forward.1']
    #allocation7 [shape = 'u8[262144]{0}', space=vmem, size = 0x40000, scoped, tag = 'output window, operand 0']
    %10 = vsyncpa [#allocation5], 0
    %s11 = scalar_lea.sflag [#allocation5], 1
    %12 = vsyncpa %s11, 0
    %13 = vsyncpa [#allocation6], 0
    %s14 = scalar_lea.sflag [#allocation6], 1
    %15 = vsyncpa %s14, 0
    loop: start=0, step=1, limit=4
    $region2: #{selayer_forward.1} parent=1 // loop_pre_header
      _
    $region3: #{selayer_forward.1} parent=1 // loop_header
      %s17 = sphi 0, %s21
      %p18 = scmp.ge.s32.totalorder %s17, 4
      %s27 = sphi 0, %s29
      %s30 = sphi 0, %s27
      %s31 = sphi 0, %s30
      %s47 = sphi 0, %s31
      %s51 = sphi 0, %s51
      %s53 = sphi 0, %s51
      %s54 = sphi 0, %s53
      %s68 = sphi 0, %s54
      %s72 = sphi 0, %s72
      %s74 = sphi 0, %s72
      %s75 = sphi 0, %s74
      %s89 = sphi 0, %s75
      %s93 = sphi 0, %s93
      %s95 = sphi 0, %s93
      %s96 = sphi 0, %s95
      %s110 = sphi 0, %s96
      %s114 = sphi 0, %s114
      %s116 = sphi 0, %s114
      %s117 = sphi 0, %s116
      %s131 = sphi 0, %s117
      %s137 = sphi 0, %s139
      %s140 = sphi 0, %s137
      %s141 = sphi 0, %s140
      %s157 = sphi 0, %s141
    $region4: #{selayer_forward.1} parent=1 // loop_header_branch
      %20 = sbr.rel (%p18) target = $region8
    $region5: #{selayer_forward.1} parent=1 // loop_body
      %s22 = ssub.s32 %s17, 1
      %s23 = ssub.s32 %s17, 2
      %s24 = sadd.s32 %s17, 1
      %s25 = ssub.s32 %s17, %s24
      %p26 = scmp.eq.s32.totalorder %s25, 0
      %s28 = sadd.s32 %s27, 1
      %s29 = scalar_select %p26, %s27, %s28
      %p32 = pneg %p26
      %p33 = scmp.eq.s32.totalorder %s17, 1
      %p34 = por %p32, %p33
      %p35 = scmp.ne.s32.totalorder %s27, %s30
      %p36 = scmp.eq.s32.totalorder %s17, 0
      %p37 = por %p35, %p36
      %p38 = scmp.ne.s32.totalorder %s27, %s30
      %p39 = scmp.eq.s32.totalorder %s22, 1
      %p40 = por %p38, %p39
      %p41 = scmp.ne.s32.totalorder %s30, %s31
      %p42 = scmp.eq.s32.totalorder %s22, 0
      %p43 = por %p41, %p42
      %p44 = scmp.ne.s32.totalorder %s30, %s31
      %p45 = scmp.eq.s32.totalorder %s23, 1
      %p46 = por %p44, %p45
      %p48 = scmp.ne.s32.totalorder %s31, %s47
      %p49 = scmp.eq.s32.totalorder %s23, 0
      %p50 = por %p48, %p49
      %s52 = sadd.s32 %s51, 1
      %p55 = scmp.eq.s32.totalorder %s17, 1
      %p56 = scmp.ne.s32.totalorder %s51, %s53
      %p57 = scmp.eq.s32.totalorder %s17, 0
      %p58 = por %p56, %p57
      %p59 = scmp.ne.s32.totalorder %s51, %s53
      %p60 = scmp.eq.s32.totalorder %s22, 1
      %p61 = por %p59, %p60
      %p62 = scmp.ne.s32.totalorder %s53, %s54
      %p63 = scmp.eq.s32.totalorder %s22, 0
      %p64 = por %p62, %p63
      %p65 = scmp.ne.s32.totalorder %s53, %s54
      %p66 = scmp.eq.s32.totalorder %s23, 1
      %p67 = por %p65, %p66
      %p69 = scmp.ne.s32.totalorder %s54, %s68
      %p70 = scmp.eq.s32.totalorder %s23, 0
      %p71 = por %p69, %p70
      %s73 = sadd.s32 %s72, 1
      %p76 = scmp.eq.s32.totalorder %s17, 1
      %p77 = scmp.ne.s32.totalorder %s72, %s74
      %p78 = scmp.eq.s32.totalorder %s17, 0
      %p79 = por %p77, %p78
      %p80 = scmp.ne.s32.totalorder %s72, %s74
      %p81 = scmp.eq.s32.totalorder %s22, 1
      %p82 = por %p80, %p81
      %p83 = scmp.ne.s32.totalorder %s74, %s75
      %p84 = scmp.eq.s32.totalorder %s22, 0
      %p85 = por %p83, %p84
      %p86 = scmp.ne.s32.totalorder %s74, %s75
      %p87 = scmp.eq.s32.totalorder %s23, 1
      %p88 = por %p86, %p87
      %p90 = scmp.ne.s32.totalorder %s75, %s89
      %p91 = scmp.eq.s32.totalorder %s23, 0
      %p92 = por %p90, %p91
      %s94 = sadd.s32 %s93, 1
      %p97 = scmp.eq.s32.totalorder %s17, 1
      %p98 = scmp.ne.s32.totalorder %s93, %s95
      %p99 = scmp.eq.s32.totalorder %s17, 0
      %p100 = por %p98, %p99
      %p101 = scmp.ne.s32.totalorder %s93, %s95
      %p102 = scmp.eq.s32.totalorder %s22, 1
      %p103 = por %p101, %p102
      %p104 = scmp.ne.s32.totalorder %s95, %s96
      %p105 = scmp.eq.s32.totalorder %s22, 0
      %p106 = por %p104, %p105
      %p107 = scmp.ne.s32.totalorder %s95, %s96
      %p108 = scmp.eq.s32.totalorder %s23, 1
      %p109 = por %p107, %p108
      %p111 = scmp.ne.s32.totalorder %s96, %s110
      %p112 = scmp.eq.s32.totalorder %s23, 0
      %p113 = por %p111, %p112
      %s115 = sadd.s32 %s114, 1
      %p118 = scmp.eq.s32.totalorder %s17, 1
      %p119 = scmp.ne.s32.totalorder %s114, %s116
      %p120 = scmp.eq.s32.totalorder %s17, 0
      %p121 = por %p119, %p120
      %p122 = scmp.ne.s32.totalorder %s114, %s116
      %p123 = scmp.eq.s32.totalorder %s22, 1
      %p124 = por %p122, %p123
      %p125 = scmp.ne.s32.totalorder %s116, %s117
      %p126 = scmp.eq.s32.totalorder %s22, 0
      %p127 = por %p125, %p126
      %p128 = scmp.ne.s32.totalorder %s116, %s117
      %p129 = scmp.eq.s32.totalorder %s23, 1
      %p130 = por %p128, %p129
      %p132 = scmp.ne.s32.totalorder %s117, %s131
      %p133 = scmp.eq.s32.totalorder %s23, 0
      %p134 = por %p132, %p133
      %s135 = ssub.s32 %s17, %s24
      %p136 = scmp.eq.s32.totalorder %s135, 0
      %s138 = sadd.s32 %s137, 1
      %s139 = scalar_select %p136, %s137, %s138
      %p142 = pneg %p136
      %p143 = scmp.eq.s32.totalorder %s17, 1
      %p144 = por %p142, %p143
      %p145 = scmp.ne.s32.totalorder %s137, %s140
      %p146 = scmp.eq.s32.totalorder %s17, 0
      %p147 = por %p145, %p146
      %p148 = scmp.ne.s32.totalorder %s137, %s140
      %p149 = scmp.eq.s32.totalorder %s22, 1
      %p150 = por %p148, %p149
      %p151 = scmp.ne.s32.totalorder %s140, %s141
      %p152 = scmp.eq.s32.totalorder %s22, 0
      %p153 = por %p151, %p152
      %p154 = scmp.ne.s32.totalorder %s140, %s141
      %p155 = scmp.eq.s32.totalorder %s23, 1
      %p156 = por %p154, %p155
      %p158 = scmp.ne.s32.totalorder %s141, %s157
      %p159 = scmp.eq.s32.totalorder %s23, 0
      %p160 = por %p158, %p159
      %p161 = scmp.le.s32.totalorder 1, %s17
      %p162 = scmp.lt.s32.totalorder %s17, 3
      %p163 = pnand %p161, %p162
      %p164 = pneg %p163
      // Predicated region
      $region9: #{selayer_forward.1} parent=5 // pred_check
        _
      $region10: #{selayer_forward.1} parent=5 // pred_check_branch
        %166 = sbr.rel (%p163) target = $region12
      $region11: #{selayer_forward.1} parent=5 // pred_region
        %s167 = ssub.s32 %s17, 1
        // Predicated region
        $region13: #{selayer_forward.1} parent=11 // pred_check
          %p168 = pneg %p64
        $region14: #{selayer_forward.1} parent=11 // pred_check_branch
          %170 = sbr.rel (%p168) target = $region16
        $region15: #{selayer_forward.1} parent=11 // pred_region
          _
        $region16: #{selayer_forward.1} parent=11 // pred_fallthru
          _
        // Predicated region
        $region17: #{selayer_forward.1} parent=11 // pred_check
          %p171 = pneg %p85
        $region18: #{selayer_forward.1} parent=11 // pred_check_branch
          %173 = sbr.rel (%p171) target = $region20
        $region19: #{selayer_forward.1} parent=11 // pred_region
          _
        $region20: #{selayer_forward.1} parent=11 // pred_fallthru
          _
        // Predicated region
        $region21: #{selayer_forward.1} parent=11 // pred_check
          %p174 = pneg %p106
        $region22: #{selayer_forward.1} parent=11 // pred_check_branch
          %176 = sbr.rel (%p174) target = $region24
        $region23: #{selayer_forward.1} parent=11 // pred_region
          _
        $region24: #{selayer_forward.1} parent=11 // pred_fallthru
          _
        // Predicated region
        $region25: #{selayer_forward.1} parent=11 // pred_check
          %p177 = pneg %p127
        $region26: #{selayer_forward.1} parent=11 // pred_check_branch
          %179 = sbr.rel (%p177) target = $region28
        $region27: #{selayer_forward.1} parent=11 // pred_region
          _
        $region28: #{selayer_forward.1} parent=11 // pred_fallthru
          _
      $region12: #{selayer_forward.1} parent=5 // pred_fallthru
        _
      %p180 = scmp.lt.s32.totalorder %s17, 2
      // Predicated region
      $region29: #{selayer_forward.1} parent=5 // pred_check
        %p181 = pneg %p180
      $region30: #{selayer_forward.1} parent=5 // pred_check_branch
        %183 = sbr.rel (%p181) target = $region32
      $region31: #{selayer_forward.1} parent=5 // pred_region
        // Predicated region
        $region33: #{selayer_forward.1} parent=31 // pred_check
          %p184 = pneg %p37
        $region34: #{selayer_forward.1} parent=31 // pred_check_branch
          %186 = sbr.rel (%p184) target = $region36
        $region35: #{selayer_forward.1} parent=31 // pred_region
          %s187 = sand.u32 %s27, 1
          %s188 = scalar_lea.sflag [#allocation5], %s187
          %s189 = sand.u32 %s27, 1
          %s190 = smul.addr %s189, 256
          %s191 = scalar_lea.vmem [#allocation4], %s190
          %193 = vsyncadd %s188, 0
          %s194 = smul.addr %s17, 32
          %s195 = smul.addr %s194, 8
          %s196 = scalar_lea.hbm %s0, %s195
          %s197 = sshll.u32 %s196, 4
          %s198 = int_to_ptr.hbm [resolvable:$true] %s197
          %s199 = sshll.u32 %s191, 4
          %s200 = int_to_ptr.vmem [resolvable:$true] %s199
          %205 = dma.hbm_to_vmem [thread:$0]  %s198, 4096, %s200, %s188, 128, 128, 8
        $region36: #{selayer_forward.1} parent=31 // pred_fallthru
          _
      $region32: #{selayer_forward.1} parent=5 // pred_fallthru
        _
      %p206 = scmp.le.s32.totalorder 1, %s17
      %p207 = scmp.lt.s32.totalorder %s17, 3
      %p208 = pnand %p206, %p207
      %p209 = pneg %p208
      // Predicated region
      $region37: #{selayer_forward.1} parent=5 // pred_check
        _
      $region38: #{selayer_forward.1} parent=5 // pred_check_branch
        %211 = sbr.rel (%p208) target = $region40
      $region39: #{selayer_forward.1} parent=5 // pred_region
        %s212 = ssub.s32 %s17, 1
        %s213 = sand.u32 %s30, 1
        %s214 = scalar_lea.sflag [#allocation5], %s213
        %s215 = sand.u32 %s30, 1
        %s216 = smul.addr %s215, 256
        %s217 = scalar_lea.vmem [#allocation4], %s216
        // Predicated region
        $region41: #{selayer_forward.1} parent=39 // pred_check
          %p218 = pneg %p43
        $region42: #{selayer_forward.1} parent=39 // pred_check_branch
          %220 = sbr.rel (%p218) target = $region44
        $region43: #{selayer_forward.1} parent=39 // pred_region
          %222 = dma.done %s214, 4096
        $region44: #{selayer_forward.1} parent=39 // pred_fallthru
          _
        %s223 = sand.u32 %s30, 1
        %s224 = scalar_lea.sflag [#allocation5], %s223
        %s225 = sand.u32 %s30, 1
        %s226 = smul.addr %s225, 256
        %s227 = scalar_lea.vmem [#allocation4], %s226
        %p228 = pneg %p43
        %p229 = pneg %p40
        %p230 = pneg %p64
        %p231 = pneg %p61
        %p232 = pneg %p85
        %p233 = pneg %p82
        %p234 = pneg %p106
        %p235 = pneg %p103
        %p236 = pneg %p127
        %p237 = pneg %p124
        %p238 = pneg %p153
        %p239 = pneg %p150
        %s240 = sand.u32 %s140, 1
        %s241 = scalar_lea.sflag [#allocation6], %s240
        %s242 = sand.u32 %s140, 1
        %s243 = smul.addr %s242, 256
        %s244 = scalar_lea.vmem [#allocation7], %s243
        %p246 = scmp.eq.s32.totalorder %s22, 0
        // Predicated region
        $region45: #{selayer_forward.1} parent=39 // pred_check
          %p247 = pneg %p246
        $region46: #{selayer_forward.1} parent=39 // pred_check_branch
          %249 = sbr.rel (%p247) target = $region48
        $region47: #{selayer_forward.1} parent=39 // pred_region
          %250 = vst [vmem:[#allocation2] sm:$0xff] 0.0
          %251 = vst [vmem:[#allocation2 + $0x8] sm:$0xff] 0.0
          %252 = vst [vmem:[#allocation2 + $0x10] sm:$0x3] 0.0
          %253 = vst [vmem:[#allocation2 + $0x18] sm:$0xff] 0.0
          %254 = vst [vmem:[#allocation2 + $0x20] sm:$0xff] 0.0
          %255 = vst [vmem:[#allocation2 + $0x28] sm:$0x3] 0.0
          %256 = vst [vmem:[#allocation2 + $0x30] sm:$0xff] 0.0
          %257 = vst [vmem:[#allocation2 + $0x38] sm:$0xff] 0.0
          %258 = vst [vmem:[#allocation2 + $0x40] sm:$0x3] 0.0
          %259 = vst [vmem:[#allocation2 + $0x48] sm:$0xff] 0.0
          %260 = vst [vmem:[#allocation2 + $0x50] sm:$0xff] 0.0
          %261 = vst [vmem:[#allocation2 + $0x58] sm:$0x3] 0.0
          %262 = vst [vmem:[#allocation2 + $0x60] sm:$0xff] 0.0
          %263 = vst [vmem:[#allocation2 + $0x68] sm:$0xff] 0.0
          %264 = vst [vmem:[#allocation2 + $0x70] sm:$0x3] 0.0
          %265 = vst [vmem:[#allocation2 + $0x78] sm:$0xff] 0.0
          %266 = vst [vmem:[#allocation2 + $0x80] sm:$0xff] 0.0
          %267 = vst [vmem:[#allocation2 + $0x88] sm:$0x3] 0.0
          %268 = vst [vmem:[#allocation2 + $0x90] sm:$0xff] 0.0
          %269 = vst [vmem:[#allocation2 + $0x98] sm:$0xff] 0.0
          %270 = vst [vmem:[#allocation2 + $0xa0] sm:$0x3] 0.0
          %271 = vst [vmem:[#allocation2 + $0xa8] sm:$0xff] 0.0
          %272 = vst [vmem:[#allocation2 + $0xb0] sm:$0xff] 0.0
          %273 = vst [vmem:[#allocation2 + $0xb8] sm:$0x3] 0.0
          %274 = vst [vmem:[#allocation2 + $0xc0] sm:$0xff] 0.0
          %275 = vst [vmem:[#allocation2 + $0xc8] sm:$0xff] 0.0
          %276 = vst [vmem:[#allocation2 + $0xd0] sm:$0x3] 0.0
          %277 = vst [vmem:[#allocation2 + $0xd8] sm:$0xff] 0.0
          %278 = vst [vmem:[#allocation2 + $0xe0] sm:$0xff] 0.0
          %279 = vst [vmem:[#allocation2 + $0xe8] sm:$0x3] 0.0
          %280 = vst [vmem:[#allocation2 + $0xf0] sm:$0xff] 0.0
          %281 = vst [vmem:[#allocation2 + $0xf8] sm:$0xff] 0.0
          %282 = vst [vmem:[#allocation2 + $0x100] sm:$0x3] 0.0
          %283 = vst [vmem:[#allocation2 + $0x108] sm:$0xff] 0.0
          %284 = vst [vmem:[#allocation2 + $0x110] sm:$0xff] 0.0
          %285 = vst [vmem:[#allocation2 + $0x118] sm:$0x3] 0.0
          %286 = vst [vmem:[#allocation2 + $0x120] sm:$0xff] 0.0
          %287 = vst [vmem:[#allocation2 + $0x128] sm:$0xff] 0.0
          %288 = vst [vmem:[#allocation2 + $0x130] sm:$0x3] 0.0
          %289 = vst [vmem:[#allocation2 + $0x138] sm:$0xff] 0.0
          %290 = vst [vmem:[#allocation2 + $0x140] sm:$0xff] 0.0
          %291 = vst [vmem:[#allocation2 + $0x148] sm:$0x3] 0.0
          %292 = vst [vmem:[#allocation2 + $0x150] sm:$0xff] 0.0
          %293 = vst [vmem:[#allocation2 + $0x158] sm:$0xff] 0.0
          %294 = vst [vmem:[#allocation2 + $0x160] sm:$0x3] 0.0
          %295 = vst [vmem:[#allocation2 + $0x168] sm:$0xff] 0.0
          %296 = vst [vmem:[#allocation2 + $0x170] sm:$0xff] 0.0
          %297 = vst [vmem:[#allocation2 + $0x178] sm:$0x3] 0.0
          %298 = vst [vmem:[#allocation2 + $0x180] sm:$0xff] 0.0
          %299 = vst [vmem:[#allocation2 + $0x188] sm:$0xff] 0.0
          %300 = vst [vmem:[#allocation2 + $0x190] sm:$0x3] 0.0
          %301 = vst [vmem:[#allocation2 + $0x198] sm:$0xff] 0.0
          %302 = vst [vmem:[#allocation2 + $0x1a0] sm:$0xff] 0.0
          %303 = vst [vmem:[#allocation2 + $0x1a8] sm:$0x3] 0.0
          %vm304 = vcmask 64512
          %305 = vst.msk [vmem:[#allocation3] sm:$0xff] %vm304, 0.0
          %306 = vst.msk [vmem:[#allocation3 + $0x8] sm:$0xff] %vm304, 0.0
          %vm307 = vcmask 58368
          %308 = vst.msk [vmem:[#allocation3 + $0x10] sm:$0x3] %vm307, 0.0
          %309 = vst.msk [vmem:[#allocation3 + $0x18] sm:$0xff] %vm304, 0.0
          %310 = vst.msk [vmem:[#allocation3 + $0x20] sm:$0xff] %vm304, 0.0
          %311 = vst.msk [vmem:[#allocation3 + $0x28] sm:$0x3] %vm307, 0.0
          %312 = vst.msk [vmem:[#allocation3 + $0x30] sm:$0xff] %vm304, 0.0
          %313 = vst.msk [vmem:[#allocation3 + $0x38] sm:$0xff] %vm304, 0.0
          %314 = vst.msk [vmem:[#allocation3 + $0x40] sm:$0x3] %vm307, 0.0
          %315 = vst.msk [vmem:[#allocation3 + $0x48] sm:$0xff] %vm304, 0.0
          %316 = vst.msk [vmem:[#allocation3 + $0x50] sm:$0xff] %vm304, 0.0
          %317 = vst.msk [vmem:[#allocation3 + $0x58] sm:$0x3] %vm307, 0.0
          %318 = vst.msk [vmem:[#allocation3 + $0x60] sm:$0xff] %vm304, 0.0
          %319 = vst.msk [vmem:[#allocation3 + $0x68] sm:$0xff] %vm304, 0.0
          %320 = vst.msk [vmem:[#allocation3 + $0x70] sm:$0x3] %vm307, 0.0
          %321 = vst.msk [vmem:[#allocation3 + $0x78] sm:$0xff] %vm304, 0.0
          %322 = vst.msk [vmem:[#allocation3 + $0x80] sm:$0xff] %vm304, 0.0
          %323 = vst.msk [vmem:[#allocation3 + $0x88] sm:$0x3] %vm307, 0.0
          %324 = vst.msk [vmem:[#allocation3 + $0x90] sm:$0xff] %vm304, 0.0
          %325 = vst.msk [vmem:[#allocation3 + $0x98] sm:$0xff] %vm304, 0.0
          %326 = vst.msk [vmem:[#allocation3 + $0xa0] sm:$0x3] %vm307, 0.0
          %327 = vst.msk [vmem:[#allocation3 + $0xa8] sm:$0xff] %vm304, 0.0
          %328 = vst.msk [vmem:[#allocation3 + $0xb0] sm:$0xff] %vm304, 0.0
          %329 = vst.msk [vmem:[#allocation3 + $0xb8] sm:$0x3] %vm307, 0.0
          %330 = vst.msk [vmem:[#allocation3 + $0xc0] sm:$0xff] %vm304, 0.0
          %331 = vst.msk [vmem:[#allocation3 + $0xc8] sm:$0xff] %vm304, 0.0
          %332 = vst.msk [vmem:[#allocation3 + $0xd0] sm:$0x3] %vm307, 0.0
          %333 = vst.msk [vmem:[#allocation3 + $0xd8] sm:$0xff] %vm304, 0.0
          %334 = vst.msk [vmem:[#allocation3 + $0xe0] sm:$0xff] %vm304, 0.0
          %335 = vst.msk [vmem:[#allocation3 + $0xe8] sm:$0x3] %vm307, 0.0
          %336 = vst.msk [vmem:[#allocation3 + $0xf0] sm:$0xff] %vm304, 0.0
          %337 = vst.msk [vmem:[#allocation3 + $0xf8] sm:$0xff] %vm304, 0.0
          %338 = vst.msk [vmem:[#allocation3 + $0x100] sm:$0x3] %vm307, 0.0
          %339 = vst.msk [vmem:[#allocation3 + $0x108] sm:$0xff] %vm304, 0.0
          %340 = vst.msk [vmem:[#allocation3 + $0x110] sm:$0xff] %vm304, 0.0
          %341 = vst.msk [vmem:[#allocation3 + $0x118] sm:$0x3] %vm307, 0.0
          %342 = vst.msk [vmem:[#allocation3 + $0x120] sm:$0xff] %vm304, 0.0
          %343 = vst.msk [vmem:[#allocation3 + $0x128] sm:$0xff] %vm304, 0.0
          %344 = vst.msk [vmem:[#allocation3 + $0x130] sm:$0x3] %vm307, 0.0
          %345 = vst.msk [vmem:[#allocation3 + $0x138] sm:$0xff] %vm304, 0.0
          %346 = vst.msk [vmem:[#allocation3 + $0x140] sm:$0xff] %vm304, 0.0
          %347 = vst.msk [vmem:[#allocation3 + $0x148] sm:$0x3] %vm307, 0.0
          %348 = vst.msk [vmem:[#allocation3 + $0x150] sm:$0xff] %vm304, 0.0
          %349 = vst.msk [vmem:[#allocation3 + $0x158] sm:$0xff] %vm304, 0.0
          %350 = vst.msk [vmem:[#allocation3 + $0x160] sm:$0x3] %vm307, 0.0
          %351 = vst.msk [vmem:[#allocation3 + $0x168] sm:$0xff] %vm304, 0.0
          %352 = vst.msk [vmem:[#allocation3 + $0x170] sm:$0xff] %vm304, 0.0
          %353 = vst.msk [vmem:[#allocation3 + $0x178] sm:$0x3] %vm307, 0.0
          %354 = vst.msk [vmem:[#allocation3 + $0x180] sm:$0xff] %vm304, 0.0
          %355 = vst.msk [vmem:[#allocation3 + $0x188] sm:$0xff] %vm304, 0.0
          %356 = vst.msk [vmem:[#allocation3 + $0x190] sm:$0x3] %vm307, 0.0
          %357 = vst.msk [vmem:[#allocation3 + $0x198] sm:$0xff] %vm304, 0.0
          %358 = vst.msk [vmem:[#allocation3 + $0x1a0] sm:$0xff] %vm304, 0.0
          %359 = vst.msk [vmem:[#allocation3 + $0x1a8] sm:$0x3] %vm307, 0.0
        $region48: #{selayer_forward.1} parent=39 // pred_fallthru
          _
        %v360 = vld [vmem:[%s217] sm:$0xff]
        %v361 = vld [vmem:[%s217 + $0x8] sm:$0xff]
        %v362 = vld [vmem:[%s217 + $0x10] sm:$0xff]
        %v363 = vld [vmem:[%s217 + $0x18] sm:$0xff]
        %v364 = vld [vmem:[%s217 + $0x20] sm:$0xff]
        %v365 = vld [vmem:[%s217 + $0x28] sm:$0xff]
        %v366 = vld [vmem:[%s217 + $0x30] sm:$0xff]
        %v367 = vld [vmem:[%s217 + $0x38] sm:$0xff]
        %v368 = vld [vmem:[%s217 + $0x40] sm:$0xff]
        %v369 = vld [vmem:[%s217 + $0x48] sm:$0xff]
        %v370 = vld [vmem:[%s217 + $0x50] sm:$0xff]
        %v371 = vld [vmem:[%s217 + $0x58] sm:$0xff]
        %v372 = vld [vmem:[%s217 + $0x60] sm:$0xff]
        %v373 = vld [vmem:[%s217 + $0x68] sm:$0xff]
        %v374 = vld [vmem:[%s217 + $0x70] sm:$0xff]
        %v375 = vld [vmem:[%s217 + $0x78] sm:$0xff]
        %v376 = vld [vmem:[%s217 + $0x80] sm:$0xff]
        %v377 = vld [vmem:[%s217 + $0x88] sm:$0xff]
        %v378 = vld [vmem:[%s217 + $0x90] sm:$0xff]
        %v379 = vld [vmem:[%s217 + $0x98] sm:$0xff]
        %v380 = vld [vmem:[%s217 + $0xa0] sm:$0xff]
        %v381 = vld [vmem:[%s217 + $0xa8] sm:$0xff]
        %v382 = vld [vmem:[%s217 + $0xb0] sm:$0xff]
        %v383 = vld [vmem:[%s217 + $0xb8] sm:$0xff]
        %v384 = vld [vmem:[%s217 + $0xc0] sm:$0xff]
        %v385 = vld [vmem:[%s217 + $0xc8] sm:$0xff]
        %v386 = vld [vmem:[%s217 + $0xd0] sm:$0xff]
        %v387 = vld [vmem:[%s217 + $0xd8] sm:$0xff]
        %v388 = vld [vmem:[%s217 + $0xe0] sm:$0xff]
        %v389 = vld [vmem:[%s217 + $0xe8] sm:$0xff]
        %v390 = vld [vmem:[%s217 + $0xf0] sm:$0xff]
        %v391 = vld [vmem:[%s217 + $0xf8] sm:$0xff]
        %v392 = vadd.f32 %v360, %v361
        %v393 = vadd.f32 %v392, %v362
        %v394 = vadd.f32 %v393, %v363
        %v395 = vadd.f32 %v394, %v364
        %v396 = vadd.f32 %v395, %v365
        %v397 = vadd.f32 %v396, %v366
        %v398 = vadd.f32 %v397, %v367
        %v399 = vadd.f32 %v398, %v368
        %v400 = vadd.f32 %v399, %v369
        %v401 = vadd.f32 %v400, %v370
        %v402 = vadd.f32 %v401, %v371
        %v403 = vadd.f32 %v402, %v372
        %v404 = vadd.f32 %v403, %v373
        %v405 = vadd.f32 %v404, %v374
        %v406 = vadd.f32 %v405, %v375
        %v407 = vadd.f32 %v406, %v376
        %v408 = vadd.f32 %v407, %v377
        %v409 = vadd.f32 %v408, %v378
        %v410 = vadd.f32 %v409, %v379
        %v411 = vadd.f32 %v410, %v380
        %v412 = vadd.f32 %v411, %v381
        %v413 = vadd.f32 %v412, %v382
        %v414 = vadd.f32 %v413, %v383
        %v415 = vadd.f32 %v414, %v384
        %v416 = vadd.f32 %v415, %v385
        %v417 = vadd.f32 %v416, %v386
        %v418 = vadd.f32 %v417, %v387
        %v419 = vadd.f32 %v418, %v388
        %v420 = vadd.f32 %v419, %v389
        %v421 = vadd.f32 %v420, %v390
        %v422 = vadd.f32 %v421, %v391
        %v423 = vrot.slane %v422, 4
        %v424 = vadd.f32 %v422, %v423
        %v425 = vrot.slane %v424, 2
        %v426 = vadd.f32 %v424, %v425
        %v427 = vrot.slane %v426, 1
        %v428 = vadd.f32 %v426, %v427
        %v429 = vrcp.pop 256.0
        %v430 = vmul.f32 256.0, %v429
        %v431 = vsub.f32 1.0, %v430
        %v432 = vmul.f32 %v429, %v431
        %v433 = vadd.f32 %v429, %v432
        %vm434 = vweird.f32 %v429
        %v435 = vsel %vm434, %v429, %v433
        %v436 = vmul.f32 %v428, %v435
        %v437 = vpack.c.bf16 %v436, %v436
        %v438 = vld [vmem:[%s1] sm:$0xf]
        %439 = vmatpush.bf16.xpose.msra.mxu0 0
        %440 = vmatpush.bf16.xpose.msra.mxu0 0
        %441 = vmatpush.bf16.xpose.msra.mxu0 0
        %442 = vmatpush.bf16.xpose.msra.mxu0 0
        %443 = vmatpush.bf16.xpose.msra.mxu0 0
        %444 = vmatpush.bf16.xpose.msra.mxu0 0
        %445 = vmatpush.bf16.xpose.msra.mxu0 0
        %446 = vmatpush.bf16.xpose.msra.mxu0 %v438
        %447 = vmatmul.bf16.gmra.mxu0 %v437
        %v448 = vpop.f32.mrf.mxu0
        %v449 = vadd.f32 0.0, %v448
        %v450 = vpop.f32.mrf.mxu0
        %451 = vdwg.mxu0
        %v452 = vmax.f32 %v449, 0.0
        %v453 = vpack.c.bf16 %v452, %v452
        %v454 = vld [vmem:[%s2] sm:$0xf]
        %vm455 = vcmask 64512
        %v457 = vsel %vm455, %v453, 0
        %vm459 = vcmask 1043456
        %v461 = vsel %vm459, %v454, 0
        %463 = vmatpush.bf16.msra.mxu0 0
        %464 = vmatpush.bf16.msra.mxu0 0
        %465 = vmatpush.bf16.msra.mxu0 0
        %466 = vmatpush.bf16.msra.mxu0 0
        %467 = vmatpush.bf16.msra.mxu0 0
        %468 = vmatpush.bf16.msra.mxu0 0
        %469 = vmatpush.bf16.msra.mxu0 0
        %470 = vmatpush.bf16.msra.mxu0 %v461
        %471 = vmatmul.bf16.gmra.mxu0 %v457
        %v472 = vpop.f32.mrf.mxu0
        %v473 = vadd.f32 0.0, %v472
        %v474 = vpop.f32.mrf.mxu0
        %475 = vdwg.mxu0
        %s476 = scalar_lea.vmem [#allocation2], 24
        %477 = vst [vmem:[%s476 + $0x1] sm:$0xff] %v360
        %478 = vst [vmem:[%s476 + $0x9] sm:$0xff] %v361
        %479 = vst [vmem:[%s476 + $0x19] sm:$0xff] %v362
        %480 = vst [vmem:[%s476 + $0x21] sm:$0xff] %v363
        %481 = vst [vmem:[%s476 + $0x31] sm:$0xff] %v364
        %482 = vst [vmem:[%s476 + $0x39] sm:$0xff] %v365
        %483 = vst [vmem:[%s476 + $0x49] sm:$0xff] %v366
        %484 = vst [vmem:[%s476 + $0x51] sm:$0xff] %v367
        %485 = vst [vmem:[%s476 + $0x61] sm:$0xff] %v368
        %486 = vst [vmem:[%s476 + $0x69] sm:$0xff] %v369
        %487 = vst [vmem:[%s476 + $0x79] sm:$0xff] %v370
        %488 = vst [vmem:[%s476 + $0x81] sm:$0xff] %v371
        %489 = vst [vmem:[%s476 + $0x91] sm:$0xff] %v372
        %490 = vst [vmem:[%s476 + $0x99] sm:$0xff] %v373
        %491 = vst [vmem:[%s476 + $0xa9] sm:$0xff] %v374
        %492 = vst [vmem:[%s476 + $0xb1] sm:$0xff] %v375
        %493 = vst [vmem:[%s476 + $0xc1] sm:$0xff] %v376
        %494 = vst [vmem:[%s476 + $0xc9] sm:$0xff] %v377
        %495 = vst [vmem:[%s476 + $0xd9] sm:$0xff] %v378
        %496 = vst [vmem:[%s476 + $0xe1] sm:$0xff] %v379
        %497 = vst [vmem:[%s476 + $0xf1] sm:$0xff] %v380
        %498 = vst [vmem:[%s476 + $0xf9] sm:$0xff] %v381
        %499 = vst [vmem:[%s476 + $0x109] sm:$0xff] %v382
        %500 = vst [vmem:[%s476 + $0x111] sm:$0xff] %v383
        %501 = vst [vmem:[%s476 + $0x121] sm:$0xff] %v384
        %502 = vst [vmem:[%s476 + $0x129] sm:$0xff] %v385
        %503 = vst [vmem:[%s476 + $0x139] sm:$0xff] %v386
        %504 = vst [vmem:[%s476 + $0x141] sm:$0xff] %v387
        %505 = vst [vmem:[%s476 + $0x151] sm:$0xff] %v388
        %506 = vst [vmem:[%s476 + $0x159] sm:$0xff] %v389
        %507 = vst [vmem:[%s476 + $0x169] sm:$0xff] %v390
        %508 = vst [vmem:[%s476 + $0x171] sm:$0xff] %v391
        %v509 = vld [vmem:[#allocation2] sm:$0xff]
        %v510 = vld [vmem:[#allocation2 + $0x8] sm:$0xff]
        %v511 = vld [vmem:[#allocation2 + $0x18] sm:$0xff]
        %v512 = vld [vmem:[#allocation2 + $0x20] sm:$0xff]
        %v513 = vld [vmem:[#allocation2 + $0x30] sm:$0xff]
        %v514 = vld [vmem:[#allocation2 + $0x38] sm:$0xff]
        %v515 = vld [vmem:[#allocation2 + $0x48] sm:$0xff]
        %v516 = vld [vmem:[#allocation2 + $0x50] sm:$0xff]
        %v517 = vld [vmem:[#allocation2 + $0x60] sm:$0xff]
        %v518 = vld [vmem:[#allocation2 + $0x68] sm:$0xff]
        %v519 = vld [vmem:[#allocation2 + $0x78] sm:$0xff]
        %v520 = vld [vmem:[#allocation2 + $0x80] sm:$0xff]
        %v521 = vld [vmem:[#allocation2 + $0x90] sm:$0xff]
        %v522 = vld [vmem:[#allocation2 + $0x98] sm:$0xff]
        %v523 = vld [vmem:[#allocation2 + $0xa8] sm:$0xff]
        %v524 = vld [vmem:[#allocation2 + $0xb0] sm:$0xff]
        %v525 = vld [vmem:[#allocation2 + $0xc0] sm:$0xff]
        %v526 = vld [vmem:[#allocation2 + $0xc8] sm:$0xff]
        %v527 = vld [vmem:[#allocation2 + $0xd8] sm:$0xff]
        %v528 = vld [vmem:[#allocation2 + $0xe0] sm:$0xff]
        %v529 = vld [vmem:[#allocation2 + $0xf0] sm:$0xff]
        %v530 = vld [vmem:[#allocation2 + $0xf8] sm:$0xff]
        %v531 = vld [vmem:[#allocation2 + $0x108] sm:$0xff]
        %v532 = vld [vmem:[#allocation2 + $0x110] sm:$0xff]
        %v533 = vld [vmem:[#allocation2 + $0x120] sm:$0xff]
        %v534 = vld [vmem:[#allocation2 + $0x128] sm:$0xff]
        %v535 = vld [vmem:[#allocation2 + $0x138] sm:$0xff]
        %v536 = vld [vmem:[#allocation2 + $0x140] sm:$0xff]
        %v537 = vld [vmem:[#allocation2 + $0x150] sm:$0xff]
        %v538 = vld [vmem:[#allocation2 + $0x158] sm:$0xff]
        %v539 = vld [vmem:[#allocation2 + $0x168] sm:$0xff]
        %v540 = vld [vmem:[#allocation2 + $0x170] sm:$0xff]
        %v541 = vpack.c.bf16 %v509, %v509
        %v542 = vpack.c.bf16 %v510, %v510
        %v543 = vpack.c.bf16 %v511, %v511
        %v544 = vpack.c.bf16 %v512, %v512
        %v545 = vpack.c.bf16 %v513, %v513
        %v546 = vpack.c.bf16 %v514, %v514
        %v547 = vpack.c.bf16 %v515, %v515
        %v548 = vpack.c.bf16 %v516, %v516
        %v549 = vpack.c.bf16 %v517, %v517
        %v550 = vpack.c.bf16 %v518, %v518
        %v551 = vpack.c.bf16 %v519, %v519
        %v552 = vpack.c.bf16 %v520, %v520
        %v553 = vpack.c.bf16 %v521, %v521
        %v554 = vpack.c.bf16 %v522, %v522
        %v555 = vpack.c.bf16 %v523, %v523
        %v556 = vpack.c.bf16 %v524, %v524
        %v557 = vpack.c.bf16 %v525, %v525
        %v558 = vpack.c.bf16 %v526, %v526
        %v559 = vpack.c.bf16 %v527, %v527
        %v560 = vpack.c.bf16 %v528, %v528
        %v561 = vpack.c.bf16 %v529, %v529
        %v562 = vpack.c.bf16 %v530, %v530
        %v563 = vpack.c.bf16 %v531, %v531
        %v564 = vpack.c.bf16 %v532, %v532
        %v565 = vpack.c.bf16 %v533, %v533
        %v566 = vpack.c.bf16 %v534, %v534
        %v567 = vpack.c.bf16 %v535, %v535
        %v568 = vpack.c.bf16 %v536, %v536
        %v569 = vpack.c.bf16 %v537, %v537
        %v570 = vpack.c.bf16 %v538, %v538
        %v571 = vpack.c.bf16 %v539, %v539
        %v572 = vpack.c.bf16 %v540, %v540
        %v573 = vld [vmem:[#allocation2 + $0x1] sm:$0xff]
        %v574 = vld [vmem:[#allocation2 + $0x9] sm:$0xff]
        %v575 = vld [vmem:[#allocation2 + $0x19] sm:$0xff]
        %v576 = vld [vmem:[#allocation2 + $0x21] sm:$0xff]
        %v577 = vld [vmem:[#allocation2 + $0x31] sm:$0xff]
        %v578 = vld [vmem:[#allocation2 + $0x39] sm:$0xff]
        %v579 = vld [vmem:[#allocation2 + $0x49] sm:$0xff]
        %v580 = vld [vmem:[#allocation2 + $0x51] sm:$0xff]
        %v581 = vld [vmem:[#allocation2 + $0x61] sm:$0xff]
        %v582 = vld [vmem:[#allocation2 + $0x69] sm:$0xff]
        %v583 = vld [vmem:[#allocation2 + $0x79] sm:$0xff]
        %v584 = vld [vmem:[#allocation2 + $0x81] sm:$0xff]
        %v585 = vld [vmem:[#allocation2 + $0x91] sm:$0xff]
        %v586 = vld [vmem:[#allocation2 + $0x99] sm:$0xff]
        %v587 = vld [vmem:[#allocation2 + $0xa9] sm:$0xff]
        %v588 = vld [vmem:[#allocation2 + $0xb1] sm:$0xff]
        %v589 = vld [vmem:[#allocation2 + $0xc1] sm:$0xff]
        %v590 = vld [vmem:[#allocation2 + $0xc9] sm:$0xff]
        %v591 = vld [vmem:[#allocation2 + $0xd9] sm:$0xff]
        %v592 = vld [vmem:[#allocation2 + $0xe1] sm:$0xff]
        %v593 = vld [vmem:[#allocation2 + $0xf1] sm:$0xff]
        %v594 = vld [vmem:[#allocation2 + $0xf9] sm:$0xff]
        %v595 = vld [vmem:[#allocation2 + $0x109] sm:$0xff]
        %v596 = vld [vmem:[#allocation2 + $0x111] sm:$0xff]
        %v597 = vld [vmem:[#allocation2 + $0x121] sm:$0xff]
        %v598 = vld [vmem:[#allocation2 + $0x129] sm:$0xff]
        %v599 = vld [vmem:[#allocation2 + $0x139] sm:$0xff]
        %v600 = vld [vmem:[#allocation2 + $0x141] sm:$0xff]
        %v601 = vld [vmem:[#allocation2 + $0x151] sm:$0xff]
        %v602 = vld [vmem:[#allocation2 + $0x159] sm:$0xff]
        %v603 = vld [vmem:[#allocation2 + $0x169] sm:$0xff]
        %v604 = vld [vmem:[#allocation2 + $0x171] sm:$0xff]
        %v605 = vpack.c.bf16 %v573, %v573
        %v606 = vpack.c.bf16 %v574, %v574
        %v607 = vpack.c.bf16 %v575, %v575
        %v608 = vpack.c.bf16 %v576, %v576
        %v609 = vpack.c.bf16 %v577, %v577
        %v610 = vpack.c.bf16 %v578, %v578
        %v611 = vpack.c.bf16 %v579, %v579
        %v612 = vpack.c.bf16 %v580, %v580
        %v613 = vpack.c.bf16 %v581, %v581
        %v614 = vpack.c.bf16 %v582, %v582
        %v615 = vpack.c.bf16 %v583, %v583
        %v616 = vpack.c.bf16 %v584, %v584
        %v617 = vpack.c.bf16 %v585, %v585
        %v618 = vpack.c.bf16 %v586, %v586
        %v619 = vpack.c.bf16 %v587, %v587
        %v620 = vpack.c.bf16 %v588, %v588
        %v621 = vpack.c.bf16 %v589, %v589
        %v622 = vpack.c.bf16 %v590, %v590
        %v623 = vpack.c.bf16 %v591, %v591
        %v624 = vpack.c.bf16 %v592, %v592
        %v625 = vpack.c.bf16 %v593, %v593
        %v626 = vpack.c.bf16 %v594, %v594
        %v627 = vpack.c.bf16 %v595, %v595
        %v628 = vpack.c.bf16 %v596, %v596
        %v629 = vpack.c.bf16 %v597, %v597
        %v630 = vpack.c.bf16 %v598, %v598
        %v631 = vpack.c.bf16 %v599, %v599
        %v632 = vpack.c.bf16 %v600, %v600
        %v633 = vpack.c.bf16 %v601, %v601
        %v634 = vpack.c.bf16 %v602, %v602
        %v635 = vpack.c.bf16 %v603, %v603
        %v636 = vpack.c.bf16 %v604, %v604
        %v637 = vld [vmem:[#allocation2 + $0x2] sm:$0xff]
        %v638 = vld [vmem:[#allocation2 + $0xa] sm:$0xff]
        %v639 = vld [vmem:[#allocation2 + $0x1a] sm:$0xff]
        %v640 = vld [vmem:[#allocation2 + $0x22] sm:$0xff]
        %v641 = vld [vmem:[#allocation2 + $0x32] sm:$0xff]
        %v642 = vld [vmem:[#allocation2 + $0x3a] sm:$0xff]
        %v643 = vld [vmem:[#allocation2 + $0x4a] sm:$0xff]
        %v644 = vld [vmem:[#allocation2 + $0x52] sm:$0xff]
        %v645 = vld [vmem:[#allocation2 + $0x62] sm:$0xff]
        %v646 = vld [vmem:[#allocation2 + $0x6a] sm:$0xff]
        %v647 = vld [vmem:[#allocation2 + $0x7a] sm:$0xff]
        %v648 = vld [vmem:[#allocation2 + $0x82] sm:$0xff]
        %v649 = vld [vmem:[#allocation2 + $0x92] sm:$0xff]
        %v650 = vld [vmem:[#allocation2 + $0x9a] sm:$0xff]
        %v651 = vld [vmem:[#allocation2 + $0xaa] sm:$0xff]
        %v652 = vld [vmem:[#allocation2 + $0xb2] sm:$0xff]
        %v653 = vld [vmem:[#allocation2 + $0xc2] sm:$0xff]
        %v654 = vld [vmem:[#allocation2 + $0xca] sm:$0xff]
        %v655 = vld [vmem:[#allocation2 + $0xda] sm:$0xff]
        %v656 = vld [vmem:[#allocation2 + $0xe2] sm:$0xff]
        %v657 = vld [vmem:[#allocation2 + $0xf2] sm:$0xff]
        %v658 = vld [vmem:[#allocation2 + $0xfa] sm:$0xff]
        %v659 = vld [vmem:[#allocation2 + $0x10a] sm:$0xff]
        %v660 = vld [vmem:[#allocation2 + $0x112] sm:$0xff]
        %v661 = vld [vmem:[#allocation2 + $0x122] sm:$0xff]
        %v662 = vld [vmem:[#allocation2 + $0x12a] sm:$0xff]
        %v663 = vld [vmem:[#allocation2 + $0x13a] sm:$0xff]
        %v664 = vld [vmem:[#allocation2 + $0x142] sm:$0xff]
        %v665 = vld [vmem:[#allocation2 + $0x152] sm:$0xff]
        %v666 = vld [vmem:[#allocation2 + $0x15a] sm:$0xff]
        %v667 = vld [vmem:[#allocation2 + $0x16a] sm:$0xff]
        %v668 = vld [vmem:[#allocation2 + $0x172] sm:$0xff]
        %v669 = vpack.c.bf16 %v637, %v637
        %v670 = vpack.c.bf16 %v638, %v638
        %v671 = vpack.c.bf16 %v639, %v639
        %v672 = vpack.c.bf16 %v640, %v640
        %v673 = vpack.c.bf16 %v641, %v641
        %v674 = vpack.c.bf16 %v642, %v642
        %v675 = vpack.c.bf16 %v643, %v643
        %v676 = vpack.c.bf16 %v644, %v644
        %v677 = vpack.c.bf16 %v645, %v645
        %v678 = vpack.c.bf16 %v646, %v646
        %v679 = vpack.c.bf16 %v647, %v647
        %v680 = vpack.c.bf16 %v648, %v648
        %v681 = vpack.c.bf16 %v649, %v649
        %v682 = vpack.c.bf16 %v650, %v650
        %v683 = vpack.c.bf16 %v651, %v651
        %v684 = vpack.c.bf16 %v652, %v652
        %v685 = vpack.c.bf16 %v653, %v653
        %v686 = vpack.c.bf16 %v654, %v654
        %v687 = vpack.c.bf16 %v655, %v655
        %v688 = vpack.c.bf16 %v656, %v656
        %v689 = vpack.c.bf16 %v657, %v657
        %v690 = vpack.c.bf16 %v658, %v658
        %v691 = vpack.c.bf16 %v659, %v659
        %v692 = vpack.c.bf16 %v660, %v660
        %v693 = vpack.c.bf16 %v661, %v661
        %v694 = vpack.c.bf16 %v662, %v662
        %v695 = vpack.c.bf16 %v663, %v663
        %v696 = vpack.c.bf16 %v664, %v664
        %v697 = vpack.c.bf16 %v665, %v665
        %v698 = vpack.c.bf16 %v666, %v666
        %v699 = vpack.c.bf16 %v667, %v667
        %v700 = vpack.c.bf16 %v668, %v668
        %v701 = vld [vmem:[%s476] sm:$0xff]
        %v702 = vld [vmem:[%s476 + $0x8] sm:$0xff]
        %v703 = vld [vmem:[%s476 + $0x18] sm:$0xff]
        %v704 = vld [vmem:[%s476 + $0x20] sm:$0xff]
        %v705 = vld [vmem:[%s476 + $0x30] sm:$0xff]
        %v706 = vld [vmem:[%s476 + $0x38] sm:$0xff]
        %v707 = vld [vmem:[%s476 + $0x48] sm:$0xff]
        %v708 = vld [vmem:[%s476 + $0x50] sm:$0xff]
        %v709 = vld [vmem:[%s476 + $0x60] sm:$0xff]
        %v710 = vld [vmem:[%s476 + $0x68] sm:$0xff]
        %v711 = vld [vmem:[%s476 + $0x78] sm:$0xff]
        %v712 = vld [vmem:[%s476 + $0x80] sm:$0xff]
        %v713 = vld [vmem:[%s476 + $0x90] sm:$0xff]
        %v714 = vld [vmem:[%s476 + $0x98] sm:$0xff]
        %v715 = vld [vmem:[%s476 + $0xa8] sm:$0xff]
        %v716 = vld [vmem:[%s476 + $0xb0] sm:$0xff]
        %v717 = vld [vmem:[%s476 + $0xc0] sm:$0xff]
        %v718 = vld [vmem:[%s476 + $0xc8] sm:$0xff]
        %v719 = vld [vmem:[%s476 + $0xd8] sm:$0xff]
        %v720 = vld [vmem:[%s476 + $0xe0] sm:$0xff]
        %v721 = vld [vmem:[%s476 + $0xf0] sm:$0xff]
        %v722 = vld [vmem:[%s476 + $0xf8] sm:$0xff]
        %v723 = vld [vmem:[%s476 + $0x108] sm:$0xff]
        %v724 = vld [vmem:[%s476 + $0x110] sm:$0xff]
        %v725 = vld [vmem:[%s476 + $0x120] sm:$0xff]
        %v726 = vld [vmem:[%s476 + $0x128] sm:$0xff]
        %v727 = vld [vmem:[%s476 + $0x138] sm:$0xff]
        %v728 = vld [vmem:[%s476 + $0x140] sm:$0xff]
        %v729 = vld [vmem:[%s476 + $0x150] sm:$0xff]
        %v730 = vld [vmem:[%s476 + $0x158] sm:$0xff]
        %v731 = vld [vmem:[%s476 + $0x168] sm:$0xff]
        %v732 = vld [vmem:[%s476 + $0x170] sm:$0xff]
        %v733 = vpack.c.bf16 %v701, %v701
        %v734 = vpack.c.bf16 %v702, %v702
        %v735 = vpack.c.bf16 %v703, %v703
        %v736 = vpack.c.bf16 %v704, %v704
        %v737 = vpack.c.bf16 %v705, %v705
        %v738 = vpack.c.bf16 %v706, %v706
        %v739 = vpack.c.bf16 %v707, %v707
        %v740 = vpack.c.bf16 %v708, %v708
        %v741 = vpack.c.bf16 %v709, %v709
        %v742 = vpack.c.bf16 %v710, %v710
        %v743 = vpack.c.bf16 %v711, %v711
        %v744 = vpack.c.bf16 %v712, %v712
        %v745 = vpack.c.bf16 %v713, %v713
        %v746 = vpack.c.bf16 %v714, %v714
        %v747 = vpack.c.bf16 %v715, %v715
        %v748 = vpack.c.bf16 %v716, %v716
        %v749 = vpack.c.bf16 %v717, %v717
        %v750 = vpack.c.bf16 %v718, %v718
        %v751 = vpack.c.bf16 %v719, %v719
        %v752 = vpack.c.bf16 %v720, %v720
        %v753 = vpack.c.bf16 %v721, %v721
        %v754 = vpack.c.bf16 %v722, %v722
        %v755 = vpack.c.bf16 %v723, %v723
        %v756 = vpack.c.bf16 %v724, %v724
        %v757 = vpack.c.bf16 %v725, %v725
        %v758 = vpack.c.bf16 %v726, %v726
        %v759 = vpack.c.bf16 %v727, %v727
        %v760 = vpack.c.bf16 %v728, %v728
        %v761 = vpack.c.bf16 %v729, %v729
        %v762 = vpack.c.bf16 %v730, %v730
        %v763 = vpack.c.bf16 %v731, %v731
        %v764 = vpack.c.bf16 %v732, %v732
        %v765 = vld [vmem:[%s476 + $0x1] sm:$0xff]
        %v766 = vld [vmem:[%s476 + $0x9] sm:$0xff]
        %v767 = vld [vmem:[%s476 + $0x19] sm:$0xff]
        %v768 = vld [vmem:[%s476 + $0x21] sm:$0xff]
        %v769 = vld [vmem:[%s476 + $0x31] sm:$0xff]
        %v770 = vld [vmem:[%s476 + $0x39] sm:$0xff]
        %v771 = vld [vmem:[%s476 + $0x49] sm:$0xff]
        %v772 = vld [vmem:[%s476 + $0x51] sm:$0xff]
        %v773 = vld [vmem:[%s476 + $0x61] sm:$0xff]
        %v774 = vld [vmem:[%s476 + $0x69] sm:$0xff]
        %v775 = vld [vmem:[%s476 + $0x79] sm:$0xff]
        %v776 = vld [vmem:[%s476 + $0x81] sm:$0xff]
        %v777 = vld [vmem:[%s476 + $0x91] sm:$0xff]
        %v778 = vld [vmem:[%s476 + $0x99] sm:$0xff]
        %v779 = vld [vmem:[%s476 + $0xa9] sm:$0xff]
        %v780 = vld [vmem:[%s476 + $0xb1] sm:$0xff]
        %v781 = vld [vmem:[%s476 + $0xc1] sm:$0xff]
        %v782 = vld [vmem:[%s476 + $0xc9] sm:$0xff]
        %v783 = vld [vmem:[%s476 + $0xd9] sm:$0xff]
        %v784 = vld [vmem:[%s476 + $0xe1] sm:$0xff]
        %v785 = vld [vmem:[%s476 + $0xf1] sm:$0xff]
        %v786 = vld [vmem:[%s476 + $0xf9] sm:$0xff]
        %v787 = vld [vmem:[%s476 + $0x109] sm:$0xff]
        %v788 = vld [vmem:[%s476 + $0x111] sm:$0xff]
        %v789 = vld [vmem:[%s476 + $0x121] sm:$0xff]
        %v790 = vld [vmem:[%s476 + $0x129] sm:$0xff]
        %v791 = vld [vmem:[%s476 + $0x139] sm:$0xff]
        %v792 = vld [vmem:[%s476 + $0x141] sm:$0xff]
        %v793 = vld [vmem:[%s476 + $0x151] sm:$0xff]
        %v794 = vld [vmem:[%s476 + $0x159] sm:$0xff]
        %v795 = vld [vmem:[%s476 + $0x169] sm:$0xff]
        %v796 = vld [vmem:[%s476 + $0x171] sm:$0xff]
        %v797 = vpack.c.bf16 %v765, %v765
        %v798 = vpack.c.bf16 %v766, %v766
        %v799 = vpack.c.bf16 %v767, %v767
        %v800 = vpack.c.bf16 %v768, %v768
        %v801 = vpack.c.bf16 %v769, %v769
        %v802 = vpack.c.bf16 %v770, %v770
        %v803 = vpack.c.bf16 %v771, %v771
        %v804 = vpack.c.bf16 %v772, %v772
        %v805 = vpack.c.bf16 %v773, %v773
        %v806 = vpack.c.bf16 %v774, %v774
        %v807 = vpack.c.bf16 %v775, %v775
        %v808 = vpack.c.bf16 %v776, %v776
        %v809 = vpack.c.bf16 %v777, %v777
        %v810 = vpack.c.bf16 %v778, %v778
        %v811 = vpack.c.bf16 %v779, %v779
        %v812 = vpack.c.bf16 %v780, %v780
        %v813 = vpack.c.bf16 %v781, %v781
        %v814 = vpack.c.bf16 %v782, %v782
        %v815 = vpack.c.bf16 %v783, %v783
        %v816 = vpack.c.bf16 %v784, %v784
        %v817 = vpack.c.bf16 %v785, %v785
        %v818 = vpack.c.bf16 %v786, %v786
        %v819 = vpack.c.bf16 %v787, %v787
        %v820 = vpack.c.bf16 %v788, %v788
        %v821 = vpack.c.bf16 %v789, %v789
        %v822 = vpack.c.bf16 %v790, %v790
        %v823 = vpack.c.bf16 %v791, %v791
        %v824 = vpack.c.bf16 %v792, %v792
        %v825 = vpack.c.bf16 %v793, %v793
        %v826 = vpack.c.bf16 %v794, %v794
        %v827 = vpack.c.bf16 %v795, %v795
        %v828 = vpack.c.bf16 %v796, %v796
        %v829 = vld [vmem:[%s476 + $0x2] sm:$0xff]
        %v830 = vld [vmem:[%s476 + $0xa] sm:$0xff]
        %v831 = vld [vmem:[%s476 + $0x1a] sm:$0xff]
        %v832 = vld [vmem:[%s476 + $0x22] sm:$0xff]
        %v833 = vld [vmem:[%s476 + $0x32] sm:$0xff]
        %v834 = vld [vmem:[%s476 + $0x3a] sm:$0xff]
        %v835 = vld [vmem:[%s476 + $0x4a] sm:$0xff]
        %v836 = vld [vmem:[%s476 + $0x52] sm:$0xff]
        %v837 = vld [vmem:[%s476 + $0x62] sm:$0xff]
        %v838 = vld [vmem:[%s476 + $0x6a] sm:$0xff]
        %v839 = vld [vmem:[%s476 + $0x7a] sm:$0xff]
        %v840 = vld [vmem:[%s476 + $0x82] sm:$0xff]
        %v841 = vld [vmem:[%s476 + $0x92] sm:$0xff]
        %v842 = vld [vmem:[%s476 + $0x9a] sm:$0xff]
        %v843 = vld [vmem:[%s476 + $0xaa] sm:$0xff]
        %v844 = vld [vmem:[%s476 + $0xb2] sm:$0xff]
        %v845 = vld [vmem:[%s476 + $0xc2] sm:$0xff]
        %v846 = vld [vmem:[%s476 + $0xca] sm:$0xff]
        %v847 = vld [vmem:[%s476 + $0xda] sm:$0xff]
        %v848 = vld [vmem:[%s476 + $0xe2] sm:$0xff]
        %v849 = vld [vmem:[%s476 + $0xf2] sm:$0xff]
        %v850 = vld [vmem:[%s476 + $0xfa] sm:$0xff]
        %v851 = vld [vmem:[%s476 + $0x10a] sm:$0xff]
        %v852 = vld [vmem:[%s476 + $0x112] sm:$0xff]
        %v853 = vld [vmem:[%s476 + $0x122] sm:$0xff]
        %v854 = vld [vmem:[%s476 + $0x12a] sm:$0xff]
        %v855 = vld [vmem:[%s476 + $0x13a] sm:$0xff]
        %v856 = vld [vmem:[%s476 + $0x142] sm:$0xff]
        %v857 = vld [vmem:[%s476 + $0x152] sm:$0xff]
        %v858 = vld [vmem:[%s476 + $0x15a] sm:$0xff]
        %v859 = vld [vmem:[%s476 + $0x16a] sm:$0xff]
        %v860 = vld [vmem:[%s476 + $0x172] sm:$0xff]
        %v861 = vpack.c.bf16 %v829, %v829
        %v862 = vpack.c.bf16 %v830, %v830
        %v863 = vpack.c.bf16 %v831, %v831
        %v864 = vpack.c.bf16 %v832, %v832
        %v865 = vpack.c.bf16 %v833, %v833
        %v866 = vpack.c.bf16 %v834, %v834
        %v867 = vpack.c.bf16 %v835, %v835
        %v868 = vpack.c.bf16 %v836, %v836
        %v869 = vpack.c.bf16 %v837, %v837
        %v870 = vpack.c.bf16 %v838, %v838
        %v871 = vpack.c.bf16 %v839, %v839
        %v872 = vpack.c.bf16 %v840, %v840
        %v873 = vpack.c.bf16 %v841, %v841
        %v874 = vpack.c.bf16 %v842, %v842
        %v875 = vpack.c.bf16 %v843, %v843
        %v876 = vpack.c.bf16 %v844, %v844
        %v877 = vpack.c.bf16 %v845, %v845
        %v878 = vpack.c.bf16 %v846, %v846
        %v879 = vpack.c.bf16 %v847, %v847
        %v880 = vpack.c.bf16 %v848, %v848
        %v881 = vpack.c.bf16 %v849, %v849
        %v882 = vpack.c.bf16 %v850, %v850
        %v883 = vpack.c.bf16 %v851, %v851
        %v884 = vpack.c.bf16 %v852, %v852
        %v885 = vpack.c.bf16 %v853, %v853
        %v886 = vpack.c.bf16 %v854, %v854
        %v887 = vpack.c.bf16 %v855, %v855
        %v888 = vpack.c.bf16 %v856, %v856
        %v889 = vpack.c.bf16 %v857, %v857
        %v890 = vpack.c.bf16 %v858, %v858
        %v891 = vpack.c.bf16 %v859, %v859
        %v892 = vpack.c.bf16 %v860, %v860
        %s893 = scalar_lea.vmem [#allocation2], 48
        %v894 = vld [vmem:[%s893] sm:$0xff]
        %v895 = vld [vmem:[%s893 + $0x8] sm:$0xff]
        %v896 = vld [vmem:[%s893 + $0x18] sm:$0xff]
        %v897 = vld [vmem:[%s893 + $0x20] sm:$0xff]
        %v898 = vld [vmem:[%s893 + $0x30] sm:$0xff]
        %v899 = vld [vmem:[%s893 + $0x38] sm:$0xff]
        %v900 = vld [vmem:[%s893 + $0x48] sm:$0xff]
        %v901 = vld [vmem:[%s893 + $0x50] sm:$0xff]
        %v902 = vld [vmem:[%s893 + $0x60] sm:$0xff]
        %v903 = vld [vmem:[%s893 + $0x68] sm:$0xff]
        %v904 = vld [vmem:[%s893 + $0x78] sm:$0xff]
        %v905 = vld [vmem:[%s893 + $0x80] sm:$0xff]
        %v906 = vld [vmem:[%s893 + $0x90] sm:$0xff]
        %v907 = vld [vmem:[%s893 + $0x98] sm:$0xff]
        %v908 = vld [vmem:[%s893 + $0xa8] sm:$0xff]
        %v909 = vld [vmem:[%s893 + $0xb0] sm:$0xff]
        %v910 = vld [vmem:[%s893 + $0xc0] sm:$0xff]
        %v911 = vld [vmem:[%s893 + $0xc8] sm:$0xff]
        %v912 = vld [vmem:[%s893 + $0xd8] sm:$0xff]
        %v913 = vld [vmem:[%s893 + $0xe0] sm:$0xff]
        %v914 = vld [vmem:[%s893 + $0xf0] sm:$0xff]
        %v915 = vld [vmem:[%s893 + $0xf8] sm:$0xff]
        %v916 = vld [vmem:[%s893 + $0x108] sm:$0xff]
        %v917 = vld [vmem:[%s893 + $0x110] sm:$0xff]
        %v918 = vld [vmem:[%s893 + $0x120] sm:$0xff]
        %v919 = vld [vmem:[%s893 + $0x128] sm:$0xff]
        %v920 = vld [vmem:[%s893 + $0x138] sm:$0xff]
        %v921 = vld [vmem:[%s893 + $0x140] sm:$0xff]
        %v922 = vld [vmem:[%s893 + $0x150] sm:$0xff]
        %v923 = vld [vmem:[%s893 + $0x158] sm:$0xff]
        %v924 = vld [vmem:[%s893 + $0x168] sm:$0xff]
        %v925 = vld [vmem:[%s893 + $0x170] sm:$0xff]
        %v926 = vpack.c.bf16 %v894, %v894
        %v927 = vpack.c.bf16 %v895, %v895
        %v928 = vpack.c.bf16 %v896, %v896
        %v929 = vpack.c.bf16 %v897, %v897
        %v930 = vpack.c.bf16 %v898, %v898
        %v931 = vpack.c.bf16 %v899, %v899
        %v932 = vpack.c.bf16 %v900, %v900
        %v933 = vpack.c.bf16 %v901, %v901
        %v934 = vpack.c.bf16 %v902, %v902
        %v935 = vpack.c.bf16 %v903, %v903
        %v936 = vpack.c.bf16 %v904, %v904
        %v937 = vpack.c.bf16 %v905, %v905
        %v938 = vpack.c.bf16 %v906, %v906
        %v939 = vpack.c.bf16 %v907, %v907
        %v940 = vpack.c.bf16 %v908, %v908
        %v941 = vpack.c.bf16 %v909, %v909
        %v942 = vpack.c.bf16 %v910, %v910
        %v943 = vpack.c.bf16 %v911, %v911
        %v944 = vpack.c.bf16 %v912, %v912
        %v945 = vpack.c.bf16 %v913, %v913
        %v946 = vpack.c.bf16 %v914, %v914
        %v947 = vpack.c.bf16 %v915, %v915
        %v948 = vpack.c.bf16 %v916, %v916
        %v949 = vpack.c.bf16 %v917, %v917
        %v950 = vpack.c.bf16 %v918, %v918
        %v951 = vpack.c.bf16 %v919, %v919
        %v952 = vpack.c.bf16 %v920, %v920
        %v953 = vpack.c.bf16 %v921, %v921
        %v954 = vpack.c.bf16 %v922, %v922
        %v955 = vpack.c.bf16 %v923, %v923
        %v956 = vpack.c.bf16 %v924, %v924
        %v957 = vpack.c.bf16 %v925, %v925
        %v958 = vld [vmem:[%s893 + $0x1] sm:$0xff]
        %v959 = vld [vmem:[%s893 + $0x9] sm:$0xff]
        %v960 = vld [vmem:[%s893 + $0x19] sm:$0xff]
        %v961 = vld [vmem:[%s893 + $0x21] sm:$0xff]
        %v962 = vld [vmem:[%s893 + $0x31] sm:$0xff]
        %v963 = vld [vmem:[%s893 + $0x39] sm:$0xff]
        %v964 = vld [vmem:[%s893 + $0x49] sm:$0xff]
        %v965 = vld [vmem:[%s893 + $0x51] sm:$0xff]
        %v966 = vld [vmem:[%s893 + $0x61] sm:$0xff]
        %v967 = vld [vmem:[%s893 + $0x69] sm:$0xff]
        %v968 = vld [vmem:[%s893 + $0x79] sm:$0xff]
        %v969 = vld [vmem:[%s893 + $0x81] sm:$0xff]
        %v970 = vld [vmem:[%s893 + $0x91] sm:$0xff]
        %v971 = vld [vmem:[%s893 + $0x99] sm:$0xff]
        %v972 = vld [vmem:[%s893 + $0xa9] sm:$0xff]
        %v973 = vld [vmem:[%s893 + $0xb1] sm:$0xff]
        %v974 = vld [vmem:[%s893 + $0xc1] sm:$0xff]
        %v975 = vld [vmem:[%s893 + $0xc9] sm:$0xff]
        %v976 = vld [vmem:[%s893 + $0xd9] sm:$0xff]
        %v977 = vld [vmem:[%s893 + $0xe1] sm:$0xff]
        %v978 = vld [vmem:[%s893 + $0xf1] sm:$0xff]
        %v979 = vld [vmem:[%s893 + $0xf9] sm:$0xff]
        %v980 = vld [vmem:[%s893 + $0x109] sm:$0xff]
        %v981 = vld [vmem:[%s893 + $0x111] sm:$0xff]
        %v982 = vld [vmem:[%s893 + $0x121] sm:$0xff]
        %v983 = vld [vmem:[%s893 + $0x129] sm:$0xff]
        %v984 = vld [vmem:[%s893 + $0x139] sm:$0xff]
        %v985 = vld [vmem:[%s893 + $0x141] sm:$0xff]
        %v986 = vld [vmem:[%s893 + $0x151] sm:$0xff]
        %v987 = vld [vmem:[%s893 + $0x159] sm:$0xff]
        %v988 = vld [vmem:[%s893 + $0x169] sm:$0xff]
        %v989 = vld [vmem:[%s893 + $0x171] sm:$0xff]
        %v990 = vpack.c.bf16 %v958, %v958
        %v991 = vpack.c.bf16 %v959, %v959
        %v992 = vpack.c.bf16 %v960, %v960
        %v993 = vpack.c.bf16 %v961, %v961
        %v994 = vpack.c.bf16 %v962, %v962
        %v995 = vpack.c.bf16 %v963, %v963
        %v996 = vpack.c.bf16 %v964, %v964
        %v997 = vpack.c.bf16 %v965, %v965
        %v998 = vpack.c.bf16 %v966, %v966
        %v999 = vpack.c.bf16 %v967, %v967
        %v1000 = vpack.c.bf16 %v968, %v968
        %v1001 = vpack.c.bf16 %v969, %v969
        %v1002 = vpack.c.bf16 %v970, %v970
        %v1003 = vpack.c.bf16 %v971, %v971
        %v1004 = vpack.c.bf16 %v972, %v972
        %v1005 = vpack.c.bf16 %v973, %v973
        %v1006 = vpack.c.bf16 %v974, %v974
        %v1007 = vpack.c.bf16 %v975, %v975
        %v1008 = vpack.c.bf16 %v976, %v976
        %v1009 = vpack.c.bf16 %v977, %v977
        %v1010 = vpack.c.bf16 %v978, %v978
        %v1011 = vpack.c.bf16 %v979, %v979
        %v1012 = vpack.c.bf16 %v980, %v980
        %v1013 = vpack.c.bf16 %v981, %v981
        %v1014 = vpack.c.bf16 %v982, %v982
        %v1015 = vpack.c.bf16 %v983, %v983
        %v1016 = vpack.c.bf16 %v984, %v984
        %v1017 = vpack.c.bf16 %v985, %v985
        %v1018 = vpack.c.bf16 %v986, %v986
        %v1019 = vpack.c.bf16 %v987, %v987
        %v1020 = vpack.c.bf16 %v988, %v988
        %v1021 = vpack.c.bf16 %v989, %v989
        %v1022 = vld [vmem:[%s893 + $0x2] sm:$0xff]
        %v1023 = vld [vmem:[%s893 + $0xa] sm:$0xff]
        %v1024 = vld [vmem:[%s893 + $0x1a] sm:$0xff]
        %v1025 = vld [vmem:[%s893 + $0x22] sm:$0xff]
        %v1026 = vld [vmem:[%s893 + $0x32] sm:$0xff]
        %v1027 = vld [vmem:[%s893 + $0x3a] sm:$0xff]
        %v1028 = vld [vmem:[%s893 + $0x4a] sm:$0xff]
        %v1029 = vld [vmem:[%s893 + $0x52] sm:$0xff]
        %v1030 = vld [vmem:[%s893 + $0x62] sm:$0xff]
        %v1031 = vld [vmem:[%s893 + $0x6a] sm:$0xff]
        %v1032 = vld [vmem:[%s893 + $0x7a] sm:$0xff]
        %v1033 = vld [vmem:[%s893 + $0x82] sm:$0xff]
        %v1034 = vld [vmem:[%s893 + $0x92] sm:$0xff]
        %v1035 = vld [vmem:[%s893 + $0x9a] sm:$0xff]
        %v1036 = vld [vmem:[%s893 + $0xaa] sm:$0xff]
        %v1037 = vld [vmem:[%s893 + $0xb2] sm:$0xff]
        %v1038 = vld [vmem:[%s893 + $0xc2] sm:$0xff]
        %v1039 = vld [vmem:[%s893 + $0xca] sm:$0xff]
        %v1040 = vld [vmem:[%s893 + $0xda] sm:$0xff]
        %v1041 = vld [vmem:[%s893 + $0xe2] sm:$0xff]
        %v1042 = vld [vmem:[%s893 + $0xf2] sm:$0xff]
        %v1043 = vld [vmem:[%s893 + $0xfa] sm:$0xff]
        %v1044 = vld [vmem:[%s893 + $0x10a] sm:$0xff]
        %v1045 = vld [vmem:[%s893 + $0x112] sm:$0xff]
        %v1046 = vld [vmem:[%s893 + $0x122] sm:$0xff]
        %v1047 = vld [vmem:[%s893 + $0x12a] sm:$0xff]
        %v1048 = vld [vmem:[%s893 + $0x13a] sm:$0xff]
        %v1049 = vld [vmem:[%s893 + $0x142] sm:$0xff]
        %v1050 = vld [vmem:[%s893 + $0x152] sm:$0xff]
        %v1051 = vld [vmem:[%s893 + $0x15a] sm:$0xff]
        %v1052 = vld [vmem:[%s893 + $0x16a] sm:$0xff]
        %v1053 = vld [vmem:[%s893 + $0x172] sm:$0xff]
        %v1054 = vpack.c.bf16 %v1022, %v1022
        %v1055 = vpack.c.bf16 %v1023, %v1023
        %v1056 = vpack.c.bf16 %v1024, %v1024
        %v1057 = vpack.c.bf16 %v1025, %v1025
        %v1058 = vpack.c.bf16 %v1026, %v1026
        %v1059 = vpack.c.bf16 %v1027, %v1027
        %v1060 = vpack.c.bf16 %v1028, %v1028
        %v1061 = vpack.c.bf16 %v1029, %v1029
        %v1062 = vpack.c.bf16 %v1030, %v1030
        %v1063 = vpack.c.bf16 %v1031, %v1031
        %v1064 = vpack.c.bf16 %v1032, %v1032
        %v1065 = vpack.c.bf16 %v1033, %v1033
        %v1066 = vpack.c.bf16 %v1034, %v1034
        %v1067 = vpack.c.bf16 %v1035, %v1035
        %v1068 = vpack.c.bf16 %v1036, %v1036
        %v1069 = vpack.c.bf16 %v1037, %v1037
        %v1070 = vpack.c.bf16 %v1038, %v1038
        %v1071 = vpack.c.bf16 %v1039, %v1039
        %v1072 = vpack.c.bf16 %v1040, %v1040
        %v1073 = vpack.c.bf16 %v1041, %v1041
        %v1074 = vpack.c.bf16 %v1042, %v1042
        %v1075 = vpack.c.bf16 %v1043, %v1043
        %v1076 = vpack.c.bf16 %v1044, %v1044
        %v1077 = vpack.c.bf16 %v1045, %v1045
        %v1078 = vpack.c.bf16 %v1046, %v1046
        %v1079 = vpack.c.bf16 %v1047, %v1047
        %v1080 = vpack.c.bf16 %v1048, %v1048
        %v1081 = vpack.c.bf16 %v1049, %v1049
        %v1082 = vpack.c.bf16 %v1050, %v1050
        %v1083 = vpack.c.bf16 %v1051, %v1051
        %v1084 = vpack.c.bf16 %v1052, %v1052
        %v1085 = vpack.c.bf16 %v1053, %v1053
        %v1118 = vunpack.c.l.b16 %v541
        %v1119 = vunpack.c.l.b16 %v542
        %v1120 = vunpack.c.l.b16 %v543
        %v1121 = vunpack.c.l.b16 %v544
        %v1122 = vunpack.c.l.b16 %v545
        %v1123 = vunpack.c.l.b16 %v546
        %v1124 = vunpack.c.l.b16 %v547
        %v1125 = vunpack.c.l.b16 %v548
        %v1126 = vunpack.c.l.b16 %v549
        %v1127 = vunpack.c.l.b16 %v550
        %v1128 = vunpack.c.l.b16 %v551
        %v1129 = vunpack.c.l.b16 %v552
        %v1130 = vunpack.c.l.b16 %v553
        %v1131 = vunpack.c.l.b16 %v554
        %v1132 = vunpack.c.l.b16 %v555
        %v1133 = vunpack.c.l.b16 %v556
        %v1134 = vunpack.c.l.b16 %v557
        %v1135 = vunpack.c.l.b16 %v558
        %v1136 = vunpack.c.l.b16 %v559
        %v1137 = vunpack.c.l.b16 %v560
        %v1138 = vunpack.c.l.b16 %v561
        %v1139 = vunpack.c.l.b16 %v562
        %v1140 = vunpack.c.l.b16 %v563
        %v1141 = vunpack.c.l.b16 %v564
        %v1142 = vunpack.c.l.b16 %v565
        %v1143 = vunpack.c.l.b16 %v566
        %v1144 = vunpack.c.l.b16 %v567
        %v1145 = vunpack.c.l.b16 %v568
        %v1146 = vunpack.c.l.b16 %v569
        %v1147 = vunpack.c.l.b16 %v570
        %v1148 = vunpack.c.l.b16 %v571
        %v1149 = vunpack.c.l.b16 %v572
        %v1150 = vpack.c.b16 %v1119, %v1118
        %v1151 = vpack.c.b16 %v1121, %v1120
        %v1152 = vpack.c.b16 %v1123, %v1122
        %v1153 = vpack.c.b16 %v1125, %v1124
        %v1154 = vpack.c.b16 %v1127, %v1126
        %v1155 = vpack.c.b16 %v1129, %v1128
        %v1156 = vpack.c.b16 %v1131, %v1130
        %v1157 = vpack.c.b16 %v1133, %v1132
        %v1158 = vpack.c.b16 %v1135, %v1134
        %v1159 = vpack.c.b16 %v1137, %v1136
        %v1160 = vpack.c.b16 %v1139, %v1138
        %v1161 = vpack.c.b16 %v1141, %v1140
        %v1162 = vpack.c.b16 %v1143, %v1142
        %v1163 = vpack.c.b16 %v1145, %v1144
        %v1164 = vpack.c.b16 %v1147, %v1146
        %v1165 = vpack.c.b16 %v1149, %v1148
        %v1214 = vunpack.c.l.b16 %v605
        %v1215 = vunpack.c.l.b16 %v606
        %v1216 = vunpack.c.l.b16 %v607
        %v1217 = vunpack.c.l.b16 %v608
        %v1218 = vunpack.c.l.b16 %v609
        %v1219 = vunpack.c.l.b16 %v610
        %v1220 = vunpack.c.l.b16 %v611
        %v1221 = vunpack.c.l.b16 %v612
        %v1222 = vunpack.c.l.b16 %v613
        %v1223 = vunpack.c.l.b16 %v614
        %v1224 = vunpack.c.l.b16 %v615
        %v1225 = vunpack.c.l.b16 %v616
        %v1226 = vunpack.c.l.b16 %v617
        %v1227 = vunpack.c.l.b16 %v618
        %v1228 = vunpack.c.l.b16 %v619
        %v1229 = vunpack.c.l.b16 %v620
        %v1230 = vunpack.c.l.b16 %v621
        %v1231 = vunpack.c.l.b16 %v622
        %v1232 = vunpack.c.l.b16 %v623
        %v1233 = vunpack.c.l.b16 %v624
        %v1234 = vunpack.c.l.b16 %v625
        %v1235 = vunpack.c.l.b16 %v626
        %v1236 = vunpack.c.l.b16 %v627
        %v1237 = vunpack.c.l.b16 %v628
        %v1238 = vunpack.c.l.b16 %v629
        %v1239 = vunpack.c.l.b16 %v630
        %v1240 = vunpack.c.l.b16 %v631
        %v1241 = vunpack.c.l.b16 %v632
        %v1242 = vunpack.c.l.b16 %v633
        %v1243 = vunpack.c.l.b16 %v634
        %v1244 = vunpack.c.l.b16 %v635
        %v1245 = vunpack.c.l.b16 %v636
        %v1246 = vpack.c.b16 %v1215, %v1214
        %v1247 = vpack.c.b16 %v1217, %v1216
        %v1248 = vpack.c.b16 %v1219, %v1218
        %v1249 = vpack.c.b16 %v1221, %v1220
        %v1250 = vpack.c.b16 %v1223, %v1222
        %v1251 = vpack.c.b16 %v1225, %v1224
        %v1252 = vpack.c.b16 %v1227, %v1226
        %v1253 = vpack.c.b16 %v1229, %v1228
        %v1254 = vpack.c.b16 %v1231, %v1230
        %v1255 = vpack.c.b16 %v1233, %v1232
        %v1256 = vpack.c.b16 %v1235, %v1234
        %v1257 = vpack.c.b16 %v1237, %v1236
        %v1258 = vpack.c.b16 %v1239, %v1238
        %v1259 = vpack.c.b16 %v1241, %v1240
        %v1260 = vpack.c.b16 %v1243, %v1242
        %v1261 = vpack.c.b16 %v1245, %v1244
        %v1310 = vunpack.c.l.b16 %v669
        %v1311 = vunpack.c.l.b16 %v670
        %v1312 = vunpack.c.l.b16 %v671
        %v1313 = vunpack.c.l.b16 %v672
        %v1314 = vunpack.c.l.b16 %v673
        %v1315 = vunpack.c.l.b16 %v674
        %v1316 = vunpack.c.l.b16 %v675
        %v1317 = vunpack.c.l.b16 %v676
        %v1318 = vunpack.c.l.b16 %v677
        %v1319 = vunpack.c.l.b16 %v678
        %v1320 = vunpack.c.l.b16 %v679
        %v1321 = vunpack.c.l.b16 %v680
        %v1322 = vunpack.c.l.b16 %v681
        %v1323 = vunpack.c.l.b16 %v682
        %v1324 = vunpack.c.l.b16 %v683
        %v1325 = vunpack.c.l.b16 %v684
        %v1326 = vunpack.c.l.b16 %v685
        %v1327 = vunpack.c.l.b16 %v686
        %v1328 = vunpack.c.l.b16 %v687
        %v1329 = vunpack.c.l.b16 %v688
        %v1330 = vunpack.c.l.b16 %v689
        %v1331 = vunpack.c.l.b16 %v690
        %v1332 = vunpack.c.l.b16 %v691
        %v1333 = vunpack.c.l.b16 %v692
        %v1334 = vunpack.c.l.b16 %v693
        %v1335 = vunpack.c.l.b16 %v694
        %v1336 = vunpack.c.l.b16 %v695
        %v1337 = vunpack.c.l.b16 %v696
        %v1338 = vunpack.c.l.b16 %v697
        %v1339 = vunpack.c.l.b16 %v698
        %v1340 = vunpack.c.l.b16 %v699
        %v1341 = vunpack.c.l.b16 %v700
        %v1342 = vpack.c.b16 %v1311, %v1310
        %v1343 = vpack.c.b16 %v1313, %v1312
        %v1344 = vpack.c.b16 %v1315, %v1314
        %v1345 = vpack.c.b16 %v1317, %v1316
        %v1346 = vpack.c.b16 %v1319, %v1318
        %v1347 = vpack.c.b16 %v1321, %v1320
        %v1348 = vpack.c.b16 %v1323, %v1322
        %v1349 = vpack.c.b16 %v1325, %v1324
        %v1350 = vpack.c.b16 %v1327, %v1326
        %v1351 = vpack.c.b16 %v1329, %v1328
        %v1352 = vpack.c.b16 %v1331, %v1330
        %v1353 = vpack.c.b16 %v1333, %v1332
        %v1354 = vpack.c.b16 %v1335, %v1334
        %v1355 = vpack.c.b16 %v1337, %v1336
        %v1356 = vpack.c.b16 %v1339, %v1338
        %v1357 = vpack.c.b16 %v1341, %v1340
        %v1406 = vunpack.c.l.b16 %v733
        %v1407 = vunpack.c.l.b16 %v734
        %v1408 = vunpack.c.l.b16 %v735
        %v1409 = vunpack.c.l.b16 %v736
        %v1410 = vunpack.c.l.b16 %v737
        %v1411 = vunpack.c.l.b16 %v738
        %v1412 = vunpack.c.l.b16 %v739
        %v1413 = vunpack.c.l.b16 %v740
        %v1414 = vunpack.c.l.b16 %v741
        %v1415 = vunpack.c.l.b16 %v742
        %v1416 = vunpack.c.l.b16 %v743
        %v1417 = vunpack.c.l.b16 %v744
        %v1418 = vunpack.c.l.b16 %v745
        %v1419 = vunpack.c.l.b16 %v746
        %v1420 = vunpack.c.l.b16 %v747
        %v1421 = vunpack.c.l.b16 %v748
        %v1422 = vunpack.c.l.b16 %v749
        %v1423 = vunpack.c.l.b16 %v750
        %v1424 = vunpack.c.l.b16 %v751
        %v1425 = vunpack.c.l.b16 %v752
        %v1426 = vunpack.c.l.b16 %v753
        %v1427 = vunpack.c.l.b16 %v754
        %v1428 = vunpack.c.l.b16 %v755
        %v1429 = vunpack.c.l.b16 %v756
        %v1430 = vunpack.c.l.b16 %v757
        %v1431 = vunpack.c.l.b16 %v758
        %v1432 = vunpack.c.l.b16 %v759
        %v1433 = vunpack.c.l.b16 %v760
        %v1434 = vunpack.c.l.b16 %v761
        %v1435 = vunpack.c.l.b16 %v762
        %v1436 = vunpack.c.l.b16 %v763
        %v1437 = vunpack.c.l.b16 %v764
        %v1438 = vpack.c.b16 %v1407, %v1406
        %v1439 = vpack.c.b16 %v1409, %v1408
        %v1440 = vpack.c.b16 %v1411, %v1410
        %v1441 = vpack.c.b16 %v1413, %v1412
        %v1442 = vpack.c.b16 %v1415, %v1414
        %v1443 = vpack.c.b16 %v1417, %v1416
        %v1444 = vpack.c.b16 %v1419, %v1418
        %v1445 = vpack.c.b16 %v1421, %v1420
        %v1446 = vpack.c.b16 %v1423, %v1422
        %v1447 = vpack.c.b16 %v1425, %v1424
        %v1448 = vpack.c.b16 %v1427, %v1426
        %v1449 = vpack.c.b16 %v1429, %v1428
        %v1450 = vpack.c.b16 %v1431, %v1430
        %v1451 = vpack.c.b16 %v1433, %v1432
        %v1452 = vpack.c.b16 %v1435, %v1434
        %v1453 = vpack.c.b16 %v1437, %v1436
        %v1502 = vunpack.c.l.b16 %v797
        %v1503 = vunpack.c.l.b16 %v798
        %v1504 = vunpack.c.l.b16 %v799
        %v1505 = vunpack.c.l.b16 %v800
        %v1506 = vunpack.c.l.b16 %v801
        %v1507 = vunpack.c.l.b16 %v802
        %v1508 = vunpack.c.l.b16 %v803
        %v1509 = vunpack.c.l.b16 %v804
        %v1510 = vunpack.c.l.b16 %v805
        %v1511 = vunpack.c.l.b16 %v806
        %v1512 = vunpack.c.l.b16 %v807
        %v1513 = vunpack.c.l.b16 %v808
        %v1514 = vunpack.c.l.b16 %v809
        %v1515 = vunpack.c.l.b16 %v810
        %v1516 = vunpack.c.l.b16 %v811
        %v1517 = vunpack.c.l.b16 %v812
        %v1518 = vunpack.c.l.b16 %v813
        %v1519 = vunpack.c.l.b16 %v814
        %v1520 = vunpack.c.l.b16 %v815
        %v1521 = vunpack.c.l.b16 %v816
        %v1522 = vunpack.c.l.b16 %v817
        %v1523 = vunpack.c.l.b16 %v818
        %v1524 = vunpack.c.l.b16 %v819
        %v1525 = vunpack.c.l.b16 %v820
        %v1526 = vunpack.c.l.b16 %v821
        %v1527 = vunpack.c.l.b16 %v822
        %v1528 = vunpack.c.l.b16 %v823
        %v1529 = vunpack.c.l.b16 %v824
        %v1530 = vunpack.c.l.b16 %v825
        %v1531 = vunpack.c.l.b16 %v826
        %v1532 = vunpack.c.l.b16 %v827
        %v1533 = vunpack.c.l.b16 %v828
        %v1534 = vpack.c.b16 %v1503, %v1502
        %v1535 = vpack.c.b16 %v1505, %v1504
        %v1536 = vpack.c.b16 %v1507, %v1506
        %v1537 = vpack.c.b16 %v1509, %v1508
        %v1538 = vpack.c.b16 %v1511, %v1510
        %v1539 = vpack.c.b16 %v1513, %v1512
        %v1540 = vpack.c.b16 %v1515, %v1514
        %v1541 = vpack.c.b16 %v1517, %v1516
        %v1542 = vpack.c.b16 %v1519, %v1518
        %v1543 = vpack.c.b16 %v1521, %v1520
        %v1544 = vpack.c.b16 %v1523, %v1522
        %v1545 = vpack.c.b16 %v1525, %v1524
        %v1546 = vpack.c.b16 %v1527, %v1526
        %v1547 = vpack.c.b16 %v1529, %v1528
        %v1548 = vpack.c.b16 %v1531, %v1530
        %v1549 = vpack.c.b16 %v1533, %v1532
        %v1598 = vunpack.c.l.b16 %v861
        %v1599 = vunpack.c.l.b16 %v862
        %v1600 = vunpack.c.l.b16 %v863
        %v1601 = vunpack.c.l.b16 %v864
        %v1602 = vunpack.c.l.b16 %v865
        %v1603 = vunpack.c.l.b16 %v866
        %v1604 = vunpack.c.l.b16 %v867
        %v1605 = vunpack.c.l.b16 %v868
        %v1606 = vunpack.c.l.b16 %v869
        %v1607 = vunpack.c.l.b16 %v870
        %v1608 = vunpack.c.l.b16 %v871
        %v1609 = vunpack.c.l.b16 %v872
        %v1610 = vunpack.c.l.b16 %v873
        %v1611 = vunpack.c.l.b16 %v874
        %v1612 = vunpack.c.l.b16 %v875
        %v1613 = vunpack.c.l.b16 %v876
        %v1614 = vunpack.c.l.b16 %v877
        %v1615 = vunpack.c.l.b16 %v878
        %v1616 = vunpack.c.l.b16 %v879
        %v1617 = vunpack.c.l.b16 %v880
        %v1618 = vunpack.c.l.b16 %v881
        %v1619 = vunpack.c.l.b16 %v882
        %v1620 = vunpack.c.l.b16 %v883
        %v1621 = vunpack.c.l.b16 %v884
        %v1622 = vunpack.c.l.b16 %v885
        %v1623 = vunpack.c.l.b16 %v886
        %v1624 = vunpack.c.l.b16 %v887
        %v1625 = vunpack.c.l.b16 %v888
        %v1626 = vunpack.c.l.b16 %v889
        %v1627 = vunpack.c.l.b16 %v890
        %v1628 = vunpack.c.l.b16 %v891
        %v1629 = vunpack.c.l.b16 %v892
        %v1630 = vpack.c.b16 %v1599, %v1598
        %v1631 = vpack.c.b16 %v1601, %v1600
        %v1632 = vpack.c.b16 %v1603, %v1602
        %v1633 = vpack.c.b16 %v1605, %v1604
        %v1634 = vpack.c.b16 %v1607, %v1606
        %v1635 = vpack.c.b16 %v1609, %v1608
        %v1636 = vpack.c.b16 %v1611, %v1610
        %v1637 = vpack.c.b16 %v1613, %v1612
        %v1638 = vpack.c.b16 %v1615, %v1614
        %v1639 = vpack.c.b16 %v1617, %v1616
        %v1640 = vpack.c.b16 %v1619, %v1618
        %v1641 = vpack.c.b16 %v1621, %v1620
        %v1642 = vpack.c.b16 %v1623, %v1622
        %v1643 = vpack.c.b16 %v1625, %v1624
        %v1644 = vpack.c.b16 %v1627, %v1626
        %v1645 = vpack.c.b16 %v1629, %v1628
        %v1694 = vunpack.c.l.b16 %v926
        %v1695 = vunpack.c.l.b16 %v927
        %v1696 = vunpack.c.l.b16 %v928
        %v1697 = vunpack.c.l.b16 %v929
        %v1698 = vunpack.c.l.b16 %v930
        %v1699 = vunpack.c.l.b16 %v931
        %v1700 = vunpack.c.l.b16 %v932
        %v1701 = vunpack.c.l.b16 %v933
        %v1702 = vunpack.c.l.b16 %v934
        %v1703 = vunpack.c.l.b16 %v935
        %v1704 = vunpack.c.l.b16 %v936
        %v1705 = vunpack.c.l.b16 %v937
        %v1706 = vunpack.c.l.b16 %v938
        %v1707 = vunpack.c.l.b16 %v939
        %v1708 = vunpack.c.l.b16 %v940
        %v1709 = vunpack.c.l.b16 %v941
        %v1710 = vunpack.c.l.b16 %v942
        %v1711 = vunpack.c.l.b16 %v943
        %v1712 = vunpack.c.l.b16 %v944
        %v1713 = vunpack.c.l.b16 %v945
        %v1714 = vunpack.c.l.b16 %v946
        %v1715 = vunpack.c.l.b16 %v947
        %v1716 = vunpack.c.l.b16 %v948
        %v1717 = vunpack.c.l.b16 %v949
        %v1718 = vunpack.c.l.b16 %v950
        %v1719 = vunpack.c.l.b16 %v951
        %v1720 = vunpack.c.l.b16 %v952
        %v1721 = vunpack.c.l.b16 %v953
        %v1722 = vunpack.c.l.b16 %v954
        %v1723 = vunpack.c.l.b16 %v955
        %v1724 = vunpack.c.l.b16 %v956
        %v1725 = vunpack.c.l.b16 %v957
        %v1726 = vpack.c.b16 %v1695, %v1694
        %v1727 = vpack.c.b16 %v1697, %v1696
        %v1728 = vpack.c.b16 %v1699, %v1698
        %v1729 = vpack.c.b16 %v1701, %v1700
        %v1730 = vpack.c.b16 %v1703, %v1702
        %v1731 = vpack.c.b16 %v1705, %v1704
        %v1732 = vpack.c.b16 %v1707, %v1706
        %v1733 = vpack.c.b16 %v1709, %v1708
        %v1734 = vpack.c.b16 %v1711, %v1710
        %v1735 = vpack.c.b16 %v1713, %v1712
        %v1736 = vpack.c.b16 %v1715, %v1714
        %v1737 = vpack.c.b16 %v1717, %v1716
        %v1738 = vpack.c.b16 %v1719, %v1718
        %v1739 = vpack.c.b16 %v1721, %v1720
        %v1740 = vpack.c.b16 %v1723, %v1722
        %v1741 = vpack.c.b16 %v1725, %v1724
        %v1790 = vunpack.c.l.b16 %v990
        %v1791 = vunpack.c.l.b16 %v991
        %v1792 = vunpack.c.l.b16 %v992
        %v1793 = vunpack.c.l.b16 %v993
        %v1794 = vunpack.c.l.b16 %v994
        %v1795 = vunpack.c.l.b16 %v995
        %v1796 = vunpack.c.l.b16 %v996
        %v1797 = vunpack.c.l.b16 %v997
        %v1798 = vunpack.c.l.b16 %v998
        %v1799 = vunpack.c.l.b16 %v999
        %v1800 = vunpack.c.l.b16 %v1000
        %v1801 = vunpack.c.l.b16 %v1001
        %v1802 = vunpack.c.l.b16 %v1002
        %v1803 = vunpack.c.l.b16 %v1003
        %v1804 = vunpack.c.l.b16 %v1004
        %v1805 = vunpack.c.l.b16 %v1005
        %v1806 = vunpack.c.l.b16 %v1006
        %v1807 = vunpack.c.l.b16 %v1007
        %v1808 = vunpack.c.l.b16 %v1008
        %v1809 = vunpack.c.l.b16 %v1009
        %v1810 = vunpack.c.l.b16 %v1010
        %v1811 = vunpack.c.l.b16 %v1011
        %v1812 = vunpack.c.l.b16 %v1012
        %v1813 = vunpack.c.l.b16 %v1013
        %v1814 = vunpack.c.l.b16 %v1014
        %v1815 = vunpack.c.l.b16 %v1015
        %v1816 = vunpack.c.l.b16 %v1016
        %v1817 = vunpack.c.l.b16 %v1017
        %v1818 = vunpack.c.l.b16 %v1018
        %v1819 = vunpack.c.l.b16 %v1019
        %v1820 = vunpack.c.l.b16 %v1020
        %v1821 = vunpack.c.l.b16 %v1021
        %v1822 = vpack.c.b16 %v1791, %v1790
        %v1823 = vpack.c.b16 %v1793, %v1792
        %v1824 = vpack.c.b16 %v1795, %v1794
        %v1825 = vpack.c.b16 %v1797, %v1796
        %v1826 = vpack.c.b16 %v1799, %v1798
        %v1827 = vpack.c.b16 %v1801, %v1800
        %v1828 = vpack.c.b16 %v1803, %v1802
        %v1829 = vpack.c.b16 %v1805, %v1804
        %v1830 = vpack.c.b16 %v1807, %v1806
        %v1831 = vpack.c.b16 %v1809, %v1808
        %v1832 = vpack.c.b16 %v1811, %v1810
        %v1833 = vpack.c.b16 %v1813, %v1812
        %v1834 = vpack.c.b16 %v1815, %v1814
        %v1835 = vpack.c.b16 %v1817, %v1816
        %v1836 = vpack.c.b16 %v1819, %v1818
        %v1837 = vpack.c.b16 %v1821, %v1820
        %v1886 = vunpack.c.l.b16 %v1054
        %v1887 = vunpack.c.l.b16 %v1055
        %v1888 = vunpack.c.l.b16 %v1056
        %v1889 = vunpack.c.l.b16 %v1057
        %v1890 = vunpack.c.l.b16 %v1058
        %v1891 = vunpack.c.l.b16 %v1059
        %v1892 = vunpack.c.l.b16 %v1060
        %v1893 = vunpack.c.l.b16 %v1061
        %v1894 = vunpack.c.l.b16 %v1062
        %v1895 = vunpack.c.l.b16 %v1063
        %v1896 = vunpack.c.l.b16 %v1064
        %v1897 = vunpack.c.l.b16 %v1065
        %v1898 = vunpack.c.l.b16 %v1066
        %v1899 = vunpack.c.l.b16 %v1067
        %v1900 = vunpack.c.l.b16 %v1068
        %v1901 = vunpack.c.l.b16 %v1069
        %v1902 = vunpack.c.l.b16 %v1070
        %v1903 = vunpack.c.l.b16 %v1071
        %v1904 = vunpack.c.l.b16 %v1072
        %v1905 = vunpack.c.l.b16 %v1073
        %v1906 = vunpack.c.l.b16 %v1074
        %v1907 = vunpack.c.l.b16 %v1075
        %v1908 = vunpack.c.l.b16 %v1076
        %v1909 = vunpack.c.l.b16 %v1077
        %v1910 = vunpack.c.l.b16 %v1078
        %v1911 = vunpack.c.l.b16 %v1079
        %v1912 = vunpack.c.l.b16 %v1080
        %v1913 = vunpack.c.l.b16 %v1081
        %v1914 = vunpack.c.l.b16 %v1082
        %v1915 = vunpack.c.l.b16 %v1083
        %v1916 = vunpack.c.l.b16 %v1084
        %v1917 = vunpack.c.l.b16 %v1085
        %v1918 = vpack.c.b16 %v1887, %v1886
        %v1919 = vpack.c.b16 %v1889, %v1888
        %v1920 = vpack.c.b16 %v1891, %v1890
        %v1921 = vpack.c.b16 %v1893, %v1892
        %v1922 = vpack.c.b16 %v1895, %v1894
        %v1923 = vpack.c.b16 %v1897, %v1896
        %v1924 = vpack.c.b16 %v1899, %v1898
        %v1925 = vpack.c.b16 %v1901, %v1900
        %v1926 = vpack.c.b16 %v1903, %v1902
        %v1927 = vpack.c.b16 %v1905, %v1904
        %v1928 = vpack.c.b16 %v1907, %v1906
        %v1929 = vpack.c.b16 %v1909, %v1908
        %v1930 = vpack.c.b16 %v1911, %v1910
        %v1931 = vpack.c.b16 %v1913, %v1912
        %v1932 = vpack.c.b16 %v1915, %v1914
        %v1933 = vpack.c.b16 %v1917, %v1916
        %v1950 = vld [vmem:[%s3] sm:$0xff]
        %v1951 = vld [vmem:[%s3 + $0x8] sm:$0xff]
        %v1952 = vld [vmem:[%s3 + $0x10] sm:$0xff]
        %v1953 = vld [vmem:[%s3 + $0x18] sm:$0xff]
        %v1954 = vld [vmem:[%s3 + $0x20] sm:$0xf]
        %v1960 = vunpack.c.l.b16 %v1950
        %v1961 = vunpack.c.h.b16 %v1950
        %v1962 = vunpack.c.l.b16 %v1951
        %v1963 = vunpack.c.h.b16 %v1951
        %v1964 = vunpack.c.l.b16 %v1952
        %v1965 = vunpack.c.h.b16 %v1952
        %v1966 = vunpack.c.l.b16 %v1953
        %v1967 = vunpack.c.h.b16 %v1953
        %v1968 = vunpack.c.l.b16 %v1954
        %v1969 = vpack.c.b16 %v1960, %v1960
        %v1970 = vpack.c.b16 %v1961, %v1961
        %v1971 = vpack.c.b16 %v1962, %v1962
        %v1972 = vpack.c.b16 %v1963, %v1963
        %v1973 = vpack.c.b16 %v1964, %v1964
        %v1974 = vpack.c.b16 %v1965, %v1965
        %v1975 = vpack.c.b16 %v1966, %v1966
        %v1976 = vpack.c.b16 %v1967, %v1967
        %v1977 = vpack.c.b16 %v1968, %v1968
        %1987 = vmatpush.bf16.xpose.msra.mxu0 0
        %1988 = vmatpush.bf16.xpose.msra.mxu0 0
        %1989 = vmatpush.bf16.xpose.msra.mxu0 0
        %1990 = vmatpush.bf16.xpose.msra.mxu0 0
        %1991 = vmatpush.bf16.xpose.msra.mxu0 0
        %1992 = vmatpush.bf16.xpose.msra.mxu0 0
        %1993 = vmatpush.bf16.xpose.msra.mxu0 0
        %1994 = vmatpush.bf16.xpose.msra.mxu0 %v1969
        %1995 = vmatmul.bf16.gmra.mxu0 %v1150
        %v1996 = vpop.f32.mrf.mxu0
        %v1997 = vadd.f32 0.0, %v1996
        %v1998 = vpop.f32.mrf.mxu0
        %v1999 = vadd.f32 0.0, %v1998
        %2000 = vmatmul.bf16.gmra.mxu0 %v1151
        %v2001 = vpop.f32.mrf.mxu0
        %v2002 = vadd.f32 0.0, %v2001
        %v2003 = vpop.f32.mrf.mxu0
        %v2004 = vadd.f32 0.0, %v2003
        %2005 = vmatmul.bf16.gmra.mxu0 %v1152
        %v2006 = vpop.f32.mrf.mxu0
        %v2007 = vadd.f32 0.0, %v2006
        %v2008 = vpop.f32.mrf.mxu0
        %v2009 = vadd.f32 0.0, %v2008
        %2010 = vmatmul.bf16.gmra.mxu0 %v1153
        %v2011 = vpop.f32.mrf.mxu0
        %v2012 = vadd.f32 0.0, %v2011
        %v2013 = vpop.f32.mrf.mxu0
        %v2014 = vadd.f32 0.0, %v2013
        %2015 = vmatmul.bf16.gmra.mxu0 %v1154
        %v2016 = vpop.f32.mrf.mxu0
        %v2017 = vadd.f32 0.0, %v2016
        %v2018 = vpop.f32.mrf.mxu0
        %v2019 = vadd.f32 0.0, %v2018
        %2020 = vmatmul.bf16.gmra.mxu0 %v1155
        %v2021 = vpop.f32.mrf.mxu0
        %v2022 = vadd.f32 0.0, %v2021
        %v2023 = vpop.f32.mrf.mxu0
        %v2024 = vadd.f32 0.0, %v2023
        %2025 = vmatmul.bf16.gmra.mxu0 %v1156
        %v2026 = vpop.f32.mrf.mxu0
        %v2027 = vadd.f32 0.0, %v2026
        %v2028 = vpop.f32.mrf.mxu0
        %v2029 = vadd.f32 0.0, %v2028
        %2030 = vmatmul.bf16.gmra.mxu0 %v1157
        %v2031 = vpop.f32.mrf.mxu0
        %v2032 = vadd.f32 0.0, %v2031
        %v2033 = vpop.f32.mrf.mxu0
        %v2034 = vadd.f32 0.0, %v2033
        %2035 = vmatmul.bf16.gmra.mxu0 %v1158
        %v2036 = vpop.f32.mrf.mxu0
        %v2037 = vadd.f32 0.0, %v2036
        %v2038 = vpop.f32.mrf.mxu0
        %v2039 = vadd.f32 0.0, %v2038
        %2040 = vmatmul.bf16.gmra.mxu0 %v1159
        %v2041 = vpop.f32.mrf.mxu0
        %v2042 = vadd.f32 0.0, %v2041
        %v2043 = vpop.f32.mrf.mxu0
        %v2044 = vadd.f32 0.0, %v2043
        %2045 = vmatmul.bf16.gmra.mxu0 %v1160
        %v2046 = vpop.f32.mrf.mxu0
        %v2047 = vadd.f32 0.0, %v2046
        %v2048 = vpop.f32.mrf.mxu0
        %v2049 = vadd.f32 0.0, %v2048
        %2050 = vmatmul.bf16.gmra.mxu0 %v1161
        %v2051 = vpop.f32.mrf.mxu0
        %v2052 = vadd.f32 0.0, %v2051
        %v2053 = vpop.f32.mrf.mxu0
        %v2054 = vadd.f32 0.0, %v2053
        %2055 = vmatmul.bf16.gmra.mxu0 %v1162
        %v2056 = vpop.f32.mrf.mxu0
        %v2057 = vadd.f32 0.0, %v2056
        %v2058 = vpop.f32.mrf.mxu0
        %v2059 = vadd.f32 0.0, %v2058
        %2060 = vmatmul.bf16.gmra.mxu0 %v1163
        %v2061 = vpop.f32.mrf.mxu0
        %v2062 = vadd.f32 0.0, %v2061
        %v2063 = vpop.f32.mrf.mxu0
        %v2064 = vadd.f32 0.0, %v2063
        %2065 = vmatmul.bf16.gmra.mxu0 %v1164
        %v2066 = vpop.f32.mrf.mxu0
        %v2067 = vadd.f32 0.0, %v2066
        %v2068 = vpop.f32.mrf.mxu0
        %v2069 = vadd.f32 0.0, %v2068
        %2070 = vmatmul.bf16.gmra.mxu0 %v1165
        %v2071 = vpop.f32.mrf.mxu0
        %v2072 = vadd.f32 0.0, %v2071
        %v2073 = vpop.f32.mrf.mxu0
        %v2074 = vadd.f32 0.0, %v2073
        %2075 = vdwg.mxu0
        %2076 = vmatpush.bf16.xpose.msra.mxu0 0
        %2077 = vmatpush.bf16.xpose.msra.mxu0 0
        %2078 = vmatpush.bf16.xpose.msra.mxu0 0
        %2079 = vmatpush.bf16.xpose.msra.mxu0 0
        %2080 = vmatpush.bf16.xpose.msra.mxu0 0
        %2081 = vmatpush.bf16.xpose.msra.mxu0 0
        %2082 = vmatpush.bf16.xpose.msra.mxu0 0
        %2083 = vmatpush.bf16.xpose.msra.mxu0 %v1970
        %2084 = vmatmul.bf16.gmra.mxu0 %v1246
        %v2085 = vpop.f32.mrf.mxu0
        %v2086 = vadd.f32 %v1997, %v2085
        %v2087 = vpop.f32.mrf.mxu0
        %v2088 = vadd.f32 %v1999, %v2087
        %2089 = vmatmul.bf16.gmra.mxu0 %v1247
        %v2090 = vpop.f32.mrf.mxu0
        %v2091 = vadd.f32 %v2002, %v2090
        %v2092 = vpop.f32.mrf.mxu0
        %v2093 = vadd.f32 %v2004, %v2092
        %2094 = vmatmul.bf16.gmra.mxu0 %v1248
        %v2095 = vpop.f32.mrf.mxu0
        %v2096 = vadd.f32 %v2007, %v2095
        %v2097 = vpop.f32.mrf.mxu0
        %v2098 = vadd.f32 %v2009, %v2097
        %2099 = vmatmul.bf16.gmra.mxu0 %v1249
        %v2100 = vpop.f32.mrf.mxu0
        %v2101 = vadd.f32 %v2012, %v2100
        %v2102 = vpop.f32.mrf.mxu0
        %v2103 = vadd.f32 %v2014, %v2102
        %2104 = vmatmul.bf16.gmra.mxu0 %v1250
        %v2105 = vpop.f32.mrf.mxu0
        %v2106 = vadd.f32 %v2017, %v2105
        %v2107 = vpop.f32.mrf.mxu0
        %v2108 = vadd.f32 %v2019, %v2107
        %2109 = vmatmul.bf16.gmra.mxu0 %v1251
        %v2110 = vpop.f32.mrf.mxu0
        %v2111 = vadd.f32 %v2022, %v2110
        %v2112 = vpop.f32.mrf.mxu0
        %v2113 = vadd.f32 %v2024, %v2112
        %2114 = vmatmul.bf16.gmra.mxu0 %v1252
        %v2115 = vpop.f32.mrf.mxu0
        %v2116 = vadd.f32 %v2027, %v2115
        %v2117 = vpop.f32.mrf.mxu0
        %v2118 = vadd.f32 %v2029, %v2117
        %2119 = vmatmul.bf16.gmra.mxu0 %v1253
        %v2120 = vpop.f32.mrf.mxu0
        %v2121 = vadd.f32 %v2032, %v2120
        %v2122 = vpop.f32.mrf.mxu0
        %v2123 = vadd.f32 %v2034, %v2122
        %2124 = vmatmul.bf16.gmra.mxu0 %v1254
        %v2125 = vpop.f32.mrf.mxu0
        %v2126 = vadd.f32 %v2037, %v2125
        %v2127 = vpop.f32.mrf.mxu0
        %v2128 = vadd.f32 %v2039, %v2127
        %2129 = vmatmul.bf16.gmra.mxu0 %v1255
        %v2130 = vpop.f32.mrf.mxu0
        %v2131 = vadd.f32 %v2042, %v2130
        %v2132 = vpop.f32.mrf.mxu0
        %v2133 = vadd.f32 %v2044, %v2132
        %2134 = vmatmul.bf16.gmra.mxu0 %v1256
        %v2135 = vpop.f32.mrf.mxu0
        %v2136 = vadd.f32 %v2047, %v2135
        %v2137 = vpop.f32.mrf.mxu0
        %v2138 = vadd.f32 %v2049, %v2137
        %2139 = vmatmul.bf16.gmra.mxu0 %v1257
        %v2140 = vpop.f32.mrf.mxu0
        %v2141 = vadd.f32 %v2052, %v2140
        %v2142 = vpop.f32.mrf.mxu0
        %v2143 = vadd.f32 %v2054, %v2142
        %2144 = vmatmul.bf16.gmra.mxu0 %v1258
        %v2145 = vpop.f32.mrf.mxu0
        %v2146 = vadd.f32 %v2057, %v2145
        %v2147 = vpop.f32.mrf.mxu0
        %v2148 = vadd.f32 %v2059, %v2147
        %2149 = vmatmul.bf16.gmra.mxu0 %v1259
        %v2150 = vpop.f32.mrf.mxu0
        %v2151 = vadd.f32 %v2062, %v2150
        %v2152 = vpop.f32.mrf.mxu0
        %v2153 = vadd.f32 %v2064, %v2152
        %2154 = vmatmul.bf16.gmra.mxu0 %v1260
        %v2155 = vpop.f32.mrf.mxu0
        %v2156 = vadd.f32 %v2067, %v2155
        %v2157 = vpop.f32.mrf.mxu0
        %v2158 = vadd.f32 %v2069, %v2157
        %2159 = vmatmul.bf16.gmra.mxu0 %v1261
        %v2160 = vpop.f32.mrf.mxu0
        %v2161 = vadd.f32 %v2072, %v2160
        %v2162 = vpop.f32.mrf.mxu0
        %v2163 = vadd.f32 %v2074, %v2162
        %2164 = vdwg.mxu0
        %2165 = vmatpush.bf16.xpose.msra.mxu0 0
        %2166 = vmatpush.bf16.xpose.msra.mxu0 0
        %2167 = vmatpush.bf16.xpose.msra.mxu0 0
        %2168 = vmatpush.bf16.xpose.msra.mxu0 0
        %2169 = vmatpush.bf16.xpose.msra.mxu0 0
        %2170 = vmatpush.bf16.xpose.msra.mxu0 0
        %2171 = vmatpush.bf16.xpose.msra.mxu0 0
        %2172 = vmatpush.bf16.xpose.msra.mxu0 %v1971
        %2173 = vmatmul.bf16.gmra.mxu0 %v1342
        %v2174 = vpop.f32.mrf.mxu0
        %v2175 = vadd.f32 %v2086, %v2174
        %v2176 = vpop.f32.mrf.mxu0
        %v2177 = vadd.f32 %v2088, %v2176
        %2178 = vmatmul.bf16.gmra.mxu0 %v1343
        %v2179 = vpop.f32.mrf.mxu0
        %v2180 = vadd.f32 %v2091, %v2179
        %v2181 = vpop.f32.mrf.mxu0
        %v2182 = vadd.f32 %v2093, %v2181
        %2183 = vmatmul.bf16.gmra.mxu0 %v1344
        %v2184 = vpop.f32.mrf.mxu0
        %v2185 = vadd.f32 %v2096, %v2184
        %v2186 = vpop.f32.mrf.mxu0
        %v2187 = vadd.f32 %v2098, %v2186
        %2188 = vmatmul.bf16.gmra.mxu0 %v1345
        %v2189 = vpop.f32.mrf.mxu0
        %v2190 = vadd.f32 %v2101, %v2189
        %v2191 = vpop.f32.mrf.mxu0
        %v2192 = vadd.f32 %v2103, %v2191
        %2193 = vmatmul.bf16.gmra.mxu0 %v1346
        %v2194 = vpop.f32.mrf.mxu0
        %v2195 = vadd.f32 %v2106, %v2194
        %v2196 = vpop.f32.mrf.mxu0
        %v2197 = vadd.f32 %v2108, %v2196
        %2198 = vmatmul.bf16.gmra.mxu0 %v1347
        %v2199 = vpop.f32.mrf.mxu0
        %v2200 = vadd.f32 %v2111, %v2199
        %v2201 = vpop.f32.mrf.mxu0
        %v2202 = vadd.f32 %v2113, %v2201
        %2203 = vmatmul.bf16.gmra.mxu0 %v1348
        %v2204 = vpop.f32.mrf.mxu0
        %v2205 = vadd.f32 %v2116, %v2204
        %v2206 = vpop.f32.mrf.mxu0
        %v2207 = vadd.f32 %v2118, %v2206
        %2208 = vmatmul.bf16.gmra.mxu0 %v1349
        %v2209 = vpop.f32.mrf.mxu0
        %v2210 = vadd.f32 %v2121, %v2209
        %v2211 = vpop.f32.mrf.mxu0
        %v2212 = vadd.f32 %v2123, %v2211
        %2213 = vmatmul.bf16.gmra.mxu0 %v1350
        %v2214 = vpop.f32.mrf.mxu0
        %v2215 = vadd.f32 %v2126, %v2214
        %v2216 = vpop.f32.mrf.mxu0
        %v2217 = vadd.f32 %v2128, %v2216
        %2218 = vmatmul.bf16.gmra.mxu0 %v1351
        %v2219 = vpop.f32.mrf.mxu0
        %v2220 = vadd.f32 %v2131, %v2219
        %v2221 = vpop.f32.mrf.mxu0
        %v2222 = vadd.f32 %v2133, %v2221
        %2223 = vmatmul.bf16.gmra.mxu0 %v1352
        %v2224 = vpop.f32.mrf.mxu0
        %v2225 = vadd.f32 %v2136, %v2224
        %v2226 = vpop.f32.mrf.mxu0
        %v2227 = vadd.f32 %v2138, %v2226
        %2228 = vmatmul.bf16.gmra.mxu0 %v1353
        %v2229 = vpop.f32.mrf.mxu0
        %v2230 = vadd.f32 %v2141, %v2229
        %v2231 = vpop.f32.mrf.mxu0
        %v2232 = vadd.f32 %v2143, %v2231
        %2233 = vmatmul.bf16.gmra.mxu0 %v1354
        %v2234 = vpop.f32.mrf.mxu0
        %v2235 = vadd.f32 %v2146, %v2234
        %v2236 = vpop.f32.mrf.mxu0
        %v2237 = vadd.f32 %v2148, %v2236
        %2238 = vmatmul.bf16.gmra.mxu0 %v1355
        %v2239 = vpop.f32.mrf.mxu0
        %v2240 = vadd.f32 %v2151, %v2239
        %v2241 = vpop.f32.mrf.mxu0
        %v2242 = vadd.f32 %v2153, %v2241
        %2243 = vmatmul.bf16.gmra.mxu0 %v1356
        %v2244 = vpop.f32.mrf.mxu0
        %v2245 = vadd.f32 %v2156, %v2244
        %v2246 = vpop.f32.mrf.mxu0
        %v2247 = vadd.f32 %v2158, %v2246
        %2248 = vmatmul.bf16.gmra.mxu0 %v1357
        %v2249 = vpop.f32.mrf.mxu0
        %v2250 = vadd.f32 %v2161, %v2249
        %v2251 = vpop.f32.mrf.mxu0
        %v2252 = vadd.f32 %v2163, %v2251
        %2253 = vdwg.mxu0
        %2254 = vmatpush.bf16.xpose.msra.mxu0 0
        %2255 = vmatpush.bf16.xpose.msra.mxu0 0
        %2256 = vmatpush.bf16.xpose.msra.mxu0 0
        %2257 = vmatpush.bf16.xpose.msra.mxu0 0
        %2258 = vmatpush.bf16.xpose.msra.mxu0 0
        %2259 = vmatpush.bf16.xpose.msra.mxu0 0
        %2260 = vmatpush.bf16.xpose.msra.mxu0 0
        %2261 = vmatpush.bf16.xpose.msra.mxu0 %v1972
        %2262 = vmatmul.bf16.gmra.mxu0 %v1438
        %v2263 = vpop.f32.mrf.mxu0
        %v2264 = vadd.f32 %v2175, %v2263
        %v2265 = vpop.f32.mrf.mxu0
        %v2266 = vadd.f32 %v2177, %v2265
        %2267 = vmatmul.bf16.gmra.mxu0 %v1439
        %v2268 = vpop.f32.mrf.mxu0
        %v2269 = vadd.f32 %v2180, %v2268
        %v2270 = vpop.f32.mrf.mxu0
        %v2271 = vadd.f32 %v2182, %v2270
        %2272 = vmatmul.bf16.gmra.mxu0 %v1440
        %v2273 = vpop.f32.mrf.mxu0
        %v2274 = vadd.f32 %v2185, %v2273
        %v2275 = vpop.f32.mrf.mxu0
        %v2276 = vadd.f32 %v2187, %v2275
        %2277 = vmatmul.bf16.gmra.mxu0 %v1441
        %v2278 = vpop.f32.mrf.mxu0
        %v2279 = vadd.f32 %v2190, %v2278
        %v2280 = vpop.f32.mrf.mxu0
        %v2281 = vadd.f32 %v2192, %v2280
        %2282 = vmatmul.bf16.gmra.mxu0 %v1442
        %v2283 = vpop.f32.mrf.mxu0
        %v2284 = vadd.f32 %v2195, %v2283
        %v2285 = vpop.f32.mrf.mxu0
        %v2286 = vadd.f32 %v2197, %v2285
        %2287 = vmatmul.bf16.gmra.mxu0 %v1443
        %v2288 = vpop.f32.mrf.mxu0
        %v2289 = vadd.f32 %v2200, %v2288
        %v2290 = vpop.f32.mrf.mxu0
        %v2291 = vadd.f32 %v2202, %v2290
        %2292 = vmatmul.bf16.gmra.mxu0 %v1444
        %v2293 = vpop.f32.mrf.mxu0
        %v2294 = vadd.f32 %v2205, %v2293
        %v2295 = vpop.f32.mrf.mxu0
        %v2296 = vadd.f32 %v2207, %v2295
        %2297 = vmatmul.bf16.gmra.mxu0 %v1445
        %v2298 = vpop.f32.mrf.mxu0
        %v2299 = vadd.f32 %v2210, %v2298
        %v2300 = vpop.f32.mrf.mxu0
        %v2301 = vadd.f32 %v2212, %v2300
        %2302 = vmatmul.bf16.gmra.mxu0 %v1446
        %v2303 = vpop.f32.mrf.mxu0
        %v2304 = vadd.f32 %v2215, %v2303
        %v2305 = vpop.f32.mrf.mxu0
        %v2306 = vadd.f32 %v2217, %v2305
        %2307 = vmatmul.bf16.gmra.mxu0 %v1447
        %v2308 = vpop.f32.mrf.mxu0
        %v2309 = vadd.f32 %v2220, %v2308
        %v2310 = vpop.f32.mrf.mxu0
        %v2311 = vadd.f32 %v2222, %v2310
        %2312 = vmatmul.bf16.gmra.mxu0 %v1448
        %v2313 = vpop.f32.mrf.mxu0
        %v2314 = vadd.f32 %v2225, %v2313
        %v2315 = vpop.f32.mrf.mxu0
        %v2316 = vadd.f32 %v2227, %v2315
        %2317 = vmatmul.bf16.gmra.mxu0 %v1449
        %v2318 = vpop.f32.mrf.mxu0
        %v2319 = vadd.f32 %v2230, %v2318
        %v2320 = vpop.f32.mrf.mxu0
        %v2321 = vadd.f32 %v2232, %v2320
        %2322 = vmatmul.bf16.gmra.mxu0 %v1450
        %v2323 = vpop.f32.mrf.mxu0
        %v2324 = vadd.f32 %v2235, %v2323
        %v2325 = vpop.f32.mrf.mxu0
        %v2326 = vadd.f32 %v2237, %v2325
        %2327 = vmatmul.bf16.gmra.mxu0 %v1451
        %v2328 = vpop.f32.mrf.mxu0
        %v2329 = vadd.f32 %v2240, %v2328
        %v2330 = vpop.f32.mrf.mxu0
        %v2331 = vadd.f32 %v2242, %v2330
        %2332 = vmatmul.bf16.gmra.mxu0 %v1452
        %v2333 = vpop.f32.mrf.mxu0
        %v2334 = vadd.f32 %v2245, %v2333
        %v2335 = vpop.f32.mrf.mxu0
        %v2336 = vadd.f32 %v2247, %v2335
        %2337 = vmatmul.bf16.gmra.mxu0 %v1453
        %v2338 = vpop.f32.mrf.mxu0
        %v2339 = vadd.f32 %v2250, %v2338
        %v2340 = vpop.f32.mrf.mxu0
        %v2341 = vadd.f32 %v2252, %v2340
        %2342 = vdwg.mxu0
        %2343 = vmatpush.bf16.xpose.msra.mxu0 0
        %2344 = vmatpush.bf16.xpose.msra.mxu0 0
        %2345 = vmatpush.bf16.xpose.msra.mxu0 0
        %2346 = vmatpush.bf16.xpose.msra.mxu0 0
        %2347 = vmatpush.bf16.xpose.msra.mxu0 0
        %2348 = vmatpush.bf16.xpose.msra.mxu0 0
        %2349 = vmatpush.bf16.xpose.msra.mxu0 0
        %2350 = vmatpush.bf16.xpose.msra.mxu0 %v1973
        %2351 = vmatmul.bf16.gmra.mxu0 %v1534
        %v2352 = vpop.f32.mrf.mxu0
        %v2353 = vadd.f32 %v2264, %v2352
        %v2354 = vpop.f32.mrf.mxu0
        %v2355 = vadd.f32 %v2266, %v2354
        %2356 = vmatmul.bf16.gmra.mxu0 %v1535
        %v2357 = vpop.f32.mrf.mxu0
        %v2358 = vadd.f32 %v2269, %v2357
        %v2359 = vpop.f32.mrf.mxu0
        %v2360 = vadd.f32 %v2271, %v2359
        %2361 = vmatmul.bf16.gmra.mxu0 %v1536
        %v2362 = vpop.f32.mrf.mxu0
        %v2363 = vadd.f32 %v2274, %v2362
        %v2364 = vpop.f32.mrf.mxu0
        %v2365 = vadd.f32 %v2276, %v2364
        %2366 = vmatmul.bf16.gmra.mxu0 %v1537
        %v2367 = vpop.f32.mrf.mxu0
        %v2368 = vadd.f32 %v2279, %v2367
        %v2369 = vpop.f32.mrf.mxu0
        %v2370 = vadd.f32 %v2281, %v2369
        %2371 = vmatmul.bf16.gmra.mxu0 %v1538
        %v2372 = vpop.f32.mrf.mxu0
        %v2373 = vadd.f32 %v2284, %v2372
        %v2374 = vpop.f32.mrf.mxu0
        %v2375 = vadd.f32 %v2286, %v2374
        %2376 = vmatmul.bf16.gmra.mxu0 %v1539
        %v2377 = vpop.f32.mrf.mxu0
        %v2378 = vadd.f32 %v2289, %v2377
        %v2379 = vpop.f32.mrf.mxu0
        %v2380 = vadd.f32 %v2291, %v2379
        %2381 = vmatmul.bf16.gmra.mxu0 %v1540
        %v2382 = vpop.f32.mrf.mxu0
        %v2383 = vadd.f32 %v2294, %v2382
        %v2384 = vpop.f32.mrf.mxu0
        %v2385 = vadd.f32 %v2296, %v2384
        %2386 = vmatmul.bf16.gmra.mxu0 %v1541
        %v2387 = vpop.f32.mrf.mxu0
        %v2388 = vadd.f32 %v2299, %v2387
        %v2389 = vpop.f32.mrf.mxu0
        %v2390 = vadd.f32 %v2301, %v2389
        %2391 = vmatmul.bf16.gmra.mxu0 %v1542
        %v2392 = vpop.f32.mrf.mxu0
        %v2393 = vadd.f32 %v2304, %v2392
        %v2394 = vpop.f32.mrf.mxu0
        %v2395 = vadd.f32 %v2306, %v2394
        %2396 = vmatmul.bf16.gmra.mxu0 %v1543
        %v2397 = vpop.f32.mrf.mxu0
        %v2398 = vadd.f32 %v2309, %v2397
        %v2399 = vpop.f32.mrf.mxu0
        %v2400 = vadd.f32 %v2311, %v2399
        %2401 = vmatmul.bf16.gmra.mxu0 %v1544
        %v2402 = vpop.f32.mrf.mxu0
        %v2403 = vadd.f32 %v2314, %v2402
        %v2404 = vpop.f32.mrf.mxu0
        %v2405 = vadd.f32 %v2316, %v2404
        %2406 = vmatmul.bf16.gmra.mxu0 %v1545
        %v2407 = vpop.f32.mrf.mxu0
        %v2408 = vadd.f32 %v2319, %v2407
        %v2409 = vpop.f32.mrf.mxu0
        %v2410 = vadd.f32 %v2321, %v2409
        %2411 = vmatmul.bf16.gmra.mxu0 %v1546
        %v2412 = vpop.f32.mrf.mxu0
        %v2413 = vadd.f32 %v2324, %v2412
        %v2414 = vpop.f32.mrf.mxu0
        %v2415 = vadd.f32 %v2326, %v2414
        %2416 = vmatmul.bf16.gmra.mxu0 %v1547
        %v2417 = vpop.f32.mrf.mxu0
        %v2418 = vadd.f32 %v2329, %v2417
        %v2419 = vpop.f32.mrf.mxu0
        %v2420 = vadd.f32 %v2331, %v2419
        %2421 = vmatmul.bf16.gmra.mxu0 %v1548
        %v2422 = vpop.f32.mrf.mxu0
        %v2423 = vadd.f32 %v2334, %v2422
        %v2424 = vpop.f32.mrf.mxu0
        %v2425 = vadd.f32 %v2336, %v2424
        %2426 = vmatmul.bf16.gmra.mxu0 %v1549
        %v2427 = vpop.f32.mrf.mxu0
        %v2428 = vadd.f32 %v2339, %v2427
        %v2429 = vpop.f32.mrf.mxu0
        %v2430 = vadd.f32 %v2341, %v2429
        %2431 = vdwg.mxu0
        %2432 = vmatpush.bf16.xpose.msra.mxu0 0
        %2433 = vmatpush.bf16.xpose.msra.mxu0 0
        %2434 = vmatpush.bf16.xpose.msra.mxu0 0
        %2435 = vmatpush.bf16.xpose.msra.mxu0 0
        %2436 = vmatpush.bf16.xpose.msra.mxu0 0
        %2437 = vmatpush.bf16.xpose.msra.mxu0 0
        %2438 = vmatpush.bf16.xpose.msra.mxu0 0
        %2439 = vmatpush.bf16.xpose.msra.mxu0 %v1974
        %2440 = vmatmul.bf16.gmra.mxu0 %v1630
        %v2441 = vpop.f32.mrf.mxu0
        %v2442 = vadd.f32 %v2353, %v2441
        %v2443 = vpop.f32.mrf.mxu0
        %v2444 = vadd.f32 %v2355, %v2443
        %2445 = vmatmul.bf16.gmra.mxu0 %v1631
        %v2446 = vpop.f32.mrf.mxu0
        %v2447 = vadd.f32 %v2358, %v2446
        %v2448 = vpop.f32.mrf.mxu0
        %v2449 = vadd.f32 %v2360, %v2448
        %2450 = vmatmul.bf16.gmra.mxu0 %v1632
        %v2451 = vpop.f32.mrf.mxu0
        %v2452 = vadd.f32 %v2363, %v2451
        %v2453 = vpop.f32.mrf.mxu0
        %v2454 = vadd.f32 %v2365, %v2453
        %2455 = vmatmul.bf16.gmra.mxu0 %v1633
        %v2456 = vpop.f32.mrf.mxu0
        %v2457 = vadd.f32 %v2368, %v2456
        %v2458 = vpop.f32.mrf.mxu0
        %v2459 = vadd.f32 %v2370, %v2458
        %2460 = vmatmul.bf16.gmra.mxu0 %v1634
        %v2461 = vpop.f32.mrf.mxu0
        %v2462 = vadd.f32 %v2373, %v2461
        %v2463 = vpop.f32.mrf.mxu0
        %v2464 = vadd.f32 %v2375, %v2463
        %2465 = vmatmul.bf16.gmra.mxu0 %v1635
        %v2466 = vpop.f32.mrf.mxu0
        %v2467 = vadd.f32 %v2378, %v2466
        %v2468 = vpop.f32.mrf.mxu0
        %v2469 = vadd.f32 %v2380, %v2468
        %2470 = vmatmul.bf16.gmra.mxu0 %v1636
        %v2471 = vpop.f32.mrf.mxu0
        %v2472 = vadd.f32 %v2383, %v2471
        %v2473 = vpop.f32.mrf.mxu0
        %v2474 = vadd.f32 %v2385, %v2473
        %2475 = vmatmul.bf16.gmra.mxu0 %v1637
        %v2476 = vpop.f32.mrf.mxu0
        %v2477 = vadd.f32 %v2388, %v2476
        %v2478 = vpop.f32.mrf.mxu0
        %v2479 = vadd.f32 %v2390, %v2478
        %2480 = vmatmul.bf16.gmra.mxu0 %v1638
        %v2481 = vpop.f32.mrf.mxu0
        %v2482 = vadd.f32 %v2393, %v2481
        %v2483 = vpop.f32.mrf.mxu0
        %v2484 = vadd.f32 %v2395, %v2483
        %2485 = vmatmul.bf16.gmra.mxu0 %v1639
        %v2486 = vpop.f32.mrf.mxu0
        %v2487 = vadd.f32 %v2398, %v2486
        %v2488 = vpop.f32.mrf.mxu0
        %v2489 = vadd.f32 %v2400, %v2488
        %2490 = vmatmul.bf16.gmra.mxu0 %v1640
        %v2491 = vpop.f32.mrf.mxu0
        %v2492 = vadd.f32 %v2403, %v2491
        %v2493 = vpop.f32.mrf.mxu0
        %v2494 = vadd.f32 %v2405, %v2493
        %2495 = vmatmul.bf16.gmra.mxu0 %v1641
        %v2496 = vpop.f32.mrf.mxu0
        %v2497 = vadd.f32 %v2408, %v2496
        %v2498 = vpop.f32.mrf.mxu0
        %v2499 = vadd.f32 %v2410, %v2498
        %2500 = vmatmul.bf16.gmra.mxu0 %v1642
        %v2501 = vpop.f32.mrf.mxu0
        %v2502 = vadd.f32 %v2413, %v2501
        %v2503 = vpop.f32.mrf.mxu0
        %v2504 = vadd.f32 %v2415, %v2503
        %2505 = vmatmul.bf16.gmra.mxu0 %v1643
        %v2506 = vpop.f32.mrf.mxu0
        %v2507 = vadd.f32 %v2418, %v2506
        %v2508 = vpop.f32.mrf.mxu0
        %v2509 = vadd.f32 %v2420, %v2508
        %2510 = vmatmul.bf16.gmra.mxu0 %v1644
        %v2511 = vpop.f32.mrf.mxu0
        %v2512 = vadd.f32 %v2423, %v2511
        %v2513 = vpop.f32.mrf.mxu0
        %v2514 = vadd.f32 %v2425, %v2513
        %2515 = vmatmul.bf16.gmra.mxu0 %v1645
        %v2516 = vpop.f32.mrf.mxu0
        %v2517 = vadd.f32 %v2428, %v2516
        %v2518 = vpop.f32.mrf.mxu0
        %v2519 = vadd.f32 %v2430, %v2518
        %2520 = vdwg.mxu0
        %2521 = vmatpush.bf16.xpose.msra.mxu0 0
        %2522 = vmatpush.bf16.xpose.msra.mxu0 0
        %2523 = vmatpush.bf16.xpose.msra.mxu0 0
        %2524 = vmatpush.bf16.xpose.msra.mxu0 0
        %2525 = vmatpush.bf16.xpose.msra.mxu0 0
        %2526 = vmatpush.bf16.xpose.msra.mxu0 0
        %2527 = vmatpush.bf16.xpose.msra.mxu0 0
        %2528 = vmatpush.bf16.xpose.msra.mxu0 %v1975
        %2529 = vmatmul.bf16.gmra.mxu0 %v1726
        %v2530 = vpop.f32.mrf.mxu0
        %v2531 = vadd.f32 %v2442, %v2530
        %v2532 = vpop.f32.mrf.mxu0
        %v2533 = vadd.f32 %v2444, %v2532
        %2534 = vmatmul.bf16.gmra.mxu0 %v1727
        %v2535 = vpop.f32.mrf.mxu0
        %v2536 = vadd.f32 %v2447, %v2535
        %v2537 = vpop.f32.mrf.mxu0
        %v2538 = vadd.f32 %v2449, %v2537
        %2539 = vmatmul.bf16.gmra.mxu0 %v1728
        %v2540 = vpop.f32.mrf.mxu0
        %v2541 = vadd.f32 %v2452, %v2540
        %v2542 = vpop.f32.mrf.mxu0
        %v2543 = vadd.f32 %v2454, %v2542
        %2544 = vmatmul.bf16.gmra.mxu0 %v1729
        %v2545 = vpop.f32.mrf.mxu0
        %v2546 = vadd.f32 %v2457, %v2545
        %v2547 = vpop.f32.mrf.mxu0
        %v2548 = vadd.f32 %v2459, %v2547
        %2549 = vmatmul.bf16.gmra.mxu0 %v1730
        %v2550 = vpop.f32.mrf.mxu0
        %v2551 = vadd.f32 %v2462, %v2550
        %v2552 = vpop.f32.mrf.mxu0
        %v2553 = vadd.f32 %v2464, %v2552
        %2554 = vmatmul.bf16.gmra.mxu0 %v1731
        %v2555 = vpop.f32.mrf.mxu0
        %v2556 = vadd.f32 %v2467, %v2555
        %v2557 = vpop.f32.mrf.mxu0
        %v2558 = vadd.f32 %v2469, %v2557
        %2559 = vmatmul.bf16.gmra.mxu0 %v1732
        %v2560 = vpop.f32.mrf.mxu0
        %v2561 = vadd.f32 %v2472, %v2560
        %v2562 = vpop.f32.mrf.mxu0
        %v2563 = vadd.f32 %v2474, %v2562
        %2564 = vmatmul.bf16.gmra.mxu0 %v1733
        %v2565 = vpop.f32.mrf.mxu0
        %v2566 = vadd.f32 %v2477, %v2565
        %v2567 = vpop.f32.mrf.mxu0
        %v2568 = vadd.f32 %v2479, %v2567
        %2569 = vmatmul.bf16.gmra.mxu0 %v1734
        %v2570 = vpop.f32.mrf.mxu0
        %v2571 = vadd.f32 %v2482, %v2570
        %v2572 = vpop.f32.mrf.mxu0
        %v2573 = vadd.f32 %v2484, %v2572
        %2574 = vmatmul.bf16.gmra.mxu0 %v1735
        %v2575 = vpop.f32.mrf.mxu0
        %v2576 = vadd.f32 %v2487, %v2575
        %v2577 = vpop.f32.mrf.mxu0
        %v2578 = vadd.f32 %v2489, %v2577
        %2579 = vmatmul.bf16.gmra.mxu0 %v1736
        %v2580 = vpop.f32.mrf.mxu0
        %v2581 = vadd.f32 %v2492, %v2580
        %v2582 = vpop.f32.mrf.mxu0
        %v2583 = vadd.f32 %v2494, %v2582
        %2584 = vmatmul.bf16.gmra.mxu0 %v1737
        %v2585 = vpop.f32.mrf.mxu0
        %v2586 = vadd.f32 %v2497, %v2585
        %v2587 = vpop.f32.mrf.mxu0
        %v2588 = vadd.f32 %v2499, %v2587
        %2589 = vmatmul.bf16.gmra.mxu0 %v1738
        %v2590 = vpop.f32.mrf.mxu0
        %v2591 = vadd.f32 %v2502, %v2590
        %v2592 = vpop.f32.mrf.mxu0
        %v2593 = vadd.f32 %v2504, %v2592
        %2594 = vmatmul.bf16.gmra.mxu0 %v1739
        %v2595 = vpop.f32.mrf.mxu0
        %v2596 = vadd.f32 %v2507, %v2595
        %v2597 = vpop.f32.mrf.mxu0
        %v2598 = vadd.f32 %v2509, %v2597
        %2599 = vmatmul.bf16.gmra.mxu0 %v1740
        %v2600 = vpop.f32.mrf.mxu0
        %v2601 = vadd.f32 %v2512, %v2600
        %v2602 = vpop.f32.mrf.mxu0
        %v2603 = vadd.f32 %v2514, %v2602
        %2604 = vmatmul.bf16.gmra.mxu0 %v1741
        %v2605 = vpop.f32.mrf.mxu0
        %v2606 = vadd.f32 %v2517, %v2605
        %v2607 = vpop.f32.mrf.mxu0
        %v2608 = vadd.f32 %v2519, %v2607
        %2609 = vdwg.mxu0
        %2610 = vmatpush.bf16.xpose.msra.mxu0 0
        %2611 = vmatpush.bf16.xpose.msra.mxu0 0
        %2612 = vmatpush.bf16.xpose.msra.mxu0 0
        %2613 = vmatpush.bf16.xpose.msra.mxu0 0
        %2614 = vmatpush.bf16.xpose.msra.mxu0 0
        %2615 = vmatpush.bf16.xpose.msra.mxu0 0
        %2616 = vmatpush.bf16.xpose.msra.mxu0 0
        %2617 = vmatpush.bf16.xpose.msra.mxu0 %v1976
        %2618 = vmatmul.bf16.gmra.mxu0 %v1822
        %v2619 = vpop.f32.mrf.mxu0
        %v2620 = vadd.f32 %v2531, %v2619
        %v2621 = vpop.f32.mrf.mxu0
        %v2622 = vadd.f32 %v2533, %v2621
        %2623 = vmatmul.bf16.gmra.mxu0 %v1823
        %v2624 = vpop.f32.mrf.mxu0
        %v2625 = vadd.f32 %v2536, %v2624
        %v2626 = vpop.f32.mrf.mxu0
        %v2627 = vadd.f32 %v2538, %v2626
        %2628 = vmatmul.bf16.gmra.mxu0 %v1824
        %v2629 = vpop.f32.mrf.mxu0
        %v2630 = vadd.f32 %v2541, %v2629
        %v2631 = vpop.f32.mrf.mxu0
        %v2632 = vadd.f32 %v2543, %v2631
        %2633 = vmatmul.bf16.gmra.mxu0 %v1825
        %v2634 = vpop.f32.mrf.mxu0
        %v2635 = vadd.f32 %v2546, %v2634
        %v2636 = vpop.f32.mrf.mxu0
        %v2637 = vadd.f32 %v2548, %v2636
        %2638 = vmatmul.bf16.gmra.mxu0 %v1826
        %v2639 = vpop.f32.mrf.mxu0
        %v2640 = vadd.f32 %v2551, %v2639
        %v2641 = vpop.f32.mrf.mxu0
        %v2642 = vadd.f32 %v2553, %v2641
        %2643 = vmatmul.bf16.gmra.mxu0 %v1827
        %v2644 = vpop.f32.mrf.mxu0
        %v2645 = vadd.f32 %v2556, %v2644
        %v2646 = vpop.f32.mrf.mxu0
        %v2647 = vadd.f32 %v2558, %v2646
        %2648 = vmatmul.bf16.gmra.mxu0 %v1828
        %v2649 = vpop.f32.mrf.mxu0
        %v2650 = vadd.f32 %v2561, %v2649
        %v2651 = vpop.f32.mrf.mxu0
        %v2652 = vadd.f32 %v2563, %v2651
        %2653 = vmatmul.bf16.gmra.mxu0 %v1829
        %v2654 = vpop.f32.mrf.mxu0
        %v2655 = vadd.f32 %v2566, %v2654
        %v2656 = vpop.f32.mrf.mxu0
        %v2657 = vadd.f32 %v2568, %v2656
        %2658 = vmatmul.bf16.gmra.mxu0 %v1830
        %v2659 = vpop.f32.mrf.mxu0
        %v2660 = vadd.f32 %v2571, %v2659
        %v2661 = vpop.f32.mrf.mxu0
        %v2662 = vadd.f32 %v2573, %v2661
        %2663 = vmatmul.bf16.gmra.mxu0 %v1831
        %v2664 = vpop.f32.mrf.mxu0
        %v2665 = vadd.f32 %v2576, %v2664
        %v2666 = vpop.f32.mrf.mxu0
        %v2667 = vadd.f32 %v2578, %v2666
        %2668 = vmatmul.bf16.gmra.mxu0 %v1832
        %v2669 = vpop.f32.mrf.mxu0
        %v2670 = vadd.f32 %v2581, %v2669
        %v2671 = vpop.f32.mrf.mxu0
        %v2672 = vadd.f32 %v2583, %v2671
        %2673 = vmatmul.bf16.gmra.mxu0 %v1833
        %v2674 = vpop.f32.mrf.mxu0
        %v2675 = vadd.f32 %v2586, %v2674
        %v2676 = vpop.f32.mrf.mxu0
        %v2677 = vadd.f32 %v2588, %v2676
        %2678 = vmatmul.bf16.gmra.mxu0 %v1834
        %v2679 = vpop.f32.mrf.mxu0
        %v2680 = vadd.f32 %v2591, %v2679
        %v2681 = vpop.f32.mrf.mxu0
        %v2682 = vadd.f32 %v2593, %v2681
        %2683 = vmatmul.bf16.gmra.mxu0 %v1835
        %v2684 = vpop.f32.mrf.mxu0
        %v2685 = vadd.f32 %v2596, %v2684
        %v2686 = vpop.f32.mrf.mxu0
        %v2687 = vadd.f32 %v2598, %v2686
        %2688 = vmatmul.bf16.gmra.mxu0 %v1836
        %v2689 = vpop.f32.mrf.mxu0
        %v2690 = vadd.f32 %v2601, %v2689
        %v2691 = vpop.f32.mrf.mxu0
        %v2692 = vadd.f32 %v2603, %v2691
        %2693 = vmatmul.bf16.gmra.mxu0 %v1837
        %v2694 = vpop.f32.mrf.mxu0
        %v2695 = vadd.f32 %v2606, %v2694
        %v2696 = vpop.f32.mrf.mxu0
        %v2697 = vadd.f32 %v2608, %v2696
        %2698 = vdwg.mxu0
        %2699 = vmatpush.bf16.xpose.msra.mxu0 0
        %2700 = vmatpush.bf16.xpose.msra.mxu0 0
        %2701 = vmatpush.bf16.xpose.msra.mxu0 0
        %2702 = vmatpush.bf16.xpose.msra.mxu0 0
        %2703 = vmatpush.bf16.xpose.msra.mxu0 0
        %2704 = vmatpush.bf16.xpose.msra.mxu0 0
        %2705 = vmatpush.bf16.xpose.msra.mxu0 0
        %2706 = vmatpush.bf16.xpose.msra.mxu0 %v1977
        %2707 = vmatmul.bf16.gmra.mxu0 %v1918
        %v2708 = vpop.f32.mrf.mxu0
        %v2709 = vadd.f32 %v2620, %v2708
        %v2710 = vpop.f32.mrf.mxu0
        %v2711 = vadd.f32 %v2622, %v2710
        %2712 = vmatmul.bf16.gmra.mxu0 %v1919
        %v2713 = vpop.f32.mrf.mxu0
        %v2714 = vadd.f32 %v2625, %v2713
        %v2715 = vpop.f32.mrf.mxu0
        %v2716 = vadd.f32 %v2627, %v2715
        %2717 = vmatmul.bf16.gmra.mxu0 %v1920
        %v2718 = vpop.f32.mrf.mxu0
        %v2719 = vadd.f32 %v2630, %v2718
        %v2720 = vpop.f32.mrf.mxu0
        %v2721 = vadd.f32 %v2632, %v2720
        %2722 = vmatmul.bf16.gmra.mxu0 %v1921
        %v2723 = vpop.f32.mrf.mxu0
        %v2724 = vadd.f32 %v2635, %v2723
        %v2725 = vpop.f32.mrf.mxu0
        %v2726 = vadd.f32 %v2637, %v2725
        %2727 = vmatmul.bf16.gmra.mxu0 %v1922
        %v2728 = vpop.f32.mrf.mxu0
        %v2729 = vadd.f32 %v2640, %v2728
        %v2730 = vpop.f32.mrf.mxu0
        %v2731 = vadd.f32 %v2642, %v2730
        %2732 = vmatmul.bf16.gmra.mxu0 %v1923
        %v2733 = vpop.f32.mrf.mxu0
        %v2734 = vadd.f32 %v2645, %v2733
        %v2735 = vpop.f32.mrf.mxu0
        %v2736 = vadd.f32 %v2647, %v2735
        %2737 = vmatmul.bf16.gmra.mxu0 %v1924
        %v2738 = vpop.f32.mrf.mxu0
        %v2739 = vadd.f32 %v2650, %v2738
        %v2740 = vpop.f32.mrf.mxu0
        %v2741 = vadd.f32 %v2652, %v2740
        %2742 = vmatmul.bf16.gmra.mxu0 %v1925
        %v2743 = vpop.f32.mrf.mxu0
        %v2744 = vadd.f32 %v2655, %v2743
        %v2745 = vpop.f32.mrf.mxu0
        %v2746 = vadd.f32 %v2657, %v2745
        %2747 = vmatmul.bf16.gmra.mxu0 %v1926
        %v2748 = vpop.f32.mrf.mxu0
        %v2749 = vadd.f32 %v2660, %v2748
        %v2750 = vpop.f32.mrf.mxu0
        %v2751 = vadd.f32 %v2662, %v2750
        %2752 = vmatmul.bf16.gmra.mxu0 %v1927
        %v2753 = vpop.f32.mrf.mxu0
        %v2754 = vadd.f32 %v2665, %v2753
        %v2755 = vpop.f32.mrf.mxu0
        %v2756 = vadd.f32 %v2667, %v2755
        %2757 = vmatmul.bf16.gmra.mxu0 %v1928
        %v2758 = vpop.f32.mrf.mxu0
        %v2759 = vadd.f32 %v2670, %v2758
        %v2760 = vpop.f32.mrf.mxu0
        %v2761 = vadd.f32 %v2672, %v2760
        %2762 = vmatmul.bf16.gmra.mxu0 %v1929
        %v2763 = vpop.f32.mrf.mxu0
        %v2764 = vadd.f32 %v2675, %v2763
        %v2765 = vpop.f32.mrf.mxu0
        %v2766 = vadd.f32 %v2677, %v2765
        %2767 = vmatmul.bf16.gmra.mxu0 %v1930
        %v2768 = vpop.f32.mrf.mxu0
        %v2769 = vadd.f32 %v2680, %v2768
        %v2770 = vpop.f32.mrf.mxu0
        %v2771 = vadd.f32 %v2682, %v2770
        %2772 = vmatmul.bf16.gmra.mxu0 %v1931
        %v2773 = vpop.f32.mrf.mxu0
        %v2774 = vadd.f32 %v2685, %v2773
        %v2775 = vpop.f32.mrf.mxu0
        %v2776 = vadd.f32 %v2687, %v2775
        %2777 = vmatmul.bf16.gmra.mxu0 %v1932
        %v2778 = vpop.f32.mrf.mxu0
        %v2779 = vadd.f32 %v2690, %v2778
        %v2780 = vpop.f32.mrf.mxu0
        %v2781 = vadd.f32 %v2692, %v2780
        %2782 = vmatmul.bf16.gmra.mxu0 %v1933
        %v2783 = vpop.f32.mrf.mxu0
        %v2784 = vadd.f32 %v2695, %v2783
        %v2785 = vpop.f32.mrf.mxu0
        %v2786 = vadd.f32 %v2697, %v2785
        %2787 = vdwg.mxu0
        %v2788 = vmax.f32 %v2709, 0.0
        %v2789 = vmax.f32 %v2711, 0.0
        %v2790 = vmax.f32 %v2714, 0.0
        %v2791 = vmax.f32 %v2716, 0.0
        %v2792 = vmax.f32 %v2719, 0.0
        %v2793 = vmax.f32 %v2721, 0.0
        %v2794 = vmax.f32 %v2724, 0.0
        %v2795 = vmax.f32 %v2726, 0.0
        %v2796 = vmax.f32 %v2729, 0.0
        %v2797 = vmax.f32 %v2731, 0.0
        %v2798 = vmax.f32 %v2734, 0.0
        %v2799 = vmax.f32 %v2736, 0.0
        %v2800 = vmax.f32 %v2739, 0.0
        %v2801 = vmax.f32 %v2741, 0.0
        %v2802 = vmax.f32 %v2744, 0.0
        %v2803 = vmax.f32 %v2746, 0.0
        %v2804 = vmax.f32 %v2749, 0.0
        %v2805 = vmax.f32 %v2751, 0.0
        %v2806 = vmax.f32 %v2754, 0.0
        %v2807 = vmax.f32 %v2756, 0.0
        %v2808 = vmax.f32 %v2759, 0.0
        %v2809 = vmax.f32 %v2761, 0.0
        %v2810 = vmax.f32 %v2764, 0.0
        %v2811 = vmax.f32 %v2766, 0.0
        %v2812 = vmax.f32 %v2769, 0.0
        %v2813 = vmax.f32 %v2771, 0.0
        %v2814 = vmax.f32 %v2774, 0.0
        %v2815 = vmax.f32 %v2776, 0.0
        %v2816 = vmax.f32 %v2779, 0.0
        %v2817 = vmax.f32 %v2781, 0.0
        %v2818 = vmax.f32 %v2784, 0.0
        %v2819 = vmax.f32 %v2786, 0.0
        %s2820 = scalar_lea.vmem [#allocation3], 24
        %2821 = vst.msk [vmem:[%s2820 + $0x1] sm:$0xff] %vm455, %v2788
        %2822 = vst.msk [vmem:[%s2820 + $0x9] sm:$0xff] %vm455, %v2789
        %2823 = vst.msk [vmem:[%s2820 + $0x19] sm:$0xff] %vm455, %v2790
        %2824 = vst.msk [vmem:[%s2820 + $0x21] sm:$0xff] %vm455, %v2791
        %2825 = vst.msk [vmem:[%s2820 + $0x31] sm:$0xff] %vm455, %v2792
        %2826 = vst.msk [vmem:[%s2820 + $0x39] sm:$0xff] %vm455, %v2793
        %2827 = vst.msk [vmem:[%s2820 + $0x49] sm:$0xff] %vm455, %v2794
        %2828 = vst.msk [vmem:[%s2820 + $0x51] sm:$0xff] %vm455, %v2795
        %2829 = vst.msk [vmem:[%s2820 + $0x61] sm:$0xff] %vm455, %v2796
        %2830 = vst.msk [vmem:[%s2820 + $0x69] sm:$0xff] %vm455, %v2797
        %2831 = vst.msk [vmem:[%s2820 + $0x79] sm:$0xff] %vm455, %v2798
        %2832 = vst.msk [vmem:[%s2820 + $0x81] sm:$0xff] %vm455, %v2799
        %2833 = vst.msk [vmem:[%s2820 + $0x91] sm:$0xff] %vm455, %v2800
        %2834 = vst.msk [vmem:[%s2820 + $0x99] sm:$0xff] %vm455, %v2801
        %2835 = vst.msk [vmem:[%s2820 + $0xa9] sm:$0xff] %vm455, %v2802
        %2836 = vst.msk [vmem:[%s2820 + $0xb1] sm:$0xff] %vm455, %v2803
        %2837 = vst.msk [vmem:[%s2820 + $0xc1] sm:$0xff] %vm455, %v2804
        %2838 = vst.msk [vmem:[%s2820 + $0xc9] sm:$0xff] %vm455, %v2805
        %2839 = vst.msk [vmem:[%s2820 + $0xd9] sm:$0xff] %vm455, %v2806
        %2840 = vst.msk [vmem:[%s2820 + $0xe1] sm:$0xff] %vm455, %v2807
        %2841 = vst.msk [vmem:[%s2820 + $0xf1] sm:$0xff] %vm455, %v2808
        %2842 = vst.msk [vmem:[%s2820 + $0xf9] sm:$0xff] %vm455, %v2809
        %2843 = vst.msk [vmem:[%s2820 + $0x109] sm:$0xff] %vm455, %v2810
        %2844 = vst.msk [vmem:[%s2820 + $0x111] sm:$0xff] %vm455, %v2811
        %2845 = vst.msk [vmem:[%s2820 + $0x121] sm:$0xff] %vm455, %v2812
        %2846 = vst.msk [vmem:[%s2820 + $0x129] sm:$0xff] %vm455, %v2813
        %2847 = vst.msk [vmem:[%s2820 + $0x139] sm:$0xff] %vm455, %v2814
        %2848 = vst.msk [vmem:[%s2820 + $0x141] sm:$0xff] %vm455, %v2815
        %2849 = vst.msk [vmem:[%s2820 + $0x151] sm:$0xff] %vm455, %v2816
        %2850 = vst.msk [vmem:[%s2820 + $0x159] sm:$0xff] %vm455, %v2817
        %2851 = vst.msk [vmem:[%s2820 + $0x169] sm:$0xff] %vm455, %v2818
        %2852 = vst.msk [vmem:[%s2820 + $0x171] sm:$0xff] %vm455, %v2819
        %v2853 = vld [vmem:[#allocation3] sm:$0xff]
        %v2854 = vld [vmem:[#allocation3 + $0x8] sm:$0xff]
        %v2855 = vld [vmem:[#allocation3 + $0x18] sm:$0xff]
        %v2856 = vld [vmem:[#allocation3 + $0x20] sm:$0xff]
        %v2857 = vld [vmem:[#allocation3 + $0x30] sm:$0xff]
        %v2858 = vld [vmem:[#allocation3 + $0x38] sm:$0xff]
        %v2859 = vld [vmem:[#allocation3 + $0x48] sm:$0xff]
        %v2860 = vld [vmem:[#allocation3 + $0x50] sm:$0xff]
        %v2861 = vld [vmem:[#allocation3 + $0x60] sm:$0xff]
        %v2862 = vld [vmem:[#allocation3 + $0x68] sm:$0xff]
        %v2863 = vld [vmem:[#allocation3 + $0x78] sm:$0xff]
        %v2864 = vld [vmem:[#allocation3 + $0x80] sm:$0xff]
        %v2865 = vld [vmem:[#allocation3 + $0x90] sm:$0xff]
        %v2866 = vld [vmem:[#allocation3 + $0x98] sm:$0xff]
        %v2867 = vld [vmem:[#allocation3 + $0xa8] sm:$0xff]
        %v2868 = vld [vmem:[#allocation3 + $0xb0] sm:$0xff]
        %v2869 = vld [vmem:[#allocation3 + $0xc0] sm:$0xff]
        %v2870 = vld [vmem:[#allocation3 + $0xc8] sm:$0xff]
        %v2871 = vld [vmem:[#allocation3 + $0xd8] sm:$0xff]
        %v2872 = vld [vmem:[#allocation3 + $0xe0] sm:$0xff]
        %v2873 = vld [vmem:[#allocation3 + $0xf0] sm:$0xff]
        %v2874 = vld [vmem:[#allocation3 + $0xf8] sm:$0xff]
        %v2875 = vld [vmem:[#allocation3 + $0x108] sm:$0xff]
        %v2876 = vld [vmem:[#allocation3 + $0x110] sm:$0xff]
        %v2877 = vld [vmem:[#allocation3 + $0x120] sm:$0xff]
        %v2878 = vld [vmem:[#allocation3 + $0x128] sm:$0xff]
        %v2879 = vld [vmem:[#allocation3 + $0x138] sm:$0xff]
        %v2880 = vld [vmem:[#allocation3 + $0x140] sm:$0xff]
        %v2881 = vld [vmem:[#allocation3 + $0x150] sm:$0xff]
        %v2882 = vld [vmem:[#allocation3 + $0x158] sm:$0xff]
        %v2883 = vld [vmem:[#allocation3 + $0x168] sm:$0xff]
        %v2884 = vld [vmem:[#allocation3 + $0x170] sm:$0xff]
        %v2885 = vpack.c.bf16 %v2853, %v2853
        %v2886 = vpack.c.bf16 %v2854, %v2854
        %v2887 = vpack.c.bf16 %v2855, %v2855
        %v2888 = vpack.c.bf16 %v2856, %v2856
        %v2889 = vpack.c.bf16 %v2857, %v2857
        %v2890 = vpack.c.bf16 %v2858, %v2858
        %v2891 = vpack.c.bf16 %v2859, %v2859
        %v2892 = vpack.c.bf16 %v2860, %v2860
        %v2893 = vpack.c.bf16 %v2861, %v2861
        %v2894 = vpack.c.bf16 %v2862, %v2862
        %v2895 = vpack.c.bf16 %v2863, %v2863
        %v2896 = vpack.c.bf16 %v2864, %v2864
        %v2897 = vpack.c.bf16 %v2865, %v2865
        %v2898 = vpack.c.bf16 %v2866, %v2866
        %v2899 = vpack.c.bf16 %v2867, %v2867
        %v2900 = vpack.c.bf16 %v2868, %v2868
        %v2901 = vpack.c.bf16 %v2869, %v2869
        %v2902 = vpack.c.bf16 %v2870, %v2870
        %v2903 = vpack.c.bf16 %v2871, %v2871
        %v2904 = vpack.c.bf16 %v2872, %v2872
        %v2905 = vpack.c.bf16 %v2873, %v2873
        %v2906 = vpack.c.bf16 %v2874, %v2874
        %v2907 = vpack.c.bf16 %v2875, %v2875
        %v2908 = vpack.c.bf16 %v2876, %v2876
        %v2909 = vpack.c.bf16 %v2877, %v2877
        %v2910 = vpack.c.bf16 %v2878, %v2878
        %v2911 = vpack.c.bf16 %v2879, %v2879
        %v2912 = vpack.c.bf16 %v2880, %v2880
        %v2913 = vpack.c.bf16 %v2881, %v2881
        %v2914 = vpack.c.bf16 %v2882, %v2882
        %v2915 = vpack.c.bf16 %v2883, %v2883
        %v2916 = vpack.c.bf16 %v2884, %v2884
        %v2917 = vld [vmem:[#allocation3 + $0x1] sm:$0xff]
        %v2918 = vld [vmem:[#allocation3 + $0x9] sm:$0xff]
        %v2919 = vld [vmem:[#allocation3 + $0x19] sm:$0xff]
        %v2920 = vld [vmem:[#allocation3 + $0x21] sm:$0xff]
        %v2921 = vld [vmem:[#allocation3 + $0x31] sm:$0xff]
        %v2922 = vld [vmem:[#allocation3 + $0x39] sm:$0xff]
        %v2923 = vld [vmem:[#allocation3 + $0x49] sm:$0xff]
        %v2924 = vld [vmem:[#allocation3 + $0x51] sm:$0xff]
        %v2925 = vld [vmem:[#allocation3 + $0x61] sm:$0xff]
        %v2926 = vld [vmem:[#allocation3 + $0x69] sm:$0xff]
        %v2927 = vld [vmem:[#allocation3 + $0x79] sm:$0xff]
        %v2928 = vld [vmem:[#allocation3 + $0x81] sm:$0xff]
        %v2929 = vld [vmem:[#allocation3 + $0x91] sm:$0xff]
        %v2930 = vld [vmem:[#allocation3 + $0x99] sm:$0xff]
        %v2931 = vld [vmem:[#allocation3 + $0xa9] sm:$0xff]
        %v2932 = vld [vmem:[#allocation3 + $0xb1] sm:$0xff]
        %v2933 = vld [vmem:[#allocation3 + $0xc1] sm:$0xff]
        %v2934 = vld [vmem:[#allocation3 + $0xc9] sm:$0xff]
        %v2935 = vld [vmem:[#allocation3 + $0xd9] sm:$0xff]
        %v2936 = vld [vmem:[#allocation3 + $0xe1] sm:$0xff]
        %v2937 = vld [vmem:[#allocation3 + $0xf1] sm:$0xff]
        %v2938 = vld [vmem:[#allocation3 + $0xf9] sm:$0xff]
        %v2939 = vld [vmem:[#allocation3 + $0x109] sm:$0xff]
        %v2940 = vld [vmem:[#allocation3 + $0x111] sm:$0xff]
        %v2941 = vld [vmem:[#allocation3 + $0x121] sm:$0xff]
        %v2942 = vld [vmem:[#allocation3 + $0x129] sm:$0xff]
        %v2943 = vld [vmem:[#allocation3 + $0x139] sm:$0xff]
        %v2944 = vld [vmem:[#allocation3 + $0x141] sm:$0xff]
        %v2945 = vld [vmem:[#allocation3 + $0x151] sm:$0xff]
        %v2946 = vld [vmem:[#allocation3 + $0x159] sm:$0xff]
        %v2947 = vld [vmem:[#allocation3 + $0x169] sm:$0xff]
        %v2948 = vld [vmem:[#allocation3 + $0x171] sm:$0xff]
        %v2949 = vpack.c.bf16 %v2917, %v2917
        %v2950 = vpack.c.bf16 %v2918, %v2918
        %v2951 = vpack.c.bf16 %v2919, %v2919
        %v2952 = vpack.c.bf16 %v2920, %v2920
        %v2953 = vpack.c.bf16 %v2921, %v2921
        %v2954 = vpack.c.bf16 %v2922, %v2922
        %v2955 = vpack.c.bf16 %v2923, %v2923
        %v2956 = vpack.c.bf16 %v2924, %v2924
        %v2957 = vpack.c.bf16 %v2925, %v2925
        %v2958 = vpack.c.bf16 %v2926, %v2926
        %v2959 = vpack.c.bf16 %v2927, %v2927
        %v2960 = vpack.c.bf16 %v2928, %v2928
        %v2961 = vpack.c.bf16 %v2929, %v2929
        %v2962 = vpack.c.bf16 %v2930, %v2930
        %v2963 = vpack.c.bf16 %v2931, %v2931
        %v2964 = vpack.c.bf16 %v2932, %v2932
        %v2965 = vpack.c.bf16 %v2933, %v2933
        %v2966 = vpack.c.bf16 %v2934, %v2934
        %v2967 = vpack.c.bf16 %v2935, %v2935
        %v2968 = vpack.c.bf16 %v2936, %v2936
        %v2969 = vpack.c.bf16 %v2937, %v2937
        %v2970 = vpack.c.bf16 %v2938, %v2938
        %v2971 = vpack.c.bf16 %v2939, %v2939
        %v2972 = vpack.c.bf16 %v2940, %v2940
        %v2973 = vpack.c.bf16 %v2941, %v2941
        %v2974 = vpack.c.bf16 %v2942, %v2942
        %v2975 = vpack.c.bf16 %v2943, %v2943
        %v2976 = vpack.c.bf16 %v2944, %v2944
        %v2977 = vpack.c.bf16 %v2945, %v2945
        %v2978 = vpack.c.bf16 %v2946, %v2946
        %v2979 = vpack.c.bf16 %v2947, %v2947
        %v2980 = vpack.c.bf16 %v2948, %v2948
        %v2981 = vld [vmem:[#allocation3 + $0x2] sm:$0xff]
        %v2982 = vld [vmem:[#allocation3 + $0xa] sm:$0xff]
        %v2983 = vld [vmem:[#allocation3 + $0x1a] sm:$0xff]
        %v2984 = vld [vmem:[#allocation3 + $0x22] sm:$0xff]
        %v2985 = vld [vmem:[#allocation3 + $0x32] sm:$0xff]
        %v2986 = vld [vmem:[#allocation3 + $0x3a] sm:$0xff]
        %v2987 = vld [vmem:[#allocation3 + $0x4a] sm:$0xff]
        %v2988 = vld [vmem:[#allocation3 + $0x52] sm:$0xff]
        %v2989 = vld [vmem:[#allocation3 + $0x62] sm:$0xff]
        %v2990 = vld [vmem:[#allocation3 + $0x6a] sm:$0xff]
        %v2991 = vld [vmem:[#allocation3 + $0x7a] sm:$0xff]
        %v2992 = vld [vmem:[#allocation3 + $0x82] sm:$0xff]
        %v2993 = vld [vmem:[#allocation3 + $0x92] sm:$0xff]
        %v2994 = vld [vmem:[#allocation3 + $0x9a] sm:$0xff]
        %v2995 = vld [vmem:[#allocation3 + $0xaa] sm:$0xff]
        %v2996 = vld [vmem:[#allocation3 + $0xb2] sm:$0xff]
        %v2997 = vld [vmem:[#allocation3 + $0xc2] sm:$0xff]
        %v2998 = vld [vmem:[#allocation3 + $0xca] sm:$0xff]
        %v2999 = vld [vmem:[#allocation3 + $0xda] sm:$0xff]
        %v3000 = vld [vmem:[#allocation3 + $0xe2] sm:$0xff]
        %v3001 = vld [vmem:[#allocation3 + $0xf2] sm:$0xff]
        %v3002 = vld [vmem:[#allocation3 + $0xfa] sm:$0xff]
        %v3003 = vld [vmem:[#allocation3 + $0x10a] sm:$0xff]
        %v3004 = vld [vmem:[#allocation3 + $0x112] sm:$0xff]
        %v3005 = vld [vmem:[#allocation3 + $0x122] sm:$0xff]
        %v3006 = vld [vmem:[#allocation3 + $0x12a] sm:$0xff]
        %v3007 = vld [vmem:[#allocation3 + $0x13a] sm:$0xff]
        %v3008 = vld [vmem:[#allocation3 + $0x142] sm:$0xff]
        %v3009 = vld [vmem:[#allocation3 + $0x152] sm:$0xff]
        %v3010 = vld [vmem:[#allocation3 + $0x15a] sm:$0xff]
        %v3011 = vld [vmem:[#allocation3 + $0x16a] sm:$0xff]
        %v3012 = vld [vmem:[#allocation3 + $0x172] sm:$0xff]
        %v3013 = vpack.c.bf16 %v2981, %v2981
        %v3014 = vpack.c.bf16 %v2982, %v2982
        %v3015 = vpack.c.bf16 %v2983, %v2983
        %v3016 = vpack.c.bf16 %v2984, %v2984
        %v3017 = vpack.c.bf16 %v2985, %v2985
        %v3018 = vpack.c.bf16 %v2986, %v2986
        %v3019 = vpack.c.bf16 %v2987, %v2987
        %v3020 = vpack.c.bf16 %v2988, %v2988
        %v3021 = vpack.c.bf16 %v2989, %v2989
        %v3022 = vpack.c.bf16 %v2990, %v2990
        %v3023 = vpack.c.bf16 %v2991, %v2991
        %v3024 = vpack.c.bf16 %v2992, %v2992
        %v3025 = vpack.c.bf16 %v2993, %v2993
        %v3026 = vpack.c.bf16 %v2994, %v2994
        %v3027 = vpack.c.bf16 %v2995, %v2995
        %v3028 = vpack.c.bf16 %v2996, %v2996
        %v3029 = vpack.c.bf16 %v2997, %v2997
        %v3030 = vpack.c.bf16 %v2998, %v2998
        %v3031 = vpack.c.bf16 %v2999, %v2999
        %v3032 = vpack.c.bf16 %v3000, %v3000
        %v3033 = vpack.c.bf16 %v3001, %v3001
        %v3034 = vpack.c.bf16 %v3002, %v3002
        %v3035 = vpack.c.bf16 %v3003, %v3003
        %v3036 = vpack.c.bf16 %v3004, %v3004
        %v3037 = vpack.c.bf16 %v3005, %v3005
        %v3038 = vpack.c.bf16 %v3006, %v3006
        %v3039 = vpack.c.bf16 %v3007, %v3007
        %v3040 = vpack.c.bf16 %v3008, %v3008
        %v3041 = vpack.c.bf16 %v3009, %v3009
        %v3042 = vpack.c.bf16 %v3010, %v3010
        %v3043 = vpack.c.bf16 %v3011, %v3011
        %v3044 = vpack.c.bf16 %v3012, %v3012
        %v3045 = vld [vmem:[%s2820] sm:$0xff]
        %v3046 = vld [vmem:[%s2820 + $0x8] sm:$0xff]
        %v3047 = vld [vmem:[%s2820 + $0x18] sm:$0xff]
        %v3048 = vld [vmem:[%s2820 + $0x20] sm:$0xff]
        %v3049 = vld [vmem:[%s2820 + $0x30] sm:$0xff]
        %v3050 = vld [vmem:[%s2820 + $0x38] sm:$0xff]
        %v3051 = vld [vmem:[%s2820 + $0x48] sm:$0xff]
        %v3052 = vld [vmem:[%s2820 + $0x50] sm:$0xff]
        %v3053 = vld [vmem:[%s2820 + $0x60] sm:$0xff]
        %v3054 = vld [vmem:[%s2820 + $0x68] sm:$0xff]
        %v3055 = vld [vmem:[%s2820 + $0x78] sm:$0xff]
        %v3056 = vld [vmem:[%s2820 + $0x80] sm:$0xff]
        %v3057 = vld [vmem:[%s2820 + $0x90] sm:$0xff]
        %v3058 = vld [vmem:[%s2820 + $0x98] sm:$0xff]
        %v3059 = vld [vmem:[%s2820 + $0xa8] sm:$0xff]
        %v3060 = vld [vmem:[%s2820 + $0xb0] sm:$0xff]
        %v3061 = vld [vmem:[%s2820 + $0xc0] sm:$0xff]
        %v3062 = vld [vmem:[%s2820 + $0xc8] sm:$0xff]
        %v3063 = vld [vmem:[%s2820 + $0xd8] sm:$0xff]
        %v3064 = vld [vmem:[%s2820 + $0xe0] sm:$0xff]
        %v3065 = vld [vmem:[%s2820 + $0xf0] sm:$0xff]
        %v3066 = vld [vmem:[%s2820 + $0xf8] sm:$0xff]
        %v3067 = vld [vmem:[%s2820 + $0x108] sm:$0xff]
        %v3068 = vld [vmem:[%s2820 + $0x110] sm:$0xff]
        %v3069 = vld [vmem:[%s2820 + $0x120] sm:$0xff]
        %v3070 = vld [vmem:[%s2820 + $0x128] sm:$0xff]
        %v3071 = vld [vmem:[%s2820 + $0x138] sm:$0xff]
        %v3072 = vld [vmem:[%s2820 + $0x140] sm:$0xff]
        %v3073 = vld [vmem:[%s2820 + $0x150] sm:$0xff]
        %v3074 = vld [vmem:[%s2820 + $0x158] sm:$0xff]
        %v3075 = vld [vmem:[%s2820 + $0x168] sm:$0xff]
        %v3076 = vld [vmem:[%s2820 + $0x170] sm:$0xff]
        %v3077 = vpack.c.bf16 %v3045, %v3045
        %v3078 = vpack.c.bf16 %v3046, %v3046
        %v3079 = vpack.c.bf16 %v3047, %v3047
        %v3080 = vpack.c.bf16 %v3048, %v3048
        %v3081 = vpack.c.bf16 %v3049, %v3049
        %v3082 = vpack.c.bf16 %v3050, %v3050
        %v3083 = vpack.c.bf16 %v3051, %v3051
        %v3084 = vpack.c.bf16 %v3052, %v3052
        %v3085 = vpack.c.bf16 %v3053, %v3053
        %v3086 = vpack.c.bf16 %v3054, %v3054
        %v3087 = vpack.c.bf16 %v3055, %v3055
        %v3088 = vpack.c.bf16 %v3056, %v3056
        %v3089 = vpack.c.bf16 %v3057, %v3057
        %v3090 = vpack.c.bf16 %v3058, %v3058
        %v3091 = vpack.c.bf16 %v3059, %v3059
        %v3092 = vpack.c.bf16 %v3060, %v3060
        %v3093 = vpack.c.bf16 %v3061, %v3061
        %v3094 = vpack.c.bf16 %v3062, %v3062
        %v3095 = vpack.c.bf16 %v3063, %v3063
        %v3096 = vpack.c.bf16 %v3064, %v3064
        %v3097 = vpack.c.bf16 %v3065, %v3065
        %v3098 = vpack.c.bf16 %v3066, %v3066
        %v3099 = vpack.c.bf16 %v3067, %v3067
        %v3100 = vpack.c.bf16 %v3068, %v3068
        %v3101 = vpack.c.bf16 %v3069, %v3069
        %v3102 = vpack.c.bf16 %v3070, %v3070
        %v3103 = vpack.c.bf16 %v3071, %v3071
        %v3104 = vpack.c.bf16 %v3072, %v3072
        %v3105 = vpack.c.bf16 %v3073, %v3073
        %v3106 = vpack.c.bf16 %v3074, %v3074
        %v3107 = vpack.c.bf16 %v3075, %v3075
        %v3108 = vpack.c.bf16 %v3076, %v3076
        %v3109 = vld [vmem:[%s2820 + $0x1] sm:$0xff]
        %v3110 = vld [vmem:[%s2820 + $0x9] sm:$0xff]
        %v3111 = vld [vmem:[%s2820 + $0x19] sm:$0xff]
        %v3112 = vld [vmem:[%s2820 + $0x21] sm:$0xff]
        %v3113 = vld [vmem:[%s2820 + $0x31] sm:$0xff]
        %v3114 = vld [vmem:[%s2820 + $0x39] sm:$0xff]
        %v3115 = vld [vmem:[%s2820 + $0x49] sm:$0xff]
        %v3116 = vld [vmem:[%s2820 + $0x51] sm:$0xff]
        %v3117 = vld [vmem:[%s2820 + $0x61] sm:$0xff]
        %v3118 = vld [vmem:[%s2820 + $0x69] sm:$0xff]
        %v3119 = vld [vmem:[%s2820 + $0x79] sm:$0xff]
        %v3120 = vld [vmem:[%s2820 + $0x81] sm:$0xff]
        %v3121 = vld [vmem:[%s2820 + $0x91] sm:$0xff]
        %v3122 = vld [vmem:[%s2820 + $0x99] sm:$0xff]
        %v3123 = vld [vmem:[%s2820 + $0xa9] sm:$0xff]
        %v3124 = vld [vmem:[%s2820 + $0xb1] sm:$0xff]
        %v3125 = vld [vmem:[%s2820 + $0xc1] sm:$0xff]
        %v3126 = vld [vmem:[%s2820 + $0xc9] sm:$0xff]
        %v3127 = vld [vmem:[%s2820 + $0xd9] sm:$0xff]
        %v3128 = vld [vmem:[%s2820 + $0xe1] sm:$0xff]
        %v3129 = vld [vmem:[%s2820 + $0xf1] sm:$0xff]
        %v3130 = vld [vmem:[%s2820 + $0xf9] sm:$0xff]
        %v3131 = vld [vmem:[%s2820 + $0x109] sm:$0xff]
        %v3132 = vld [vmem:[%s2820 + $0x111] sm:$0xff]
        %v3133 = vld [vmem:[%s2820 + $0x121] sm:$0xff]
        %v3134 = vld [vmem:[%s2820 + $0x129] sm:$0xff]
        %v3135 = vld [vmem:[%s2820 + $0x139] sm:$0xff]
        %v3136 = vld [vmem:[%s2820 + $0x141] sm:$0xff]
        %v3137 = vld [vmem:[%s2820 + $0x151] sm:$0xff]
        %v3138 = vld [vmem:[%s2820 + $0x159] sm:$0xff]
        %v3139 = vld [vmem:[%s2820 + $0x169] sm:$0xff]
        %v3140 = vld [vmem:[%s2820 + $0x171] sm:$0xff]
        %v3141 = vpack.c.bf16 %v3109, %v3109
        %v3142 = vpack.c.bf16 %v3110, %v3110
        %v3143 = vpack.c.bf16 %v3111, %v3111
        %v3144 = vpack.c.bf16 %v3112, %v3112
        %v3145 = vpack.c.bf16 %v3113, %v3113
        %v3146 = vpack.c.bf16 %v3114, %v3114
        %v3147 = vpack.c.bf16 %v3115, %v3115
        %v3148 = vpack.c.bf16 %v3116, %v3116
        %v3149 = vpack.c.bf16 %v3117, %v3117
        %v3150 = vpack.c.bf16 %v3118, %v3118
        %v3151 = vpack.c.bf16 %v3119, %v3119
        %v3152 = vpack.c.bf16 %v3120, %v3120
        %v3153 = vpack.c.bf16 %v3121, %v3121
        %v3154 = vpack.c.bf16 %v3122, %v3122
        %v3155 = vpack.c.bf16 %v3123, %v3123
        %v3156 = vpack.c.bf16 %v3124, %v3124
        %v3157 = vpack.c.bf16 %v3125, %v3125
        %v3158 = vpack.c.bf16 %v3126, %v3126
        %v3159 = vpack.c.bf16 %v3127, %v3127
        %v3160 = vpack.c.bf16 %v3128, %v3128
        %v3161 = vpack.c.bf16 %v3129, %v3129
        %v3162 = vpack.c.bf16 %v3130, %v3130
        %v3163 = vpack.c.bf16 %v3131, %v3131
        %v3164 = vpack.c.bf16 %v3132, %v3132
        %v3165 = vpack.c.bf16 %v3133, %v3133
        %v3166 = vpack.c.bf16 %v3134, %v3134
        %v3167 = vpack.c.bf16 %v3135, %v3135
        %v3168 = vpack.c.bf16 %v3136, %v3136
        %v3169 = vpack.c.bf16 %v3137, %v3137
        %v3170 = vpack.c.bf16 %v3138, %v3138
        %v3171 = vpack.c.bf16 %v3139, %v3139
        %v3172 = vpack.c.bf16 %v3140, %v3140
        %v3173 = vld [vmem:[%s2820 + $0x2] sm:$0xff]
        %v3174 = vld [vmem:[%s2820 + $0xa] sm:$0xff]
        %v3175 = vld [vmem:[%s2820 + $0x1a] sm:$0xff]
        %v3176 = vld [vmem:[%s2820 + $0x22] sm:$0xff]
        %v3177 = vld [vmem:[%s2820 + $0x32] sm:$0xff]
        %v3178 = vld [vmem:[%s2820 + $0x3a] sm:$0xff]
        %v3179 = vld [vmem:[%s2820 + $0x4a] sm:$0xff]
        %v3180 = vld [vmem:[%s2820 + $0x52] sm:$0xff]
        %v3181 = vld [vmem:[%s2820 + $0x62] sm:$0xff]
        %v3182 = vld [vmem:[%s2820 + $0x6a] sm:$0xff]
        %v3183 = vld [vmem:[%s2820 + $0x7a] sm:$0xff]
        %v3184 = vld [vmem:[%s2820 + $0x82] sm:$0xff]
        %v3185 = vld [vmem:[%s2820 + $0x92] sm:$0xff]
        %v3186 = vld [vmem:[%s2820 + $0x9a] sm:$0xff]
        %v3187 = vld [vmem:[%s2820 + $0xaa] sm:$0xff]
        %v3188 = vld [vmem:[%s2820 + $0xb2] sm:$0xff]
        %v3189 = vld [vmem:[%s2820 + $0xc2] sm:$0xff]
        %v3190 = vld [vmem:[%s2820 + $0xca] sm:$0xff]
        %v3191 = vld [vmem:[%s2820 + $0xda] sm:$0xff]
        %v3192 = vld [vmem:[%s2820 + $0xe2] sm:$0xff]
        %v3193 = vld [vmem:[%s2820 + $0xf2] sm:$0xff]
        %v3194 = vld [vmem:[%s2820 + $0xfa] sm:$0xff]
        %v3195 = vld [vmem:[%s2820 + $0x10a] sm:$0xff]
        %v3196 = vld [vmem:[%s2820 + $0x112] sm:$0xff]
        %v3197 = vld [vmem:[%s2820 + $0x122] sm:$0xff]
        %v3198 = vld [vmem:[%s2820 + $0x12a] sm:$0xff]
        %v3199 = vld [vmem:[%s2820 + $0x13a] sm:$0xff]
        %v3200 = vld [vmem:[%s2820 + $0x142] sm:$0xff]
        %v3201 = vld [vmem:[%s2820 + $0x152] sm:$0xff]
        %v3202 = vld [vmem:[%s2820 + $0x15a] sm:$0xff]
        %v3203 = vld [vmem:[%s2820 + $0x16a] sm:$0xff]
        %v3204 = vld [vmem:[%s2820 + $0x172] sm:$0xff]
        %v3205 = vpack.c.bf16 %v3173, %v3173
        %v3206 = vpack.c.bf16 %v3174, %v3174
        %v3207 = vpack.c.bf16 %v3175, %v3175
        %v3208 = vpack.c.bf16 %v3176, %v3176
        %v3209 = vpack.c.bf16 %v3177, %v3177
        %v3210 = vpack.c.bf16 %v3178, %v3178
        %v3211 = vpack.c.bf16 %v3179, %v3179
        %v3212 = vpack.c.bf16 %v3180, %v3180
        %v3213 = vpack.c.bf16 %v3181, %v3181
        %v3214 = vpack.c.bf16 %v3182, %v3182
        %v3215 = vpack.c.bf16 %v3183, %v3183
        %v3216 = vpack.c.bf16 %v3184, %v3184
        %v3217 = vpack.c.bf16 %v3185, %v3185
        %v3218 = vpack.c.bf16 %v3186, %v3186
        %v3219 = vpack.c.bf16 %v3187, %v3187
        %v3220 = vpack.c.bf16 %v3188, %v3188
        %v3221 = vpack.c.bf16 %v3189, %v3189
        %v3222 = vpack.c.bf16 %v3190, %v3190
        %v3223 = vpack.c.bf16 %v3191, %v3191
        %v3224 = vpack.c.bf16 %v3192, %v3192
        %v3225 = vpack.c.bf16 %v3193, %v3193
        %v3226 = vpack.c.bf16 %v3194, %v3194
        %v3227 = vpack.c.bf16 %v3195, %v3195
        %v3228 = vpack.c.bf16 %v3196, %v3196
        %v3229 = vpack.c.bf16 %v3197, %v3197
        %v3230 = vpack.c.bf16 %v3198, %v3198
        %v3231 = vpack.c.bf16 %v3199, %v3199
        %v3232 = vpack.c.bf16 %v3200, %v3200
        %v3233 = vpack.c.bf16 %v3201, %v3201
        %v3234 = vpack.c.bf16 %v3202, %v3202
        %v3235 = vpack.c.bf16 %v3203, %v3203
        %v3236 = vpack.c.bf16 %v3204, %v3204
        %s3237 = scalar_lea.vmem [#allocation3], 48
        %v3238 = vld [vmem:[%s3237] sm:$0xff]
        %v3239 = vld [vmem:[%s3237 + $0x8] sm:$0xff]
        %v3240 = vld [vmem:[%s3237 + $0x18] sm:$0xff]
        %v3241 = vld [vmem:[%s3237 + $0x20] sm:$0xff]
        %v3242 = vld [vmem:[%s3237 + $0x30] sm:$0xff]
        %v3243 = vld [vmem:[%s3237 + $0x38] sm:$0xff]
        %v3244 = vld [vmem:[%s3237 + $0x48] sm:$0xff]
        %v3245 = vld [vmem:[%s3237 + $0x50] sm:$0xff]
        %v3246 = vld [vmem:[%s3237 + $0x60] sm:$0xff]
        %v3247 = vld [vmem:[%s3237 + $0x68] sm:$0xff]
        %v3248 = vld [vmem:[%s3237 + $0x78] sm:$0xff]
        %v3249 = vld [vmem:[%s3237 + $0x80] sm:$0xff]
        %v3250 = vld [vmem:[%s3237 + $0x90] sm:$0xff]
        %v3251 = vld [vmem:[%s3237 + $0x98] sm:$0xff]
        %v3252 = vld [vmem:[%s3237 + $0xa8] sm:$0xff]
        %v3253 = vld [vmem:[%s3237 + $0xb0] sm:$0xff]
        %v3254 = vld [vmem:[%s3237 + $0xc0] sm:$0xff]
        %v3255 = vld [vmem:[%s3237 + $0xc8] sm:$0xff]
        %v3256 = vld [vmem:[%s3237 + $0xd8] sm:$0xff]
        %v3257 = vld [vmem:[%s3237 + $0xe0] sm:$0xff]
        %v3258 = vld [vmem:[%s3237 + $0xf0] sm:$0xff]
        %v3259 = vld [vmem:[%s3237 + $0xf8] sm:$0xff]
        %v3260 = vld [vmem:[%s3237 + $0x108] sm:$0xff]
        %v3261 = vld [vmem:[%s3237 + $0x110] sm:$0xff]
        %v3262 = vld [vmem:[%s3237 + $0x120] sm:$0xff]
        %v3263 = vld [vmem:[%s3237 + $0x128] sm:$0xff]
        %v3264 = vld [vmem:[%s3237 + $0x138] sm:$0xff]
        %v3265 = vld [vmem:[%s3237 + $0x140] sm:$0xff]
        %v3266 = vld [vmem:[%s3237 + $0x150] sm:$0xff]
        %v3267 = vld [vmem:[%s3237 + $0x158] sm:$0xff]
        %v3268 = vld [vmem:[%s3237 + $0x168] sm:$0xff]
        %v3269 = vld [vmem:[%s3237 + $0x170] sm:$0xff]
        %v3270 = vpack.c.bf16 %v3238, %v3238
        %v3271 = vpack.c.bf16 %v3239, %v3239
        %v3272 = vpack.c.bf16 %v3240, %v3240
        %v3273 = vpack.c.bf16 %v3241, %v3241
        %v3274 = vpack.c.bf16 %v3242, %v3242
        %v3275 = vpack.c.bf16 %v3243, %v3243
        %v3276 = vpack.c.bf16 %v3244, %v3244
        %v3277 = vpack.c.bf16 %v3245, %v3245
        %v3278 = vpack.c.bf16 %v3246, %v3246
        %v3279 = vpack.c.bf16 %v3247, %v3247
        %v3280 = vpack.c.bf16 %v3248, %v3248
        %v3281 = vpack.c.bf16 %v3249, %v3249
        %v3282 = vpack.c.bf16 %v3250, %v3250
        %v3283 = vpack.c.bf16 %v3251, %v3251
        %v3284 = vpack.c.bf16 %v3252, %v3252
        %v3285 = vpack.c.bf16 %v3253, %v3253
        %v3286 = vpack.c.bf16 %v3254, %v3254
        %v3287 = vpack.c.bf16 %v3255, %v3255
        %v3288 = vpack.c.bf16 %v3256, %v3256
        %v3289 = vpack.c.bf16 %v3257, %v3257
        %v3290 = vpack.c.bf16 %v3258, %v3258
        %v3291 = vpack.c.bf16 %v3259, %v3259
        %v3292 = vpack.c.bf16 %v3260, %v3260
        %v3293 = vpack.c.bf16 %v3261, %v3261
        %v3294 = vpack.c.bf16 %v3262, %v3262
        %v3295 = vpack.c.bf16 %v3263, %v3263
        %v3296 = vpack.c.bf16 %v3264, %v3264
        %v3297 = vpack.c.bf16 %v3265, %v3265
        %v3298 = vpack.c.bf16 %v3266, %v3266
        %v3299 = vpack.c.bf16 %v3267, %v3267
        %v3300 = vpack.c.bf16 %v3268, %v3268
        %v3301 = vpack.c.bf16 %v3269, %v3269
        %v3302 = vld [vmem:[%s3237 + $0x1] sm:$0xff]
        %v3303 = vld [vmem:[%s3237 + $0x9] sm:$0xff]
        %v3304 = vld [vmem:[%s3237 + $0x19] sm:$0xff]
        %v3305 = vld [vmem:[%s3237 + $0x21] sm:$0xff]
        %v3306 = vld [vmem:[%s3237 + $0x31] sm:$0xff]
        %v3307 = vld [vmem:[%s3237 + $0x39] sm:$0xff]
        %v3308 = vld [vmem:[%s3237 + $0x49] sm:$0xff]
        %v3309 = vld [vmem:[%s3237 + $0x51] sm:$0xff]
        %v3310 = vld [vmem:[%s3237 + $0x61] sm:$0xff]
        %v3311 = vld [vmem:[%s3237 + $0x69] sm:$0xff]
        %v3312 = vld [vmem:[%s3237 + $0x79] sm:$0xff]
        %v3313 = vld [vmem:[%s3237 + $0x81] sm:$0xff]
        %v3314 = vld [vmem:[%s3237 + $0x91] sm:$0xff]
        %v3315 = vld [vmem:[%s3237 + $0x99] sm:$0xff]
        %v3316 = vld [vmem:[%s3237 + $0xa9] sm:$0xff]
        %v3317 = vld [vmem:[%s3237 + $0xb1] sm:$0xff]
        %v3318 = vld [vmem:[%s3237 + $0xc1] sm:$0xff]
        %v3319 = vld [vmem:[%s3237 + $0xc9] sm:$0xff]
        %v3320 = vld [vmem:[%s3237 + $0xd9] sm:$0xff]
        %v3321 = vld [vmem:[%s3237 + $0xe1] sm:$0xff]
        %v3322 = vld [vmem:[%s3237 + $0xf1] sm:$0xff]
        %v3323 = vld [vmem:[%s3237 + $0xf9] sm:$0xff]
        %v3324 = vld [vmem:[%s3237 + $0x109] sm:$0xff]
        %v3325 = vld [vmem:[%s3237 + $0x111] sm:$0xff]
        %v3326 = vld [vmem:[%s3237 + $0x121] sm:$0xff]
        %v3327 = vld [vmem:[%s3237 + $0x129] sm:$0xff]
        %v3328 = vld [vmem:[%s3237 + $0x139] sm:$0xff]
        %v3329 = vld [vmem:[%s3237 + $0x141] sm:$0xff]
        %v3330 = vld [vmem:[%s3237 + $0x151] sm:$0xff]
        %v3331 = vld [vmem:[%s3237 + $0x159] sm:$0xff]
        %v3332 = vld [vmem:[%s3237 + $0x169] sm:$0xff]
        %v3333 = vld [vmem:[%s3237 + $0x171] sm:$0xff]
        %v3334 = vpack.c.bf16 %v3302, %v3302
        %v3335 = vpack.c.bf16 %v3303, %v3303
        %v3336 = vpack.c.bf16 %v3304, %v3304
        %v3337 = vpack.c.bf16 %v3305, %v3305
        %v3338 = vpack.c.bf16 %v3306, %v3306
        %v3339 = vpack.c.bf16 %v3307, %v3307
        %v3340 = vpack.c.bf16 %v3308, %v3308
        %v3341 = vpack.c.bf16 %v3309, %v3309
        %v3342 = vpack.c.bf16 %v3310, %v3310
        %v3343 = vpack.c.bf16 %v3311, %v3311
        %v3344 = vpack.c.bf16 %v3312, %v3312
        %v3345 = vpack.c.bf16 %v3313, %v3313
        %v3346 = vpack.c.bf16 %v3314, %v3314
        %v3347 = vpack.c.bf16 %v3315, %v3315
        %v3348 = vpack.c.bf16 %v3316, %v3316
        %v3349 = vpack.c.bf16 %v3317, %v3317
        %v3350 = vpack.c.bf16 %v3318, %v3318
        %v3351 = vpack.c.bf16 %v3319, %v3319
        %v3352 = vpack.c.bf16 %v3320, %v3320
        %v3353 = vpack.c.bf16 %v3321, %v3321
        %v3354 = vpack.c.bf16 %v3322, %v3322
        %v3355 = vpack.c.bf16 %v3323, %v3323
        %v3356 = vpack.c.bf16 %v3324, %v3324
        %v3357 = vpack.c.bf16 %v3325, %v3325
        %v3358 = vpack.c.bf16 %v3326, %v3326
        %v3359 = vpack.c.bf16 %v3327, %v3327
        %v3360 = vpack.c.bf16 %v3328, %v3328
        %v3361 = vpack.c.bf16 %v3329, %v3329
        %v3362 = vpack.c.bf16 %v3330, %v3330
        %v3363 = vpack.c.bf16 %v3331, %v3331
        %v3364 = vpack.c.bf16 %v3332, %v3332
        %v3365 = vpack.c.bf16 %v3333, %v3333
        %v3366 = vld [vmem:[%s3237 + $0x2] sm:$0xff]
        %v3367 = vld [vmem:[%s3237 + $0xa] sm:$0xff]
        %v3368 = vld [vmem:[%s3237 + $0x1a] sm:$0xff]
        %v3369 = vld [vmem:[%s3237 + $0x22] sm:$0xff]
        %v3370 = vld [vmem:[%s3237 + $0x32] sm:$0xff]
        %v3371 = vld [vmem:[%s3237 + $0x3a] sm:$0xff]
        %v3372 = vld [vmem:[%s3237 + $0x4a] sm:$0xff]
        %v3373 = vld [vmem:[%s3237 + $0x52] sm:$0xff]
        %v3374 = vld [vmem:[%s3237 + $0x62] sm:$0xff]
        %v3375 = vld [vmem:[%s3237 + $0x6a] sm:$0xff]
        %v3376 = vld [vmem:[%s3237 + $0x7a] sm:$0xff]
        %v3377 = vld [vmem:[%s3237 + $0x82] sm:$0xff]
        %v3378 = vld [vmem:[%s3237 + $0x92] sm:$0xff]
        %v3379 = vld [vmem:[%s3237 + $0x9a] sm:$0xff]
        %v3380 = vld [vmem:[%s3237 + $0xaa] sm:$0xff]
        %v3381 = vld [vmem:[%s3237 + $0xb2] sm:$0xff]
        %v3382 = vld [vmem:[%s3237 + $0xc2] sm:$0xff]
        %v3383 = vld [vmem:[%s3237 + $0xca] sm:$0xff]
        %v3384 = vld [vmem:[%s3237 + $0xda] sm:$0xff]
        %v3385 = vld [vmem:[%s3237 + $0xe2] sm:$0xff]
        %v3386 = vld [vmem:[%s3237 + $0xf2] sm:$0xff]
        %v3387 = vld [vmem:[%s3237 + $0xfa] sm:$0xff]
        %v3388 = vld [vmem:[%s3237 + $0x10a] sm:$0xff]
        %v3389 = vld [vmem:[%s3237 + $0x112] sm:$0xff]
        %v3390 = vld [vmem:[%s3237 + $0x122] sm:$0xff]
        %v3391 = vld [vmem:[%s3237 + $0x12a] sm:$0xff]
        %v3392 = vld [vmem:[%s3237 + $0x13a] sm:$0xff]
        %v3393 = vld [vmem:[%s3237 + $0x142] sm:$0xff]
        %v3394 = vld [vmem:[%s3237 + $0x152] sm:$0xff]
        %v3395 = vld [vmem:[%s3237 + $0x15a] sm:$0xff]
        %v3396 = vld [vmem:[%s3237 + $0x16a] sm:$0xff]
        %v3397 = vld [vmem:[%s3237 + $0x172] sm:$0xff]
        %v3398 = vpack.c.bf16 %v3366, %v3366
        %v3399 = vpack.c.bf16 %v3367, %v3367
        %v3400 = vpack.c.bf16 %v3368, %v3368
        %v3401 = vpack.c.bf16 %v3369, %v3369
        %v3402 = vpack.c.bf16 %v3370, %v3370
        %v3403 = vpack.c.bf16 %v3371, %v3371
        %v3404 = vpack.c.bf16 %v3372, %v3372
        %v3405 = vpack.c.bf16 %v3373, %v3373
        %v3406 = vpack.c.bf16 %v3374, %v3374
        %v3407 = vpack.c.bf16 %v3375, %v3375
        %v3408 = vpack.c.bf16 %v3376, %v3376
        %v3409 = vpack.c.bf16 %v3377, %v3377
        %v3410 = vpack.c.bf16 %v3378, %v3378
        %v3411 = vpack.c.bf16 %v3379, %v3379
        %v3412 = vpack.c.bf16 %v3380, %v3380
        %v3413 = vpack.c.bf16 %v3381, %v3381
        %v3414 = vpack.c.bf16 %v3382, %v3382
        %v3415 = vpack.c.bf16 %v3383, %v3383
        %v3416 = vpack.c.bf16 %v3384, %v3384
        %v3417 = vpack.c.bf16 %v3385, %v3385
        %v3418 = vpack.c.bf16 %v3386, %v3386
        %v3419 = vpack.c.bf16 %v3387, %v3387
        %v3420 = vpack.c.bf16 %v3388, %v3388
        %v3421 = vpack.c.bf16 %v3389, %v3389
        %v3422 = vpack.c.bf16 %v3390, %v3390
        %v3423 = vpack.c.bf16 %v3391, %v3391
        %v3424 = vpack.c.bf16 %v3392, %v3392
        %v3425 = vpack.c.bf16 %v3393, %v3393
        %v3426 = vpack.c.bf16 %v3394, %v3394
        %v3427 = vpack.c.bf16 %v3395, %v3395
        %v3428 = vpack.c.bf16 %v3396, %v3396
        %v3429 = vpack.c.bf16 %v3397, %v3397
        %v3462 = vunpack.c.l.b16 %v2885
        %v3463 = vunpack.c.l.b16 %v2886
        %v3464 = vunpack.c.l.b16 %v2887
        %v3465 = vunpack.c.l.b16 %v2888
        %v3466 = vunpack.c.l.b16 %v2889
        %v3467 = vunpack.c.l.b16 %v2890
        %v3468 = vunpack.c.l.b16 %v2891
        %v3469 = vunpack.c.l.b16 %v2892
        %v3470 = vunpack.c.l.b16 %v2893
        %v3471 = vunpack.c.l.b16 %v2894
        %v3472 = vunpack.c.l.b16 %v2895
        %v3473 = vunpack.c.l.b16 %v2896
        %v3474 = vunpack.c.l.b16 %v2897
        %v3475 = vunpack.c.l.b16 %v2898
        %v3476 = vunpack.c.l.b16 %v2899
        %v3477 = vunpack.c.l.b16 %v2900
        %v3478 = vunpack.c.l.b16 %v2901
        %v3479 = vunpack.c.l.b16 %v2902
        %v3480 = vunpack.c.l.b16 %v2903
        %v3481 = vunpack.c.l.b16 %v2904
        %v3482 = vunpack.c.l.b16 %v2905
        %v3483 = vunpack.c.l.b16 %v2906
        %v3484 = vunpack.c.l.b16 %v2907
        %v3485 = vunpack.c.l.b16 %v2908
        %v3486 = vunpack.c.l.b16 %v2909
        %v3487 = vunpack.c.l.b16 %v2910
        %v3488 = vunpack.c.l.b16 %v2911
        %v3489 = vunpack.c.l.b16 %v2912
        %v3490 = vunpack.c.l.b16 %v2913
        %v3491 = vunpack.c.l.b16 %v2914
        %v3492 = vunpack.c.l.b16 %v2915
        %v3493 = vunpack.c.l.b16 %v2916
        %v3494 = vpack.c.b16 %v3463, %v3462
        %v3495 = vpack.c.b16 %v3465, %v3464
        %v3496 = vpack.c.b16 %v3467, %v3466
        %v3497 = vpack.c.b16 %v3469, %v3468
        %v3498 = vpack.c.b16 %v3471, %v3470
        %v3499 = vpack.c.b16 %v3473, %v3472
        %v3500 = vpack.c.b16 %v3475, %v3474
        %v3501 = vpack.c.b16 %v3477, %v3476
        %v3502 = vpack.c.b16 %v3479, %v3478
        %v3503 = vpack.c.b16 %v3481, %v3480
        %v3504 = vpack.c.b16 %v3483, %v3482
        %v3505 = vpack.c.b16 %v3485, %v3484
        %v3506 = vpack.c.b16 %v3487, %v3486
        %v3507 = vpack.c.b16 %v3489, %v3488
        %v3508 = vpack.c.b16 %v3491, %v3490
        %v3509 = vpack.c.b16 %v3493, %v3492
        %v3542 = vunpack.c.l.b16 %v2949
        %v3543 = vunpack.c.l.b16 %v2950
        %v3544 = vunpack.c.l.b16 %v2951
        %v3545 = vunpack.c.l.b16 %v2952
        %v3546 = vunpack.c.l.b16 %v2953
        %v3547 = vunpack.c.l.b16 %v2954
        %v3548 = vunpack.c.l.b16 %v2955
        %v3549 = vunpack.c.l.b16 %v2956
        %v3550 = vunpack.c.l.b16 %v2957
        %v3551 = vunpack.c.l.b16 %v2958
        %v3552 = vunpack.c.l.b16 %v2959
        %v3553 = vunpack.c.l.b16 %v2960
        %v3554 = vunpack.c.l.b16 %v2961
        %v3555 = vunpack.c.l.b16 %v2962
        %v3556 = vunpack.c.l.b16 %v2963
        %v3557 = vunpack.c.l.b16 %v2964
        %v3558 = vunpack.c.l.b16 %v2965
        %v3559 = vunpack.c.l.b16 %v2966
        %v3560 = vunpack.c.l.b16 %v2967
        %v3561 = vunpack.c.l.b16 %v2968
        %v3562 = vunpack.c.l.b16 %v2969
        %v3563 = vunpack.c.l.b16 %v2970
        %v3564 = vunpack.c.l.b16 %v2971
        %v3565 = vunpack.c.l.b16 %v2972
        %v3566 = vunpack.c.l.b16 %v2973
        %v3567 = vunpack.c.l.b16 %v2974
        %v3568 = vunpack.c.l.b16 %v2975
        %v3569 = vunpack.c.l.b16 %v2976
        %v3570 = vunpack.c.l.b16 %v2977
        %v3571 = vunpack.c.l.b16 %v2978
        %v3572 = vunpack.c.l.b16 %v2979
        %v3573 = vunpack.c.l.b16 %v2980
        %v3574 = vpack.c.b16 %v3543, %v3542
        %v3575 = vpack.c.b16 %v3545, %v3544
        %v3576 = vpack.c.b16 %v3547, %v3546
        %v3577 = vpack.c.b16 %v3549, %v3548
        %v3578 = vpack.c.b16 %v3551, %v3550
        %v3579 = vpack.c.b16 %v3553, %v3552
        %v3580 = vpack.c.b16 %v3555, %v3554
        %v3581 = vpack.c.b16 %v3557, %v3556
        %v3582 = vpack.c.b16 %v3559, %v3558
        %v3583 = vpack.c.b16 %v3561, %v3560
        %v3584 = vpack.c.b16 %v3563, %v3562
        %v3585 = vpack.c.b16 %v3565, %v3564
        %v3586 = vpack.c.b16 %v3567, %v3566
        %v3587 = vpack.c.b16 %v3569, %v3568
        %v3588 = vpack.c.b16 %v3571, %v3570
        %v3589 = vpack.c.b16 %v3573, %v3572
        %3590 = vrot.lane.b32.xlu0 %v3574, 8
        %v3591 = vpop.permute.xlu0 %3590
        %3592 = vrot.lane.b32.xlu0 %v3575, 8
        %v3593 = vpop.permute.xlu0 %3592
        %3594 = vrot.lane.b32.xlu0 %v3576, 8
        %v3595 = vpop.permute.xlu0 %3594
        %3596 = vrot.lane.b32.xlu0 %v3577, 8
        %v3597 = vpop.permute.xlu0 %3596
        %3598 = vrot.lane.b32.xlu0 %v3578, 8
        %v3599 = vpop.permute.xlu0 %3598
        %3600 = vrot.lane.b32.xlu0 %v3579, 8
        %v3601 = vpop.permute.xlu0 %3600
        %3602 = vrot.lane.b32.xlu0 %v3580, 8
        %v3603 = vpop.permute.xlu0 %3602
        %3604 = vrot.lane.b32.xlu0 %v3581, 8
        %v3605 = vpop.permute.xlu0 %3604
        %3606 = vrot.lane.b32.xlu0 %v3582, 8
        %v3607 = vpop.permute.xlu0 %3606
        %3608 = vrot.lane.b32.xlu0 %v3583, 8
        %v3609 = vpop.permute.xlu0 %3608
        %3610 = vrot.lane.b32.xlu0 %v3584, 8
        %v3611 = vpop.permute.xlu0 %3610
        %3612 = vrot.lane.b32.xlu0 %v3585, 8
        %v3613 = vpop.permute.xlu0 %3612
        %3614 = vrot.lane.b32.xlu0 %v3586, 8
        %v3615 = vpop.permute.xlu0 %3614
        %3616 = vrot.lane.b32.xlu0 %v3587, 8
        %v3617 = vpop.permute.xlu0 %3616
        %3618 = vrot.lane.b32.xlu0 %v3588, 8
        %v3619 = vpop.permute.xlu0 %3618
        %3620 = vrot.lane.b32.xlu0 %v3589, 8
        %v3621 = vpop.permute.xlu0 %3620
        %v3654 = vunpack.c.l.b16 %v3013
        %v3655 = vunpack.c.l.b16 %v3014
        %v3656 = vunpack.c.l.b16 %v3015
        %v3657 = vunpack.c.l.b16 %v3016
        %v3658 = vunpack.c.l.b16 %v3017
        %v3659 = vunpack.c.l.b16 %v3018
        %v3660 = vunpack.c.l.b16 %v3019
        %v3661 = vunpack.c.l.b16 %v3020
        %v3662 = vunpack.c.l.b16 %v3021
        %v3663 = vunpack.c.l.b16 %v3022
        %v3664 = vunpack.c.l.b16 %v3023
        %v3665 = vunpack.c.l.b16 %v3024
        %v3666 = vunpack.c.l.b16 %v3025
        %v3667 = vunpack.c.l.b16 %v3026
        %v3668 = vunpack.c.l.b16 %v3027
        %v3669 = vunpack.c.l.b16 %v3028
        %v3670 = vunpack.c.l.b16 %v3029
        %v3671 = vunpack.c.l.b16 %v3030
        %v3672 = vunpack.c.l.b16 %v3031
        %v3673 = vunpack.c.l.b16 %v3032
        %v3674 = vunpack.c.l.b16 %v3033
        %v3675 = vunpack.c.l.b16 %v3034
        %v3676 = vunpack.c.l.b16 %v3035
        %v3677 = vunpack.c.l.b16 %v3036
        %v3678 = vunpack.c.l.b16 %v3037
        %v3679 = vunpack.c.l.b16 %v3038
        %v3680 = vunpack.c.l.b16 %v3039
        %v3681 = vunpack.c.l.b16 %v3040
        %v3682 = vunpack.c.l.b16 %v3041
        %v3683 = vunpack.c.l.b16 %v3042
        %v3684 = vunpack.c.l.b16 %v3043
        %v3685 = vunpack.c.l.b16 %v3044
        %v3686 = vpack.c.b16 %v3655, %v3654
        %v3687 = vpack.c.b16 %v3657, %v3656
        %v3688 = vpack.c.b16 %v3659, %v3658
        %v3689 = vpack.c.b16 %v3661, %v3660
        %v3690 = vpack.c.b16 %v3663, %v3662
        %v3691 = vpack.c.b16 %v3665, %v3664
        %v3692 = vpack.c.b16 %v3667, %v3666
        %v3693 = vpack.c.b16 %v3669, %v3668
        %v3694 = vpack.c.b16 %v3671, %v3670
        %v3695 = vpack.c.b16 %v3673, %v3672
        %v3696 = vpack.c.b16 %v3675, %v3674
        %v3697 = vpack.c.b16 %v3677, %v3676
        %v3698 = vpack.c.b16 %v3679, %v3678
        %v3699 = vpack.c.b16 %v3681, %v3680
        %v3700 = vpack.c.b16 %v3683, %v3682
        %v3701 = vpack.c.b16 %v3685, %v3684
        %3702 = vrot.lane.b32.xlu0 %v3686, 16
        %v3703 = vpop.permute.xlu0 %3702
        %3704 = vrot.lane.b32.xlu0 %v3687, 16
        %v3705 = vpop.permute.xlu0 %3704
        %3706 = vrot.lane.b32.xlu0 %v3688, 16
        %v3707 = vpop.permute.xlu0 %3706
        %3708 = vrot.lane.b32.xlu0 %v3689, 16
        %v3709 = vpop.permute.xlu0 %3708
        %3710 = vrot.lane.b32.xlu0 %v3690, 16
        %v3711 = vpop.permute.xlu0 %3710
        %3712 = vrot.lane.b32.xlu0 %v3691, 16
        %v3713 = vpop.permute.xlu0 %3712
        %3714 = vrot.lane.b32.xlu0 %v3692, 16
        %v3715 = vpop.permute.xlu0 %3714
        %3716 = vrot.lane.b32.xlu0 %v3693, 16
        %v3717 = vpop.permute.xlu0 %3716
        %3718 = vrot.lane.b32.xlu0 %v3694, 16
        %v3719 = vpop.permute.xlu0 %3718
        %3720 = vrot.lane.b32.xlu0 %v3695, 16
        %v3721 = vpop.permute.xlu0 %3720
        %3722 = vrot.lane.b32.xlu0 %v3696, 16
        %v3723 = vpop.permute.xlu0 %3722
        %3724 = vrot.lane.b32.xlu0 %v3697, 16
        %v3725 = vpop.permute.xlu0 %3724
        %3726 = vrot.lane.b32.xlu0 %v3698, 16
        %v3727 = vpop.permute.xlu0 %3726
        %3728 = vrot.lane.b32.xlu0 %v3699, 16
        %v3729 = vpop.permute.xlu0 %3728
        %3730 = vrot.lane.b32.xlu0 %v3700, 16
        %v3731 = vpop.permute.xlu0 %3730
        %3732 = vrot.lane.b32.xlu0 %v3701, 16
        %v3733 = vpop.permute.xlu0 %3732
        %v3766 = vunpack.c.l.b16 %v3077
        %v3767 = vunpack.c.l.b16 %v3078
        %v3768 = vunpack.c.l.b16 %v3079
        %v3769 = vunpack.c.l.b16 %v3080
        %v3770 = vunpack.c.l.b16 %v3081
        %v3771 = vunpack.c.l.b16 %v3082
        %v3772 = vunpack.c.l.b16 %v3083
        %v3773 = vunpack.c.l.b16 %v3084
        %v3774 = vunpack.c.l.b16 %v3085
        %v3775 = vunpack.c.l.b16 %v3086
        %v3776 = vunpack.c.l.b16 %v3087
        %v3777 = vunpack.c.l.b16 %v3088
        %v3778 = vunpack.c.l.b16 %v3089
        %v3779 = vunpack.c.l.b16 %v3090
        %v3780 = vunpack.c.l.b16 %v3091
        %v3781 = vunpack.c.l.b16 %v3092
        %v3782 = vunpack.c.l.b16 %v3093
        %v3783 = vunpack.c.l.b16 %v3094
        %v3784 = vunpack.c.l.b16 %v3095
        %v3785 = vunpack.c.l.b16 %v3096
        %v3786 = vunpack.c.l.b16 %v3097
        %v3787 = vunpack.c.l.b16 %v3098
        %v3788 = vunpack.c.l.b16 %v3099
        %v3789 = vunpack.c.l.b16 %v3100
        %v3790 = vunpack.c.l.b16 %v3101
        %v3791 = vunpack.c.l.b16 %v3102
        %v3792 = vunpack.c.l.b16 %v3103
        %v3793 = vunpack.c.l.b16 %v3104
        %v3794 = vunpack.c.l.b16 %v3105
        %v3795 = vunpack.c.l.b16 %v3106
        %v3796 = vunpack.c.l.b16 %v3107
        %v3797 = vunpack.c.l.b16 %v3108
        %v3798 = vpack.c.b16 %v3767, %v3766
        %v3799 = vpack.c.b16 %v3769, %v3768
        %v3800 = vpack.c.b16 %v3771, %v3770
        %v3801 = vpack.c.b16 %v3773, %v3772
        %v3802 = vpack.c.b16 %v3775, %v3774
        %v3803 = vpack.c.b16 %v3777, %v3776
        %v3804 = vpack.c.b16 %v3779, %v3778
        %v3805 = vpack.c.b16 %v3781, %v3780
        %v3806 = vpack.c.b16 %v3783, %v3782
        %v3807 = vpack.c.b16 %v3785, %v3784
        %v3808 = vpack.c.b16 %v3787, %v3786
        %v3809 = vpack.c.b16 %v3789, %v3788
        %v3810 = vpack.c.b16 %v3791, %v3790
        %v3811 = vpack.c.b16 %v3793, %v3792
        %v3812 = vpack.c.b16 %v3795, %v3794
        %v3813 = vpack.c.b16 %v3797, %v3796
        %3814 = vrot.lane.b32.xlu0 %v3798, 24
        %v3815 = vpop.permute.xlu0 %3814
        %3816 = vrot.lane.b32.xlu0 %v3799, 24
        %v3817 = vpop.permute.xlu0 %3816
        %3818 = vrot.lane.b32.xlu0 %v3800, 24
        %v3819 = vpop.permute.xlu0 %3818
        %3820 = vrot.lane.b32.xlu0 %v3801, 24
        %v3821 = vpop.permute.xlu0 %3820
        %3822 = vrot.lane.b32.xlu0 %v3802, 24
        %v3823 = vpop.permute.xlu0 %3822
        %3824 = vrot.lane.b32.xlu0 %v3803, 24
        %v3825 = vpop.permute.xlu0 %3824
        %3826 = vrot.lane.b32.xlu0 %v3804, 24
        %v3827 = vpop.permute.xlu0 %3826
        %3828 = vrot.lane.b32.xlu0 %v3805, 24
        %v3829 = vpop.permute.xlu0 %3828
        %3830 = vrot.lane.b32.xlu0 %v3806, 24
        %v3831 = vpop.permute.xlu0 %3830
        %3832 = vrot.lane.b32.xlu0 %v3807, 24
        %v3833 = vpop.permute.xlu0 %3832
        %3834 = vrot.lane.b32.xlu0 %v3808, 24
        %v3835 = vpop.permute.xlu0 %3834
        %3836 = vrot.lane.b32.xlu0 %v3809, 24
        %v3837 = vpop.permute.xlu0 %3836
        %3838 = vrot.lane.b32.xlu0 %v3810, 24
        %v3839 = vpop.permute.xlu0 %3838
        %3840 = vrot.lane.b32.xlu0 %v3811, 24
        %v3841 = vpop.permute.xlu0 %3840
        %3842 = vrot.lane.b32.xlu0 %v3812, 24
        %v3843 = vpop.permute.xlu0 %3842
        %3844 = vrot.lane.b32.xlu0 %v3813, 24
        %v3845 = vpop.permute.xlu0 %3844
        %v3878 = vunpack.c.l.b16 %v3141
        %v3879 = vunpack.c.l.b16 %v3142
        %v3880 = vunpack.c.l.b16 %v3143
        %v3881 = vunpack.c.l.b16 %v3144
        %v3882 = vunpack.c.l.b16 %v3145
        %v3883 = vunpack.c.l.b16 %v3146
        %v3884 = vunpack.c.l.b16 %v3147
        %v3885 = vunpack.c.l.b16 %v3148
        %v3886 = vunpack.c.l.b16 %v3149
        %v3887 = vunpack.c.l.b16 %v3150
        %v3888 = vunpack.c.l.b16 %v3151
        %v3889 = vunpack.c.l.b16 %v3152
        %v3890 = vunpack.c.l.b16 %v3153
        %v3891 = vunpack.c.l.b16 %v3154
        %v3892 = vunpack.c.l.b16 %v3155
        %v3893 = vunpack.c.l.b16 %v3156
        %v3894 = vunpack.c.l.b16 %v3157
        %v3895 = vunpack.c.l.b16 %v3158
        %v3896 = vunpack.c.l.b16 %v3159
        %v3897 = vunpack.c.l.b16 %v3160
        %v3898 = vunpack.c.l.b16 %v3161
        %v3899 = vunpack.c.l.b16 %v3162
        %v3900 = vunpack.c.l.b16 %v3163
        %v3901 = vunpack.c.l.b16 %v3164
        %v3902 = vunpack.c.l.b16 %v3165
        %v3903 = vunpack.c.l.b16 %v3166
        %v3904 = vunpack.c.l.b16 %v3167
        %v3905 = vunpack.c.l.b16 %v3168
        %v3906 = vunpack.c.l.b16 %v3169
        %v3907 = vunpack.c.l.b16 %v3170
        %v3908 = vunpack.c.l.b16 %v3171
        %v3909 = vunpack.c.l.b16 %v3172
        %v3910 = vpack.c.b16 %v3879, %v3878
        %v3911 = vpack.c.b16 %v3881, %v3880
        %v3912 = vpack.c.b16 %v3883, %v3882
        %v3913 = vpack.c.b16 %v3885, %v3884
        %v3914 = vpack.c.b16 %v3887, %v3886
        %v3915 = vpack.c.b16 %v3889, %v3888
        %v3916 = vpack.c.b16 %v3891, %v3890
        %v3917 = vpack.c.b16 %v3893, %v3892
        %v3918 = vpack.c.b16 %v3895, %v3894
        %v3919 = vpack.c.b16 %v3897, %v3896
        %v3920 = vpack.c.b16 %v3899, %v3898
        %v3921 = vpack.c.b16 %v3901, %v3900
        %v3922 = vpack.c.b16 %v3903, %v3902
        %v3923 = vpack.c.b16 %v3905, %v3904
        %v3924 = vpack.c.b16 %v3907, %v3906
        %v3925 = vpack.c.b16 %v3909, %v3908
        %3926 = vrot.lane.b32.xlu0 %v3910, 32
        %v3927 = vpop.permute.xlu0 %3926
        %3928 = vrot.lane.b32.xlu0 %v3911, 32
        %v3929 = vpop.permute.xlu0 %3928
        %3930 = vrot.lane.b32.xlu0 %v3912, 32
        %v3931 = vpop.permute.xlu0 %3930
        %3932 = vrot.lane.b32.xlu0 %v3913, 32
        %v3933 = vpop.permute.xlu0 %3932
        %3934 = vrot.lane.b32.xlu0 %v3914, 32
        %v3935 = vpop.permute.xlu0 %3934
        %3936 = vrot.lane.b32.xlu0 %v3915, 32
        %v3937 = vpop.permute.xlu0 %3936
        %3938 = vrot.lane.b32.xlu0 %v3916, 32
        %v3939 = vpop.permute.xlu0 %3938
        %3940 = vrot.lane.b32.xlu0 %v3917, 32
        %v3941 = vpop.permute.xlu0 %3940
        %3942 = vrot.lane.b32.xlu0 %v3918, 32
        %v3943 = vpop.permute.xlu0 %3942
        %3944 = vrot.lane.b32.xlu0 %v3919, 32
        %v3945 = vpop.permute.xlu0 %3944
        %3946 = vrot.lane.b32.xlu0 %v3920, 32
        %v3947 = vpop.permute.xlu0 %3946
        %3948 = vrot.lane.b32.xlu0 %v3921, 32
        %v3949 = vpop.permute.xlu0 %3948
        %3950 = vrot.lane.b32.xlu0 %v3922, 32
        %v3951 = vpop.permute.xlu0 %3950
        %3952 = vrot.lane.b32.xlu0 %v3923, 32
        %v3953 = vpop.permute.xlu0 %3952
        %3954 = vrot.lane.b32.xlu0 %v3924, 32
        %v3955 = vpop.permute.xlu0 %3954
        %3956 = vrot.lane.b32.xlu0 %v3925, 32
        %v3957 = vpop.permute.xlu0 %3956
        %v3990 = vunpack.c.l.b16 %v3205
        %v3991 = vunpack.c.l.b16 %v3206
        %v3992 = vunpack.c.l.b16 %v3207
        %v3993 = vunpack.c.l.b16 %v3208
        %v3994 = vunpack.c.l.b16 %v3209
        %v3995 = vunpack.c.l.b16 %v3210
        %v3996 = vunpack.c.l.b16 %v3211
        %v3997 = vunpack.c.l.b16 %v3212
        %v3998 = vunpack.c.l.b16 %v3213
        %v3999 = vunpack.c.l.b16 %v3214
        %v4000 = vunpack.c.l.b16 %v3215
        %v4001 = vunpack.c.l.b16 %v3216
        %v4002 = vunpack.c.l.b16 %v3217
        %v4003 = vunpack.c.l.b16 %v3218
        %v4004 = vunpack.c.l.b16 %v3219
        %v4005 = vunpack.c.l.b16 %v3220
        %v4006 = vunpack.c.l.b16 %v3221
        %v4007 = vunpack.c.l.b16 %v3222
        %v4008 = vunpack.c.l.b16 %v3223
        %v4009 = vunpack.c.l.b16 %v3224
        %v4010 = vunpack.c.l.b16 %v3225
        %v4011 = vunpack.c.l.b16 %v3226
        %v4012 = vunpack.c.l.b16 %v3227
        %v4013 = vunpack.c.l.b16 %v3228
        %v4014 = vunpack.c.l.b16 %v3229
        %v4015 = vunpack.c.l.b16 %v3230
        %v4016 = vunpack.c.l.b16 %v3231
        %v4017 = vunpack.c.l.b16 %v3232
        %v4018 = vunpack.c.l.b16 %v3233
        %v4019 = vunpack.c.l.b16 %v3234
        %v4020 = vunpack.c.l.b16 %v3235
        %v4021 = vunpack.c.l.b16 %v3236
        %v4022 = vpack.c.b16 %v3991, %v3990
        %v4023 = vpack.c.b16 %v3993, %v3992
        %v4024 = vpack.c.b16 %v3995, %v3994
        %v4025 = vpack.c.b16 %v3997, %v3996
        %v4026 = vpack.c.b16 %v3999, %v3998
        %v4027 = vpack.c.b16 %v4001, %v4000
        %v4028 = vpack.c.b16 %v4003, %v4002
        %v4029 = vpack.c.b16 %v4005, %v4004
        %v4030 = vpack.c.b16 %v4007, %v4006
        %v4031 = vpack.c.b16 %v4009, %v4008
        %v4032 = vpack.c.b16 %v4011, %v4010
        %v4033 = vpack.c.b16 %v4013, %v4012
        %v4034 = vpack.c.b16 %v4015, %v4014
        %v4035 = vpack.c.b16 %v4017, %v4016
        %v4036 = vpack.c.b16 %v4019, %v4018
        %v4037 = vpack.c.b16 %v4021, %v4020
        %4038 = vrot.lane.b32.xlu0 %v4022, 40
        %v4039 = vpop.permute.xlu0 %4038
        %4040 = vrot.lane.b32.xlu0 %v4023, 40
        %v4041 = vpop.permute.xlu0 %4040
        %4042 = vrot.lane.b32.xlu0 %v4024, 40
        %v4043 = vpop.permute.xlu0 %4042
        %4044 = vrot.lane.b32.xlu0 %v4025, 40
        %v4045 = vpop.permute.xlu0 %4044
        %4046 = vrot.lane.b32.xlu0 %v4026, 40
        %v4047 = vpop.permute.xlu0 %4046
        %4048 = vrot.lane.b32.xlu0 %v4027, 40
        %v4049 = vpop.permute.xlu0 %4048
        %4050 = vrot.lane.b32.xlu0 %v4028, 40
        %v4051 = vpop.permute.xlu0 %4050
        %4052 = vrot.lane.b32.xlu0 %v4029, 40
        %v4053 = vpop.permute.xlu0 %4052
        %4054 = vrot.lane.b32.xlu0 %v4030, 40
        %v4055 = vpop.permute.xlu0 %4054
        %4056 = vrot.lane.b32.xlu0 %v4031, 40
        %v4057 = vpop.permute.xlu0 %4056
        %4058 = vrot.lane.b32.xlu0 %v4032, 40
        %v4059 = vpop.permute.xlu0 %4058
        %4060 = vrot.lane.b32.xlu0 %v4033, 40
        %v4061 = vpop.permute.xlu0 %4060
        %4062 = vrot.lane.b32.xlu0 %v4034, 40
        %v4063 = vpop.permute.xlu0 %4062
        %4064 = vrot.lane.b32.xlu0 %v4035, 40
        %v4065 = vpop.permute.xlu0 %4064
        %4066 = vrot.lane.b32.xlu0 %v4036, 40
        %v4067 = vpop.permute.xlu0 %4066
        %4068 = vrot.lane.b32.xlu0 %v4037, 40
        %v4069 = vpop.permute.xlu0 %4068
        %v4102 = vunpack.c.l.b16 %v3270
        %v4103 = vunpack.c.l.b16 %v3271
        %v4104 = vunpack.c.l.b16 %v3272
        %v4105 = vunpack.c.l.b16 %v3273
        %v4106 = vunpack.c.l.b16 %v3274
        %v4107 = vunpack.c.l.b16 %v3275
        %v4108 = vunpack.c.l.b16 %v3276
        %v4109 = vunpack.c.l.b16 %v3277
        %v4110 = vunpack.c.l.b16 %v3278
        %v4111 = vunpack.c.l.b16 %v3279
        %v4112 = vunpack.c.l.b16 %v3280
        %v4113 = vunpack.c.l.b16 %v3281
        %v4114 = vunpack.c.l.b16 %v3282
        %v4115 = vunpack.c.l.b16 %v3283
        %v4116 = vunpack.c.l.b16 %v3284
        %v4117 = vunpack.c.l.b16 %v3285
        %v4118 = vunpack.c.l.b16 %v3286
        %v4119 = vunpack.c.l.b16 %v3287
        %v4120 = vunpack.c.l.b16 %v3288
        %v4121 = vunpack.c.l.b16 %v3289
        %v4122 = vunpack.c.l.b16 %v3290
        %v4123 = vunpack.c.l.b16 %v3291
        %v4124 = vunpack.c.l.b16 %v3292
        %v4125 = vunpack.c.l.b16 %v3293
        %v4126 = vunpack.c.l.b16 %v3294
        %v4127 = vunpack.c.l.b16 %v3295
        %v4128 = vunpack.c.l.b16 %v3296
        %v4129 = vunpack.c.l.b16 %v3297
        %v4130 = vunpack.c.l.b16 %v3298
        %v4131 = vunpack.c.l.b16 %v3299
        %v4132 = vunpack.c.l.b16 %v3300
        %v4133 = vunpack.c.l.b16 %v3301
        %v4134 = vpack.c.b16 %v4103, %v4102
        %v4135 = vpack.c.b16 %v4105, %v4104
        %v4136 = vpack.c.b16 %v4107, %v4106
        %v4137 = vpack.c.b16 %v4109, %v4108
        %v4138 = vpack.c.b16 %v4111, %v4110
        %v4139 = vpack.c.b16 %v4113, %v4112
        %v4140 = vpack.c.b16 %v4115, %v4114
        %v4141 = vpack.c.b16 %v4117, %v4116
        %v4142 = vpack.c.b16 %v4119, %v4118
        %v4143 = vpack.c.b16 %v4121, %v4120
        %v4144 = vpack.c.b16 %v4123, %v4122
        %v4145 = vpack.c.b16 %v4125, %v4124
        %v4146 = vpack.c.b16 %v4127, %v4126
        %v4147 = vpack.c.b16 %v4129, %v4128
        %v4148 = vpack.c.b16 %v4131, %v4130
        %v4149 = vpack.c.b16 %v4133, %v4132
        %4150 = vrot.lane.b32.xlu0 %v4134, 48
        %v4151 = vpop.permute.xlu0 %4150
        %4152 = vrot.lane.b32.xlu0 %v4135, 48
        %v4153 = vpop.permute.xlu0 %4152
        %4154 = vrot.lane.b32.xlu0 %v4136, 48
        %v4155 = vpop.permute.xlu0 %4154
        %4156 = vrot.lane.b32.xlu0 %v4137, 48
        %v4157 = vpop.permute.xlu0 %4156
        %4158 = vrot.lane.b32.xlu0 %v4138, 48
        %v4159 = vpop.permute.xlu0 %4158
        %4160 = vrot.lane.b32.xlu0 %v4139, 48
        %v4161 = vpop.permute.xlu0 %4160
        %4162 = vrot.lane.b32.xlu0 %v4140, 48
        %v4163 = vpop.permute.xlu0 %4162
        %4164 = vrot.lane.b32.xlu0 %v4141, 48
        %v4165 = vpop.permute.xlu0 %4164
        %4166 = vrot.lane.b32.xlu0 %v4142, 48
        %v4167 = vpop.permute.xlu0 %4166
        %4168 = vrot.lane.b32.xlu0 %v4143, 48
        %v4169 = vpop.permute.xlu0 %4168
        %4170 = vrot.lane.b32.xlu0 %v4144, 48
        %v4171 = vpop.permute.xlu0 %4170
        %4172 = vrot.lane.b32.xlu0 %v4145, 48
        %v4173 = vpop.permute.xlu0 %4172
        %4174 = vrot.lane.b32.xlu0 %v4146, 48
        %v4175 = vpop.permute.xlu0 %4174
        %4176 = vrot.lane.b32.xlu0 %v4147, 48
        %v4177 = vpop.permute.xlu0 %4176
        %4178 = vrot.lane.b32.xlu0 %v4148, 48
        %v4179 = vpop.permute.xlu0 %4178
        %4180 = vrot.lane.b32.xlu0 %v4149, 48
        %v4181 = vpop.permute.xlu0 %4180
        %v4214 = vunpack.c.l.b16 %v3334
        %v4215 = vunpack.c.l.b16 %v3335
        %v4216 = vunpack.c.l.b16 %v3336
        %v4217 = vunpack.c.l.b16 %v3337
        %v4218 = vunpack.c.l.b16 %v3338
        %v4219 = vunpack.c.l.b16 %v3339
        %v4220 = vunpack.c.l.b16 %v3340
        %v4221 = vunpack.c.l.b16 %v3341
        %v4222 = vunpack.c.l.b16 %v3342
        %v4223 = vunpack.c.l.b16 %v3343
        %v4224 = vunpack.c.l.b16 %v3344
        %v4225 = vunpack.c.l.b16 %v3345
        %v4226 = vunpack.c.l.b16 %v3346
        %v4227 = vunpack.c.l.b16 %v3347
        %v4228 = vunpack.c.l.b16 %v3348
        %v4229 = vunpack.c.l.b16 %v3349
        %v4230 = vunpack.c.l.b16 %v3350
        %v4231 = vunpack.c.l.b16 %v3351
        %v4232 = vunpack.c.l.b16 %v3352
        %v4233 = vunpack.c.l.b16 %v3353
        %v4234 = vunpack.c.l.b16 %v3354
        %v4235 = vunpack.c.l.b16 %v3355
        %v4236 = vunpack.c.l.b16 %v3356
        %v4237 = vunpack.c.l.b16 %v3357
        %v4238 = vunpack.c.l.b16 %v3358
        %v4239 = vunpack.c.l.b16 %v3359
        %v4240 = vunpack.c.l.b16 %v3360
        %v4241 = vunpack.c.l.b16 %v3361
        %v4242 = vunpack.c.l.b16 %v3362
        %v4243 = vunpack.c.l.b16 %v3363
        %v4244 = vunpack.c.l.b16 %v3364
        %v4245 = vunpack.c.l.b16 %v3365
        %v4246 = vpack.c.b16 %v4215, %v4214
        %v4247 = vpack.c.b16 %v4217, %v4216
        %v4248 = vpack.c.b16 %v4219, %v4218
        %v4249 = vpack.c.b16 %v4221, %v4220
        %v4250 = vpack.c.b16 %v4223, %v4222
        %v4251 = vpack.c.b16 %v4225, %v4224
        %v4252 = vpack.c.b16 %v4227, %v4226
        %v4253 = vpack.c.b16 %v4229, %v4228
        %v4254 = vpack.c.b16 %v4231, %v4230
        %v4255 = vpack.c.b16 %v4233, %v4232
        %v4256 = vpack.c.b16 %v4235, %v4234
        %v4257 = vpack.c.b16 %v4237, %v4236
        %v4258 = vpack.c.b16 %v4239, %v4238
        %v4259 = vpack.c.b16 %v4241, %v4240
        %v4260 = vpack.c.b16 %v4243, %v4242
        %v4261 = vpack.c.b16 %v4245, %v4244
        %4262 = vrot.lane.b32.xlu0 %v4246, 56
        %v4263 = vpop.permute.xlu0 %4262
        %4264 = vrot.lane.b32.xlu0 %v4247, 56
        %v4265 = vpop.permute.xlu0 %4264
        %4266 = vrot.lane.b32.xlu0 %v4248, 56
        %v4267 = vpop.permute.xlu0 %4266
        %4268 = vrot.lane.b32.xlu0 %v4249, 56
        %v4269 = vpop.permute.xlu0 %4268
        %4270 = vrot.lane.b32.xlu0 %v4250, 56
        %v4271 = vpop.permute.xlu0 %4270
        %4272 = vrot.lane.b32.xlu0 %v4251, 56
        %v4273 = vpop.permute.xlu0 %4272
        %4274 = vrot.lane.b32.xlu0 %v4252, 56
        %v4275 = vpop.permute.xlu0 %4274
        %4276 = vrot.lane.b32.xlu0 %v4253, 56
        %v4277 = vpop.permute.xlu0 %4276
        %4278 = vrot.lane.b32.xlu0 %v4254, 56
        %v4279 = vpop.permute.xlu0 %4278
        %4280 = vrot.lane.b32.xlu0 %v4255, 56
        %v4281 = vpop.permute.xlu0 %4280
        %4282 = vrot.lane.b32.xlu0 %v4256, 56
        %v4283 = vpop.permute.xlu0 %4282
        %4284 = vrot.lane.b32.xlu0 %v4257, 56
        %v4285 = vpop.permute.xlu0 %4284
        %4286 = vrot.lane.b32.xlu0 %v4258, 56
        %v4287 = vpop.permute.xlu0 %4286
        %4288 = vrot.lane.b32.xlu0 %v4259, 56
        %v4289 = vpop.permute.xlu0 %4288
        %4290 = vrot.lane.b32.xlu0 %v4260, 56
        %v4291 = vpop.permute.xlu0 %4290
        %4292 = vrot.lane.b32.xlu0 %v4261, 56
        %v4293 = vpop.permute.xlu0 %4292
        %v4326 = vunpack.c.l.b16 %v3398
        %v4327 = vunpack.c.l.b16 %v3399
        %v4328 = vunpack.c.l.b16 %v3400
        %v4329 = vunpack.c.l.b16 %v3401
        %v4330 = vunpack.c.l.b16 %v3402
        %v4331 = vunpack.c.l.b16 %v3403
        %v4332 = vunpack.c.l.b16 %v3404
        %v4333 = vunpack.c.l.b16 %v3405
        %v4334 = vunpack.c.l.b16 %v3406
        %v4335 = vunpack.c.l.b16 %v3407
        %v4336 = vunpack.c.l.b16 %v3408
        %v4337 = vunpack.c.l.b16 %v3409
        %v4338 = vunpack.c.l.b16 %v3410
        %v4339 = vunpack.c.l.b16 %v3411
        %v4340 = vunpack.c.l.b16 %v3412
        %v4341 = vunpack.c.l.b16 %v3413
        %v4342 = vunpack.c.l.b16 %v3414
        %v4343 = vunpack.c.l.b16 %v3415
        %v4344 = vunpack.c.l.b16 %v3416
        %v4345 = vunpack.c.l.b16 %v3417
        %v4346 = vunpack.c.l.b16 %v3418
        %v4347 = vunpack.c.l.b16 %v3419
        %v4348 = vunpack.c.l.b16 %v3420
        %v4349 = vunpack.c.l.b16 %v3421
        %v4350 = vunpack.c.l.b16 %v3422
        %v4351 = vunpack.c.l.b16 %v3423
        %v4352 = vunpack.c.l.b16 %v3424
        %v4353 = vunpack.c.l.b16 %v3425
        %v4354 = vunpack.c.l.b16 %v3426
        %v4355 = vunpack.c.l.b16 %v3427
        %v4356 = vunpack.c.l.b16 %v3428
        %v4357 = vunpack.c.l.b16 %v3429
        %v4358 = vpack.c.b16 %v4327, %v4326
        %v4359 = vpack.c.b16 %v4329, %v4328
        %v4360 = vpack.c.b16 %v4331, %v4330
        %v4361 = vpack.c.b16 %v4333, %v4332
        %v4362 = vpack.c.b16 %v4335, %v4334
        %v4363 = vpack.c.b16 %v4337, %v4336
        %v4364 = vpack.c.b16 %v4339, %v4338
        %v4365 = vpack.c.b16 %v4341, %v4340
        %v4366 = vpack.c.b16 %v4343, %v4342
        %v4367 = vpack.c.b16 %v4345, %v4344
        %v4368 = vpack.c.b16 %v4347, %v4346
        %v4369 = vpack.c.b16 %v4349, %v4348
        %v4370 = vpack.c.b16 %v4351, %v4350
        %v4371 = vpack.c.b16 %v4353, %v4352
        %v4372 = vpack.c.b16 %v4355, %v4354
        %v4373 = vpack.c.b16 %v4357, %v4356
        %4374 = vrot.lane.b32.xlu0 %v4358, 64
        %v4375 = vpop.permute.xlu0 %4374
        %4376 = vrot.lane.b32.xlu0 %v4359, 64
        %v4377 = vpop.permute.xlu0 %4376
        %4378 = vrot.lane.b32.xlu0 %v4360, 64
        %v4379 = vpop.permute.xlu0 %4378
        %4380 = vrot.lane.b32.xlu0 %v4361, 64
        %v4381 = vpop.permute.xlu0 %4380
        %4382 = vrot.lane.b32.xlu0 %v4362, 64
        %v4383 = vpop.permute.xlu0 %4382
        %4384 = vrot.lane.b32.xlu0 %v4363, 64
        %v4385 = vpop.permute.xlu0 %4384
        %4386 = vrot.lane.b32.xlu0 %v4364, 64
        %v4387 = vpop.permute.xlu0 %4386
        %4388 = vrot.lane.b32.xlu0 %v4365, 64
        %v4389 = vpop.permute.xlu0 %4388
        %4390 = vrot.lane.b32.xlu0 %v4366, 64
        %v4391 = vpop.permute.xlu0 %4390
        %4392 = vrot.lane.b32.xlu0 %v4367, 64
        %v4393 = vpop.permute.xlu0 %4392
        %4394 = vrot.lane.b32.xlu0 %v4368, 64
        %v4395 = vpop.permute.xlu0 %4394
        %4396 = vrot.lane.b32.xlu0 %v4369, 64
        %v4397 = vpop.permute.xlu0 %4396
        %4398 = vrot.lane.b32.xlu0 %v4370, 64
        %v4399 = vpop.permute.xlu0 %4398
        %4400 = vrot.lane.b32.xlu0 %v4371, 64
        %v4401 = vpop.permute.xlu0 %4400
        %4402 = vrot.lane.b32.xlu0 %v4372, 64
        %v4403 = vpop.permute.xlu0 %4402
        %4404 = vrot.lane.b32.xlu0 %v4373, 64
        %v4405 = vpop.permute.xlu0 %4404
        %v4408 = vsel %vm455, %v3494, %v3591
        %v4411 = vsel %vm455, %v3495, %v3593
        %v4414 = vsel %vm455, %v3496, %v3595
        %v4417 = vsel %vm455, %v3497, %v3597
        %v4420 = vsel %vm455, %v3498, %v3599
        %v4423 = vsel %vm455, %v3499, %v3601
        %v4426 = vsel %vm455, %v3500, %v3603
        %v4429 = vsel %vm455, %v3501, %v3605
        %v4432 = vsel %vm455, %v3502, %v3607
        %v4435 = vsel %vm455, %v3503, %v3609
        %v4438 = vsel %vm455, %v3504, %v3611
        %v4441 = vsel %vm455, %v3505, %v3613
        %v4444 = vsel %vm455, %v3506, %v3615
        %v4447 = vsel %vm455, %v3507, %v3617
        %v4450 = vsel %vm455, %v3508, %v3619
        %v4453 = vsel %vm455, %v3509, %v3621
        %vm4454 = vcmask 130048
        %v4456 = vsel %vm4454, %v4408, %v3703
        %v4458 = vsel %vm4454, %v4411, %v3705
        %v4460 = vsel %vm4454, %v4414, %v3707
        %v4462 = vsel %vm4454, %v4417, %v3709
        %v4464 = vsel %vm4454, %v4420, %v3711
        %v4466 = vsel %vm4454, %v4423, %v3713
        %v4468 = vsel %vm4454, %v4426, %v3715
        %v4470 = vsel %vm4454, %v4429, %v3717
        %v4472 = vsel %vm4454, %v4432, %v3719
        %v4474 = vsel %vm4454, %v4435, %v3721
        %v4476 = vsel %vm4454, %v4438, %v3723
        %v4478 = vsel %vm4454, %v4441, %v3725
        %v4480 = vsel %vm4454, %v4444, %v3727
        %v4482 = vsel %vm4454, %v4447, %v3729
        %v4484 = vsel %vm4454, %v4450, %v3731
        %v4486 = vsel %vm4454, %v4453, %v3733
        %vm4487 = vcmask 195584
        %v4489 = vsel %vm4487, %v4456, %v3815
        %v4491 = vsel %vm4487, %v4458, %v3817
        %v4493 = vsel %vm4487, %v4460, %v3819
        %v4495 = vsel %vm4487, %v4462, %v3821
        %v4497 = vsel %vm4487, %v4464, %v3823
        %v4499 = vsel %vm4487, %v4466, %v3825
        %v4501 = vsel %vm4487, %v4468, %v3827
        %v4503 = vsel %vm4487, %v4470, %v3829
        %v4505 = vsel %vm4487, %v4472, %v3831
        %v4507 = vsel %vm4487, %v4474, %v3833
        %v4509 = vsel %vm4487, %v4476, %v3835
        %v4511 = vsel %vm4487, %v4478, %v3837
        %v4513 = vsel %vm4487, %v4480, %v3839
        %v4515 = vsel %vm4487, %v4482, %v3841
        %v4517 = vsel %vm4487, %v4484, %v3843
        %v4519 = vsel %vm4487, %v4486, %v3845
        %vm4520 = vcmask 261120
        %v4522 = vsel %vm4520, %v4489, %v3927
        %v4524 = vsel %vm4520, %v4491, %v3929
        %v4526 = vsel %vm4520, %v4493, %v3931
        %v4528 = vsel %vm4520, %v4495, %v3933
        %v4530 = vsel %vm4520, %v4497, %v3935
        %v4532 = vsel %vm4520, %v4499, %v3937
        %v4534 = vsel %vm4520, %v4501, %v3939
        %v4536 = vsel %vm4520, %v4503, %v3941
        %v4538 = vsel %vm4520, %v4505, %v3943
        %v4540 = vsel %vm4520, %v4507, %v3945
        %v4542 = vsel %vm4520, %v4509, %v3947
        %v4544 = vsel %vm4520, %v4511, %v3949
        %v4546 = vsel %vm4520, %v4513, %v3951
        %v4548 = vsel %vm4520, %v4515, %v3953
        %v4550 = vsel %vm4520, %v4517, %v3955
        %v4552 = vsel %vm4520, %v4519, %v3957
        %vm4553 = vcmask 326656
        %v4555 = vsel %vm4553, %v4522, %v4039
        %v4557 = vsel %vm4553, %v4524, %v4041
        %v4559 = vsel %vm4553, %v4526, %v4043
        %v4561 = vsel %vm4553, %v4528, %v4045
        %v4563 = vsel %vm4553, %v4530, %v4047
        %v4565 = vsel %vm4553, %v4532, %v4049
        %v4567 = vsel %vm4553, %v4534, %v4051
        %v4569 = vsel %vm4553, %v4536, %v4053
        %v4571 = vsel %vm4553, %v4538, %v4055
        %v4573 = vsel %vm4553, %v4540, %v4057
        %v4575 = vsel %vm4553, %v4542, %v4059
        %v4577 = vsel %vm4553, %v4544, %v4061
        %v4579 = vsel %vm4553, %v4546, %v4063
        %v4581 = vsel %vm4553, %v4548, %v4065
        %v4583 = vsel %vm4553, %v4550, %v4067
        %v4585 = vsel %vm4553, %v4552, %v4069
        %vm4586 = vcmask 392192
        %v4588 = vsel %vm4586, %v4555, %v4151
        %v4590 = vsel %vm4586, %v4557, %v4153
        %v4592 = vsel %vm4586, %v4559, %v4155
        %v4594 = vsel %vm4586, %v4561, %v4157
        %v4596 = vsel %vm4586, %v4563, %v4159
        %v4598 = vsel %vm4586, %v4565, %v4161
        %v4600 = vsel %vm4586, %v4567, %v4163
        %v4602 = vsel %vm4586, %v4569, %v4165
        %v4604 = vsel %vm4586, %v4571, %v4167
        %v4606 = vsel %vm4586, %v4573, %v4169
        %v4608 = vsel %vm4586, %v4575, %v4171
        %v4610 = vsel %vm4586, %v4577, %v4173
        %v4612 = vsel %vm4586, %v4579, %v4175
        %v4614 = vsel %vm4586, %v4581, %v4177
        %v4616 = vsel %vm4586, %v4583, %v4179
        %v4618 = vsel %vm4586, %v4585, %v4181
        %vm4619 = vcmask 457728
        %v4621 = vsel %vm4619, %v4588, %v4263
        %v4623 = vsel %vm4619, %v4590, %v4265
        %v4625 = vsel %vm4619, %v4592, %v4267
        %v4627 = vsel %vm4619, %v4594, %v4269
        %v4629 = vsel %vm4619, %v4596, %v4271
        %v4631 = vsel %vm4619, %v4598, %v4273
        %v4633 = vsel %vm4619, %v4600, %v4275
        %v4635 = vsel %vm4619, %v4602, %v4277
        %v4637 = vsel %vm4619, %v4604, %v4279
        %v4639 = vsel %vm4619, %v4606, %v4281
        %v4641 = vsel %vm4619, %v4608, %v4283
        %v4643 = vsel %vm4619, %v4610, %v4285
        %v4645 = vsel %vm4619, %v4612, %v4287
        %v4647 = vsel %vm4619, %v4614, %v4289
        %v4649 = vsel %vm4619, %v4616, %v4291
        %v4651 = vsel %vm4619, %v4618, %v4293
        %vm4652 = vcmask 523264
        %v4654 = vsel %vm4652, %v4621, %v4375
        %v4656 = vsel %vm4652, %v4623, %v4377
        %v4658 = vsel %vm4652, %v4625, %v4379
        %v4660 = vsel %vm4652, %v4627, %v4381
        %v4662 = vsel %vm4652, %v4629, %v4383
        %v4664 = vsel %vm4652, %v4631, %v4385
        %v4666 = vsel %vm4652, %v4633, %v4387
        %v4668 = vsel %vm4652, %v4635, %v4389
        %v4670 = vsel %vm4652, %v4637, %v4391
        %v4672 = vsel %vm4652, %v4639, %v4393
        %v4674 = vsel %vm4652, %v4641, %v4395
        %v4676 = vsel %vm4652, %v4643, %v4397
        %v4678 = vsel %vm4652, %v4645, %v4399
        %v4680 = vsel %vm4652, %v4647, %v4401
        %v4682 = vsel %vm4652, %v4649, %v4403
        %v4684 = vsel %vm4652, %v4651, %v4405
        %v4685 = vld [vmem:[%s4] sm:$0xf]
        %v4686 = vld [vmem:[%s4 + $0x4] sm:$0xf]
        %v4687 = vld [vmem:[%s4 + $0x8] sm:$0xf]
        %v4688 = vld [vmem:[%s4 + $0xc] sm:$0xf]
        %v4689 = vld [vmem:[%s4 + $0x10] sm:$0xf]
        %v4690 = vld [vmem:[%s4 + $0x14] sm:$0xf]
        %v4691 = vld [vmem:[%s4 + $0x18] sm:$0xf]
        %v4692 = vld [vmem:[%s4 + $0x1c] sm:$0xf]
        %v4693 = vld [vmem:[%s4 + $0x20] sm:$0xf]
        %v4703 = vunpack.c.l.b16 %v4685
        %v4704 = vunpack.c.l.b16 %v4686
        %v4705 = vunpack.c.l.b16 %v4687
        %v4706 = vunpack.c.l.b16 %v4688
        %v4707 = vunpack.c.l.b16 %v4689
        %v4708 = vunpack.c.l.b16 %v4690
        %v4709 = vunpack.c.l.b16 %v4691
        %v4710 = vunpack.c.l.b16 %v4692
        %v4711 = vunpack.c.l.b16 %v4693
        %v4712 = vpack.c.b16 %v4704, %v4703
        %v4713 = vpack.c.b16 %v4706, %v4705
        %v4714 = vpack.c.b16 %v4708, %v4707
        %v4715 = vpack.c.b16 %v4710, %v4709
        %v4716 = vpack.c.b16 %v4711, %v4711
        %vm4721 = vcmask 588800
        %v4722 = vsel %vm4721, %v4654, 0
        %v4724 = vsel %vm4721, %v4656, 0
        %v4726 = vsel %vm4721, %v4658, 0
        %v4728 = vsel %vm4721, %v4660, 0
        %v4730 = vsel %vm4721, %v4662, 0
        %v4732 = vsel %vm4721, %v4664, 0
        %v4734 = vsel %vm4721, %v4666, 0
        %v4736 = vsel %vm4721, %v4668, 0
        %v4738 = vsel %vm4721, %v4670, 0
        %v4740 = vsel %vm4721, %v4672, 0
        %v4742 = vsel %vm4721, %v4674, 0
        %v4744 = vsel %vm4721, %v4676, 0
        %v4746 = vsel %vm4721, %v4678, 0
        %v4748 = vsel %vm4721, %v4680, 0
        %v4750 = vsel %vm4721, %v4682, 0
        %v4752 = vsel %vm4721, %v4684, 0
        %v4755 = vsel %vm459, %v4716, 0
        %4757 = vmatpush.bf16.msra.mxu0 0
        %4758 = vmatpush.bf16.msra.mxu0 0
        %4759 = vmatpush.bf16.msra.mxu0 0
        %4760 = vmatpush.bf16.msra.mxu0 %v4755
        %4761 = vmatpush.bf16.msra.mxu0 %v4715
        %4762 = vmatpush.bf16.msra.mxu0 %v4714
        %4763 = vmatpush.bf16.msra.mxu0 %v4713
        %4764 = vmatpush.bf16.msra.mxu0 %v4712
        %4765 = vmatmul.bf16.gmra.mxu0 %v4722
        %v4766 = vpop.f32.mrf.mxu0
        %v4767 = vadd.f32 0.0, %v4766
        %v4768 = vpop.f32.mrf.mxu0
        %v4769 = vadd.f32 0.0, %v4768
        %4770 = vmatmul.bf16.gmra.mxu0 %v4724
        %v4771 = vpop.f32.mrf.mxu0
        %v4772 = vadd.f32 0.0, %v4771
        %v4773 = vpop.f32.mrf.mxu0
        %v4774 = vadd.f32 0.0, %v4773
        %4775 = vmatmul.bf16.gmra.mxu0 %v4726
        %v4776 = vpop.f32.mrf.mxu0
        %v4777 = vadd.f32 0.0, %v4776
        %v4778 = vpop.f32.mrf.mxu0
        %v4779 = vadd.f32 0.0, %v4778
        %4780 = vmatmul.bf16.gmra.mxu0 %v4728
        %v4781 = vpop.f32.mrf.mxu0
        %v4782 = vadd.f32 0.0, %v4781
        %v4783 = vpop.f32.mrf.mxu0
        %v4784 = vadd.f32 0.0, %v4783
        %4785 = vmatmul.bf16.gmra.mxu0 %v4730
        %v4786 = vpop.f32.mrf.mxu0
        %v4787 = vadd.f32 0.0, %v4786
        %v4788 = vpop.f32.mrf.mxu0
        %v4789 = vadd.f32 0.0, %v4788
        %4790 = vmatmul.bf16.gmra.mxu0 %v4732
        %v4791 = vpop.f32.mrf.mxu0
        %v4792 = vadd.f32 0.0, %v4791
        %v4793 = vpop.f32.mrf.mxu0
        %v4794 = vadd.f32 0.0, %v4793
        %4795 = vmatmul.bf16.gmra.mxu0 %v4734
        %v4796 = vpop.f32.mrf.mxu0
        %v4797 = vadd.f32 0.0, %v4796
        %v4798 = vpop.f32.mrf.mxu0
        %v4799 = vadd.f32 0.0, %v4798
        %4800 = vmatmul.bf16.gmra.mxu0 %v4736
        %v4801 = vpop.f32.mrf.mxu0
        %v4802 = vadd.f32 0.0, %v4801
        %v4803 = vpop.f32.mrf.mxu0
        %v4804 = vadd.f32 0.0, %v4803
        %4805 = vmatmul.bf16.gmra.mxu0 %v4738
        %v4806 = vpop.f32.mrf.mxu0
        %v4807 = vadd.f32 0.0, %v4806
        %v4808 = vpop.f32.mrf.mxu0
        %v4809 = vadd.f32 0.0, %v4808
        %4810 = vmatmul.bf16.gmra.mxu0 %v4740
        %v4811 = vpop.f32.mrf.mxu0
        %v4812 = vadd.f32 0.0, %v4811
        %v4813 = vpop.f32.mrf.mxu0
        %v4814 = vadd.f32 0.0, %v4813
        %4815 = vmatmul.bf16.gmra.mxu0 %v4742
        %v4816 = vpop.f32.mrf.mxu0
        %v4817 = vadd.f32 0.0, %v4816
        %v4818 = vpop.f32.mrf.mxu0
        %v4819 = vadd.f32 0.0, %v4818
        %4820 = vmatmul.bf16.gmra.mxu0 %v4744
        %v4821 = vpop.f32.mrf.mxu0
        %v4822 = vadd.f32 0.0, %v4821
        %v4823 = vpop.f32.mrf.mxu0
        %v4824 = vadd.f32 0.0, %v4823
        %4825 = vmatmul.bf16.gmra.mxu0 %v4746
        %v4826 = vpop.f32.mrf.mxu0
        %v4827 = vadd.f32 0.0, %v4826
        %v4828 = vpop.f32.mrf.mxu0
        %v4829 = vadd.f32 0.0, %v4828
        %4830 = vmatmul.bf16.gmra.mxu0 %v4748
        %v4831 = vpop.f32.mrf.mxu0
        %v4832 = vadd.f32 0.0, %v4831
        %v4833 = vpop.f32.mrf.mxu0
        %v4834 = vadd.f32 0.0, %v4833
        %4835 = vmatmul.bf16.gmra.mxu0 %v4750
        %v4836 = vpop.f32.mrf.mxu0
        %v4837 = vadd.f32 0.0, %v4836
        %v4838 = vpop.f32.mrf.mxu0
        %v4839 = vadd.f32 0.0, %v4838
        %4840 = vmatmul.bf16.gmra.mxu0 %v4752
        %v4841 = vpop.f32.mrf.mxu0
        %v4842 = vadd.f32 0.0, %v4841
        %v4843 = vpop.f32.mrf.mxu0
        %v4844 = vadd.f32 0.0, %v4843
        %4845 = vdwg.mxu0
        %v4846 = vperm.slane %v473, 0
        %v4847 = vmul.f32 %v4846, %v4767
        %v4848 = vmul.f32 %v4846, %v4769
        %v4849 = vmul.f32 %v4846, %v4772
        %v4850 = vmul.f32 %v4846, %v4774
        %v4851 = vmul.f32 %v4846, %v4777
        %v4852 = vmul.f32 %v4846, %v4779
        %v4853 = vmul.f32 %v4846, %v4782
        %v4854 = vmul.f32 %v4846, %v4784
        %v4855 = vmul.f32 %v4846, %v4787
        %v4856 = vmul.f32 %v4846, %v4789
        %v4857 = vmul.f32 %v4846, %v4792
        %v4858 = vmul.f32 %v4846, %v4794
        %v4859 = vmul.f32 %v4846, %v4797
        %v4860 = vmul.f32 %v4846, %v4799
        %v4861 = vmul.f32 %v4846, %v4802
        %v4862 = vmul.f32 %v4846, %v4804
        %v4863 = vmul.f32 %v4846, %v4807
        %v4864 = vmul.f32 %v4846, %v4809
        %v4865 = vmul.f32 %v4846, %v4812
        %v4866 = vmul.f32 %v4846, %v4814
        %v4867 = vmul.f32 %v4846, %v4817
        %v4868 = vmul.f32 %v4846, %v4819
        %v4869 = vmul.f32 %v4846, %v4822
        %v4870 = vmul.f32 %v4846, %v4824
        %v4871 = vmul.f32 %v4846, %v4827
        %v4872 = vmul.f32 %v4846, %v4829
        %v4873 = vmul.f32 %v4846, %v4832
        %v4874 = vmul.f32 %v4846, %v4834
        %v4875 = vmul.f32 %v4846, %v4837
        %v4876 = vmul.f32 %v4846, %v4839
        %v4877 = vmul.f32 %v4846, %v4842
        %v4878 = vmul.f32 %v4846, %v4844
        %v4879 = vxor.u32 %v4847, 2147483648
        %v4880 = vxor.u32 %v4848, 2147483648
        %v4881 = vxor.u32 %v4849, 2147483648
        %v4882 = vxor.u32 %v4850, 2147483648
        %v4883 = vxor.u32 %v4851, 2147483648
        %v4884 = vxor.u32 %v4852, 2147483648
        %v4885 = vxor.u32 %v4853, 2147483648
        %v4886 = vxor.u32 %v4854, 2147483648
        %v4887 = vxor.u32 %v4855, 2147483648
        %v4888 = vxor.u32 %v4856, 2147483648
        %v4889 = vxor.u32 %v4857, 2147483648
        %v4890 = vxor.u32 %v4858, 2147483648
        %v4891 = vxor.u32 %v4859, 2147483648
        %v4892 = vxor.u32 %v4860, 2147483648
        %v4893 = vxor.u32 %v4861, 2147483648
        %v4894 = vxor.u32 %v4862, 2147483648
        %v4895 = vxor.u32 %v4863, 2147483648
        %v4896 = vxor.u32 %v4864, 2147483648
        %v4897 = vxor.u32 %v4865, 2147483648
        %v4898 = vxor.u32 %v4866, 2147483648
        %v4899 = vxor.u32 %v4867, 2147483648
        %v4900 = vxor.u32 %v4868, 2147483648
        %v4901 = vxor.u32 %v4869, 2147483648
        %v4902 = vxor.u32 %v4870, 2147483648
        %v4903 = vxor.u32 %v4871, 2147483648
        %v4904 = vxor.u32 %v4872, 2147483648
        %v4905 = vxor.u32 %v4873, 2147483648
        %v4906 = vxor.u32 %v4874, 2147483648
        %v4907 = vxor.u32 %v4875, 2147483648
        %v4908 = vxor.u32 %v4876, 2147483648
        %v4909 = vxor.u32 %v4877, 2147483648
        %v4910 = vxor.u32 %v4878, 2147483648
        %v4911 = vmul.f32 %v4879, 1.442695
        %v4912 = vpow.pop %v4911
        %v4913 = vmul.f32 %v4880, 1.442695
        %v4914 = vpow.pop %v4913
        %v4915 = vmul.f32 %v4881, 1.442695
        %v4916 = vpow.pop %v4915
        %v4917 = vmul.f32 %v4882, 1.442695
        %v4918 = vpow.pop %v4917
        %v4919 = vmul.f32 %v4883, 1.442695
        %v4920 = vpow.pop %v4919
        %v4921 = vmul.f32 %v4884, 1.442695
        %v4922 = vpow.pop %v4921
        %v4923 = vmul.f32 %v4885, 1.442695
        %v4924 = vpow.pop %v4923
        %v4925 = vmul.f32 %v4886, 1.442695
        %v4926 = vpow.pop %v4925
        %v4927 = vmul.f32 %v4887, 1.442695
        %v4928 = vpow.pop %v4927
        %v4929 = vmul.f32 %v4888, 1.442695
        %v4930 = vpow.pop %v4929
        %v4931 = vmul.f32 %v4889, 1.442695
        %v4932 = vpow.pop %v4931
        %v4933 = vmul.f32 %v4890, 1.442695
        %v4934 = vpow.pop %v4933
        %v4935 = vmul.f32 %v4891, 1.442695
        %v4936 = vpow.pop %v4935
        %v4937 = vmul.f32 %v4892, 1.442695
        %v4938 = vpow.pop %v4937
        %v4939 = vmul.f32 %v4893, 1.442695
        %v4940 = vpow.pop %v4939
        %v4941 = vmul.f32 %v4894, 1.442695
        %v4942 = vpow.pop %v4941
        %v4943 = vmul.f32 %v4895, 1.442695
        %v4944 = vpow.pop %v4943
        %v4945 = vmul.f32 %v4896, 1.442695
        %v4946 = vpow.pop %v4945
        %v4947 = vmul.f32 %v4897, 1.442695
        %v4948 = vpow.pop %v4947
        %v4949 = vmul.f32 %v4898, 1.442695
        %v4950 = vpow.pop %v4949
        %v4951 = vmul.f32 %v4899, 1.442695
        %v4952 = vpow.pop %v4951
        %v4953 = vmul.f32 %v4900, 1.442695
        %v4954 = vpow.pop %v4953
        %v4955 = vmul.f32 %v4901, 1.442695
        %v4956 = vpow.pop %v4955
        %v4957 = vmul.f32 %v4902, 1.442695
        %v4958 = vpow.pop %v4957
        %v4959 = vmul.f32 %v4903, 1.442695
        %v4960 = vpow.pop %v4959
        %v4961 = vmul.f32 %v4904, 1.442695
        %v4962 = vpow.pop %v4961
        %v4963 = vmul.f32 %v4905, 1.442695
        %v4964 = vpow.pop %v4963
        %v4965 = vmul.f32 %v4906, 1.442695
        %v4966 = vpow.pop %v4965
        %v4967 = vmul.f32 %v4907, 1.442695
        %v4968 = vpow.pop %v4967
        %v4969 = vmul.f32 %v4908, 1.442695
        %v4970 = vpow.pop %v4969
        %v4971 = vmul.f32 %v4909, 1.442695
        %v4972 = vpow.pop %v4971
        %v4973 = vmul.f32 %v4910, 1.442695
        %v4974 = vpow.pop %v4973
        %v4975 = vadd.f32 %v4912, 1.0
        %v4976 = vadd.f32 %v4914, 1.0
        %v4977 = vadd.f32 %v4916, 1.0
        %v4978 = vadd.f32 %v4918, 1.0
        %v4979 = vadd.f32 %v4920, 1.0
        %v4980 = vadd.f32 %v4922, 1.0
        %v4981 = vadd.f32 %v4924, 1.0
        %v4982 = vadd.f32 %v4926, 1.0
        %v4983 = vadd.f32 %v4928, 1.0
        %v4984 = vadd.f32 %v4930, 1.0
        %v4985 = vadd.f32 %v4932, 1.0
        %v4986 = vadd.f32 %v4934, 1.0
        %v4987 = vadd.f32 %v4936, 1.0
        %v4988 = vadd.f32 %v4938, 1.0
        %v4989 = vadd.f32 %v4940, 1.0
        %v4990 = vadd.f32 %v4942, 1.0
        %v4991 = vadd.f32 %v4944, 1.0
        %v4992 = vadd.f32 %v4946, 1.0
        %v4993 = vadd.f32 %v4948, 1.0
        %v4994 = vadd.f32 %v4950, 1.0
        %v4995 = vadd.f32 %v4952, 1.0
        %v4996 = vadd.f32 %v4954, 1.0
        %v4997 = vadd.f32 %v4956, 1.0
        %v4998 = vadd.f32 %v4958, 1.0
        %v4999 = vadd.f32 %v4960, 1.0
        %v5000 = vadd.f32 %v4962, 1.0
        %v5001 = vadd.f32 %v4964, 1.0
        %v5002 = vadd.f32 %v4966, 1.0
        %v5003 = vadd.f32 %v4968, 1.0
        %v5004 = vadd.f32 %v4970, 1.0
        %v5005 = vadd.f32 %v4972, 1.0
        %v5006 = vadd.f32 %v4974, 1.0
        %v5007 = vrcp.pop %v4975
        %v5008 = vmul.f32 %v4975, %v5007
        %v5009 = vsub.f32 1.0, %v5008
        %v5010 = vmul.f32 %v5007, %v5009
        %v5011 = vadd.f32 %v5007, %v5010
        %vm5012 = vweird.f32 %v4975
        %vm5013 = vweird.f32 %v5007
        %vm5014 = vmor %vm5012, %vm5013
        %v5015 = vsel %vm5014, %v5007, %v5011
        %v5016 = vand.u32 2147483647, %v4975
        %vm5017 = vcmp.eq.f32.partialorder %v5016, 8.507059e+37
        %v5018 = vand.u32 %v4975, 2147483648
        %v5019 = vor.u32 1.1754944e-38, %v5018
        %v5020 = vsel %vm5017, %v5019, %v5015
        %v5021 = vmul.f32 1.0, %v5020
        %v5022 = vrcp.pop %v4976
        %v5023 = vmul.f32 %v4976, %v5022
        %v5024 = vsub.f32 1.0, %v5023
        %v5025 = vmul.f32 %v5022, %v5024
        %v5026 = vadd.f32 %v5022, %v5025
        %vm5027 = vweird.f32 %v4976
        %vm5028 = vweird.f32 %v5022
        %vm5029 = vmor %vm5027, %vm5028
        %v5030 = vsel %vm5029, %v5022, %v5026
        %v5031 = vand.u32 2147483647, %v4976
        %vm5032 = vcmp.eq.f32.partialorder %v5031, 8.507059e+37
        %v5033 = vand.u32 %v4976, 2147483648
        %v5034 = vor.u32 1.1754944e-38, %v5033
        %v5035 = vsel %vm5032, %v5034, %v5030
        %v5036 = vmul.f32 1.0, %v5035
        %v5037 = vrcp.pop %v4977
        %v5038 = vmul.f32 %v4977, %v5037
        %v5039 = vsub.f32 1.0, %v5038
        %v5040 = vmul.f32 %v5037, %v5039
        %v5041 = vadd.f32 %v5037, %v5040
        %vm5042 = vweird.f32 %v4977
        %vm5043 = vweird.f32 %v5037
        %vm5044 = vmor %vm5042, %vm5043
        %v5045 = vsel %vm5044, %v5037, %v5041
        %v5046 = vand.u32 2147483647, %v4977
        %vm5047 = vcmp.eq.f32.partialorder %v5046, 8.507059e+37
        %v5048 = vand.u32 %v4977, 2147483648
        %v5049 = vor.u32 1.1754944e-38, %v5048
        %v5050 = vsel %vm5047, %v5049, %v5045
        %v5051 = vmul.f32 1.0, %v5050
        %v5052 = vrcp.pop %v4978
        %v5053 = vmul.f32 %v4978, %v5052
        %v5054 = vsub.f32 1.0, %v5053
        %v5055 = vmul.f32 %v5052, %v5054
        %v5056 = vadd.f32 %v5052, %v5055
        %vm5057 = vweird.f32 %v4978
        %vm5058 = vweird.f32 %v5052
        %vm5059 = vmor %vm5057, %vm5058
        %v5060 = vsel %vm5059, %v5052, %v5056
        %v5061 = vand.u32 2147483647, %v4978
        %vm5062 = vcmp.eq.f32.partialorder %v5061, 8.507059e+37
        %v5063 = vand.u32 %v4978, 2147483648
        %v5064 = vor.u32 1.1754944e-38, %v5063
        %v5065 = vsel %vm5062, %v5064, %v5060
        %v5066 = vmul.f32 1.0, %v5065
        %v5067 = vrcp.pop %v4979
        %v5068 = vmul.f32 %v4979, %v5067
        %v5069 = vsub.f32 1.0, %v5068
        %v5070 = vmul.f32 %v5067, %v5069
        %v5071 = vadd.f32 %v5067, %v5070
        %vm5072 = vweird.f32 %v4979
        %vm5073 = vweird.f32 %v5067
        %vm5074 = vmor %vm5072, %vm5073
        %v5075 = vsel %vm5074, %v5067, %v5071
        %v5076 = vand.u32 2147483647, %v4979
        %vm5077 = vcmp.eq.f32.partialorder %v5076, 8.507059e+37
        %v5078 = vand.u32 %v4979, 2147483648
        %v5079 = vor.u32 1.1754944e-38, %v5078
        %v5080 = vsel %vm5077, %v5079, %v5075
        %v5081 = vmul.f32 1.0, %v5080
        %v5082 = vrcp.pop %v4980
        %v5083 = vmul.f32 %v4980, %v5082
        %v5084 = vsub.f32 1.0, %v5083
        %v5085 = vmul.f32 %v5082, %v5084
        %v5086 = vadd.f32 %v5082, %v5085
        %vm5087 = vweird.f32 %v4980
        %vm5088 = vweird.f32 %v5082
        %vm5089 = vmor %vm5087, %vm5088
        %v5090 = vsel %vm5089, %v5082, %v5086
        %v5091 = vand.u32 2147483647, %v4980
        %vm5092 = vcmp.eq.f32.partialorder %v5091, 8.507059e+37
        %v5093 = vand.u32 %v4980, 2147483648
        %v5094 = vor.u32 1.1754944e-38, %v5093
        %v5095 = vsel %vm5092, %v5094, %v5090
        %v5096 = vmul.f32 1.0, %v5095
        %v5097 = vrcp.pop %v4981
        %v5098 = vmul.f32 %v4981, %v5097
        %v5099 = vsub.f32 1.0, %v5098
        %v5100 = vmul.f32 %v5097, %v5099
        %v5101 = vadd.f32 %v5097, %v5100
        %vm5102 = vweird.f32 %v4981
        %vm5103 = vweird.f32 %v5097
        %vm5104 = vmor %vm5102, %vm5103
        %v5105 = vsel %vm5104, %v5097, %v5101
        %v5106 = vand.u32 2147483647, %v4981
        %vm5107 = vcmp.eq.f32.partialorder %v5106, 8.507059e+37
        %v5108 = vand.u32 %v4981, 2147483648
        %v5109 = vor.u32 1.1754944e-38, %v5108
        %v5110 = vsel %vm5107, %v5109, %v5105
        %v5111 = vmul.f32 1.0, %v5110
        %v5112 = vrcp.pop %v4982
        %v5113 = vmul.f32 %v4982, %v5112
        %v5114 = vsub.f32 1.0, %v5113
        %v5115 = vmul.f32 %v5112, %v5114
        %v5116 = vadd.f32 %v5112, %v5115
        %vm5117 = vweird.f32 %v4982
        %vm5118 = vweird.f32 %v5112
        %vm5119 = vmor %vm5117, %vm5118
        %v5120 = vsel %vm5119, %v5112, %v5116
        %v5121 = vand.u32 2147483647, %v4982
        %vm5122 = vcmp.eq.f32.partialorder %v5121, 8.507059e+37
        %v5123 = vand.u32 %v4982, 2147483648
        %v5124 = vor.u32 1.1754944e-38, %v5123
        %v5125 = vsel %vm5122, %v5124, %v5120
        %v5126 = vmul.f32 1.0, %v5125
        %v5127 = vrcp.pop %v4983
        %v5128 = vmul.f32 %v4983, %v5127
        %v5129 = vsub.f32 1.0, %v5128
        %v5130 = vmul.f32 %v5127, %v5129
        %v5131 = vadd.f32 %v5127, %v5130
        %vm5132 = vweird.f32 %v4983
        %vm5133 = vweird.f32 %v5127
        %vm5134 = vmor %vm5132, %vm5133
        %v5135 = vsel %vm5134, %v5127, %v5131
        %v5136 = vand.u32 2147483647, %v4983
        %vm5137 = vcmp.eq.f32.partialorder %v5136, 8.507059e+37
        %v5138 = vand.u32 %v4983, 2147483648
        %v5139 = vor.u32 1.1754944e-38, %v5138
        %v5140 = vsel %vm5137, %v5139, %v5135
        %v5141 = vmul.f32 1.0, %v5140
        %v5142 = vrcp.pop %v4984
        %v5143 = vmul.f32 %v4984, %v5142
        %v5144 = vsub.f32 1.0, %v5143
        %v5145 = vmul.f32 %v5142, %v5144
        %v5146 = vadd.f32 %v5142, %v5145
        %vm5147 = vweird.f32 %v4984
        %vm5148 = vweird.f32 %v5142
        %vm5149 = vmor %vm5147, %vm5148
        %v5150 = vsel %vm5149, %v5142, %v5146
        %v5151 = vand.u32 2147483647, %v4984
        %vm5152 = vcmp.eq.f32.partialorder %v5151, 8.507059e+37
        %v5153 = vand.u32 %v4984, 2147483648
        %v5154 = vor.u32 1.1754944e-38, %v5153
        %v5155 = vsel %vm5152, %v5154, %v5150
        %v5156 = vmul.f32 1.0, %v5155
        %v5157 = vrcp.pop %v4985
        %v5158 = vmul.f32 %v4985, %v5157
        %v5159 = vsub.f32 1.0, %v5158
        %v5160 = vmul.f32 %v5157, %v5159
        %v5161 = vadd.f32 %v5157, %v5160
        %vm5162 = vweird.f32 %v4985
        %vm5163 = vweird.f32 %v5157
        %vm5164 = vmor %vm5162, %vm5163
        %v5165 = vsel %vm5164, %v5157, %v5161
        %v5166 = vand.u32 2147483647, %v4985
        %vm5167 = vcmp.eq.f32.partialorder %v5166, 8.507059e+37
        %v5168 = vand.u32 %v4985, 2147483648
        %v5169 = vor.u32 1.1754944e-38, %v5168
        %v5170 = vsel %vm5167, %v5169, %v5165
        %v5171 = vmul.f32 1.0, %v5170
        %v5172 = vrcp.pop %v4986
        %v5173 = vmul.f32 %v4986, %v5172
        %v5174 = vsub.f32 1.0, %v5173
        %v5175 = vmul.f32 %v5172, %v5174
        %v5176 = vadd.f32 %v5172, %v5175
        %vm5177 = vweird.f32 %v4986
        %vm5178 = vweird.f32 %v5172
        %vm5179 = vmor %vm5177, %vm5178
        %v5180 = vsel %vm5179, %v5172, %v5176
        %v5181 = vand.u32 2147483647, %v4986
        %vm5182 = vcmp.eq.f32.partialorder %v5181, 8.507059e+37
        %v5183 = vand.u32 %v4986, 2147483648
        %v5184 = vor.u32 1.1754944e-38, %v5183
        %v5185 = vsel %vm5182, %v5184, %v5180
        %v5186 = vmul.f32 1.0, %v5185
        %v5187 = vrcp.pop %v4987
        %v5188 = vmul.f32 %v4987, %v5187
        %v5189 = vsub.f32 1.0, %v5188
        %v5190 = vmul.f32 %v5187, %v5189
        %v5191 = vadd.f32 %v5187, %v5190
        %vm5192 = vweird.f32 %v4987
        %vm5193 = vweird.f32 %v5187
        %vm5194 = vmor %vm5192, %vm5193
        %v5195 = vsel %vm5194, %v5187, %v5191
        %v5196 = vand.u32 2147483647, %v4987
        %vm5197 = vcmp.eq.f32.partialorder %v5196, 8.507059e+37
        %v5198 = vand.u32 %v4987, 2147483648
        %v5199 = vor.u32 1.1754944e-38, %v5198
        %v5200 = vsel %vm5197, %v5199, %v5195
        %v5201 = vmul.f32 1.0, %v5200
        %v5202 = vrcp.pop %v4988
        %v5203 = vmul.f32 %v4988, %v5202
        %v5204 = vsub.f32 1.0, %v5203
        %v5205 = vmul.f32 %v5202, %v5204
        %v5206 = vadd.f32 %v5202, %v5205
        %vm5207 = vweird.f32 %v4988
        %vm5208 = vweird.f32 %v5202
        %vm5209 = vmor %vm5207, %vm5208
        %v5210 = vsel %vm5209, %v5202, %v5206
        %v5211 = vand.u32 2147483647, %v4988
        %vm5212 = vcmp.eq.f32.partialorder %v5211, 8.507059e+37
        %v5213 = vand.u32 %v4988, 2147483648
        %v5214 = vor.u32 1.1754944e-38, %v5213
        %v5215 = vsel %vm5212, %v5214, %v5210
        %v5216 = vmul.f32 1.0, %v5215
        %v5217 = vrcp.pop %v4989
        %v5218 = vmul.f32 %v4989, %v5217
        %v5219 = vsub.f32 1.0, %v5218
        %v5220 = vmul.f32 %v5217, %v5219
        %v5221 = vadd.f32 %v5217, %v5220
        %vm5222 = vweird.f32 %v4989
        %vm5223 = vweird.f32 %v5217
        %vm5224 = vmor %vm5222, %vm5223
        %v5225 = vsel %vm5224, %v5217, %v5221
        %v5226 = vand.u32 2147483647, %v4989
        %vm5227 = vcmp.eq.f32.partialorder %v5226, 8.507059e+37
        %v5228 = vand.u32 %v4989, 2147483648
        %v5229 = vor.u32 1.1754944e-38, %v5228
        %v5230 = vsel %vm5227, %v5229, %v5225
        %v5231 = vmul.f32 1.0, %v5230
        %v5232 = vrcp.pop %v4990
        %v5233 = vmul.f32 %v4990, %v5232
        %v5234 = vsub.f32 1.0, %v5233
        %v5235 = vmul.f32 %v5232, %v5234
        %v5236 = vadd.f32 %v5232, %v5235
        %vm5237 = vweird.f32 %v4990
        %vm5238 = vweird.f32 %v5232
        %vm5239 = vmor %vm5237, %vm5238
        %v5240 = vsel %vm5239, %v5232, %v5236
        %v5241 = vand.u32 2147483647, %v4990
        %vm5242 = vcmp.eq.f32.partialorder %v5241, 8.507059e+37
        %v5243 = vand.u32 %v4990, 2147483648
        %v5244 = vor.u32 1.1754944e-38, %v5243
        %v5245 = vsel %vm5242, %v5244, %v5240
        %v5246 = vmul.f32 1.0, %v5245
        %v5247 = vrcp.pop %v4991
        %v5248 = vmul.f32 %v4991, %v5247
        %v5249 = vsub.f32 1.0, %v5248
        %v5250 = vmul.f32 %v5247, %v5249
        %v5251 = vadd.f32 %v5247, %v5250
        %vm5252 = vweird.f32 %v4991
        %vm5253 = vweird.f32 %v5247
        %vm5254 = vmor %vm5252, %vm5253
        %v5255 = vsel %vm5254, %v5247, %v5251
        %v5256 = vand.u32 2147483647, %v4991
        %vm5257 = vcmp.eq.f32.partialorder %v5256, 8.507059e+37
        %v5258 = vand.u32 %v4991, 2147483648
        %v5259 = vor.u32 1.1754944e-38, %v5258
        %v5260 = vsel %vm5257, %v5259, %v5255
        %v5261 = vmul.f32 1.0, %v5260
        %v5262 = vrcp.pop %v4992
        %v5263 = vmul.f32 %v4992, %v5262
        %v5264 = vsub.f32 1.0, %v5263
        %v5265 = vmul.f32 %v5262, %v5264
        %v5266 = vadd.f32 %v5262, %v5265
        %vm5267 = vweird.f32 %v4992
        %vm5268 = vweird.f32 %v5262
        %vm5269 = vmor %vm5267, %vm5268
        %v5270 = vsel %vm5269, %v5262, %v5266
        %v5271 = vand.u32 2147483647, %v4992
        %vm5272 = vcmp.eq.f32.partialorder %v5271, 8.507059e+37
        %v5273 = vand.u32 %v4992, 2147483648
        %v5274 = vor.u32 1.1754944e-38, %v5273
        %v5275 = vsel %vm5272, %v5274, %v5270
        %v5276 = vmul.f32 1.0, %v5275
        %v5277 = vrcp.pop %v4993
        %v5278 = vmul.f32 %v4993, %v5277
        %v5279 = vsub.f32 1.0, %v5278
        %v5280 = vmul.f32 %v5277, %v5279
        %v5281 = vadd.f32 %v5277, %v5280
        %vm5282 = vweird.f32 %v4993
        %vm5283 = vweird.f32 %v5277
        %vm5284 = vmor %vm5282, %vm5283
        %v5285 = vsel %vm5284, %v5277, %v5281
        %v5286 = vand.u32 2147483647, %v4993
        %vm5287 = vcmp.eq.f32.partialorder %v5286, 8.507059e+37
        %v5288 = vand.u32 %v4993, 2147483648
        %v5289 = vor.u32 1.1754944e-38, %v5288
        %v5290 = vsel %vm5287, %v5289, %v5285
        %v5291 = vmul.f32 1.0, %v5290
        %v5292 = vrcp.pop %v4994
        %v5293 = vmul.f32 %v4994, %v5292
        %v5294 = vsub.f32 1.0, %v5293
        %v5295 = vmul.f32 %v5292, %v5294
        %v5296 = vadd.f32 %v5292, %v5295
        %vm5297 = vweird.f32 %v4994
        %vm5298 = vweird.f32 %v5292
        %vm5299 = vmor %vm5297, %vm5298
        %v5300 = vsel %vm5299, %v5292, %v5296
        %v5301 = vand.u32 2147483647, %v4994
        %vm5302 = vcmp.eq.f32.partialorder %v5301, 8.507059e+37
        %v5303 = vand.u32 %v4994, 2147483648
        %v5304 = vor.u32 1.1754944e-38, %v5303
        %v5305 = vsel %vm5302, %v5304, %v5300
        %v5306 = vmul.f32 1.0, %v5305
        %v5307 = vrcp.pop %v4995
        %v5308 = vmul.f32 %v4995, %v5307
        %v5309 = vsub.f32 1.0, %v5308
        %v5310 = vmul.f32 %v5307, %v5309
        %v5311 = vadd.f32 %v5307, %v5310
        %vm5312 = vweird.f32 %v4995
        %vm5313 = vweird.f32 %v5307
        %vm5314 = vmor %vm5312, %vm5313
        %v5315 = vsel %vm5314, %v5307, %v5311
        %v5316 = vand.u32 2147483647, %v4995
        %vm5317 = vcmp.eq.f32.partialorder %v5316, 8.507059e+37
        %v5318 = vand.u32 %v4995, 2147483648
        %v5319 = vor.u32 1.1754944e-38, %v5318
        %v5320 = vsel %vm5317, %v5319, %v5315
        %v5321 = vmul.f32 1.0, %v5320
        %v5322 = vrcp.pop %v4996
        %v5323 = vmul.f32 %v4996, %v5322
        %v5324 = vsub.f32 1.0, %v5323
        %v5325 = vmul.f32 %v5322, %v5324
        %v5326 = vadd.f32 %v5322, %v5325
        %vm5327 = vweird.f32 %v4996
        %vm5328 = vweird.f32 %v5322
        %vm5329 = vmor %vm5327, %vm5328
        %v5330 = vsel %vm5329, %v5322, %v5326
        %v5331 = vand.u32 2147483647, %v4996
        %vm5332 = vcmp.eq.f32.partialorder %v5331, 8.507059e+37
        %v5333 = vand.u32 %v4996, 2147483648
        %v5334 = vor.u32 1.1754944e-38, %v5333
        %v5335 = vsel %vm5332, %v5334, %v5330
        %v5336 = vmul.f32 1.0, %v5335
        %v5337 = vrcp.pop %v4997
        %v5338 = vmul.f32 %v4997, %v5337
        %v5339 = vsub.f32 1.0, %v5338
        %v5340 = vmul.f32 %v5337, %v5339
        %v5341 = vadd.f32 %v5337, %v5340
        %vm5342 = vweird.f32 %v4997
        %vm5343 = vweird.f32 %v5337
        %vm5344 = vmor %vm5342, %vm5343
        %v5345 = vsel %vm5344, %v5337, %v5341
        %v5346 = vand.u32 2147483647, %v4997
        %vm5347 = vcmp.eq.f32.partialorder %v5346, 8.507059e+37
        %v5348 = vand.u32 %v4997, 2147483648
        %v5349 = vor.u32 1.1754944e-38, %v5348
        %v5350 = vsel %vm5347, %v5349, %v5345
        %v5351 = vmul.f32 1.0, %v5350
        %v5352 = vrcp.pop %v4998
        %v5353 = vmul.f32 %v4998, %v5352
        %v5354 = vsub.f32 1.0, %v5353
        %v5355 = vmul.f32 %v5352, %v5354
        %v5356 = vadd.f32 %v5352, %v5355
        %vm5357 = vweird.f32 %v4998
        %vm5358 = vweird.f32 %v5352
        %vm5359 = vmor %vm5357, %vm5358
        %v5360 = vsel %vm5359, %v5352, %v5356
        %v5361 = vand.u32 2147483647, %v4998
        %vm5362 = vcmp.eq.f32.partialorder %v5361, 8.507059e+37
        %v5363 = vand.u32 %v4998, 2147483648
        %v5364 = vor.u32 1.1754944e-38, %v5363
        %v5365 = vsel %vm5362, %v5364, %v5360
        %v5366 = vmul.f32 1.0, %v5365
        %v5367 = vrcp.pop %v4999
        %v5368 = vmul.f32 %v4999, %v5367
        %v5369 = vsub.f32 1.0, %v5368
        %v5370 = vmul.f32 %v5367, %v5369
        %v5371 = vadd.f32 %v5367, %v5370
        %vm5372 = vweird.f32 %v4999
        %vm5373 = vweird.f32 %v5367
        %vm5374 = vmor %vm5372, %vm5373
        %v5375 = vsel %vm5374, %v5367, %v5371
        %v5376 = vand.u32 2147483647, %v4999
        %vm5377 = vcmp.eq.f32.partialorder %v5376, 8.507059e+37
        %v5378 = vand.u32 %v4999, 2147483648
        %v5379 = vor.u32 1.1754944e-38, %v5378
        %v5380 = vsel %vm5377, %v5379, %v5375
        %v5381 = vmul.f32 1.0, %v5380
        %v5382 = vrcp.pop %v5000
        %v5383 = vmul.f32 %v5000, %v5382
        %v5384 = vsub.f32 1.0, %v5383
        %v5385 = vmul.f32 %v5382, %v5384
        %v5386 = vadd.f32 %v5382, %v5385
        %vm5387 = vweird.f32 %v5000
        %vm5388 = vweird.f32 %v5382
        %vm5389 = vmor %vm5387, %vm5388
        %v5390 = vsel %vm5389, %v5382, %v5386
        %v5391 = vand.u32 2147483647, %v5000
        %vm5392 = vcmp.eq.f32.partialorder %v5391, 8.507059e+37
        %v5393 = vand.u32 %v5000, 2147483648
        %v5394 = vor.u32 1.1754944e-38, %v5393
        %v5395 = vsel %vm5392, %v5394, %v5390
        %v5396 = vmul.f32 1.0, %v5395
        %v5397 = vrcp.pop %v5001
        %v5398 = vmul.f32 %v5001, %v5397
        %v5399 = vsub.f32 1.0, %v5398
        %v5400 = vmul.f32 %v5397, %v5399
        %v5401 = vadd.f32 %v5397, %v5400
        %vm5402 = vweird.f32 %v5001
        %vm5403 = vweird.f32 %v5397
        %vm5404 = vmor %vm5402, %vm5403
        %v5405 = vsel %vm5404, %v5397, %v5401
        %v5406 = vand.u32 2147483647, %v5001
        %vm5407 = vcmp.eq.f32.partialorder %v5406, 8.507059e+37
        %v5408 = vand.u32 %v5001, 2147483648
        %v5409 = vor.u32 1.1754944e-38, %v5408
        %v5410 = vsel %vm5407, %v5409, %v5405
        %v5411 = vmul.f32 1.0, %v5410
        %v5412 = vrcp.pop %v5002
        %v5413 = vmul.f32 %v5002, %v5412
        %v5414 = vsub.f32 1.0, %v5413
        %v5415 = vmul.f32 %v5412, %v5414
        %v5416 = vadd.f32 %v5412, %v5415
        %vm5417 = vweird.f32 %v5002
        %vm5418 = vweird.f32 %v5412
        %vm5419 = vmor %vm5417, %vm5418
        %v5420 = vsel %vm5419, %v5412, %v5416
        %v5421 = vand.u32 2147483647, %v5002
        %vm5422 = vcmp.eq.f32.partialorder %v5421, 8.507059e+37
        %v5423 = vand.u32 %v5002, 2147483648
        %v5424 = vor.u32 1.1754944e-38, %v5423
        %v5425 = vsel %vm5422, %v5424, %v5420
        %v5426 = vmul.f32 1.0, %v5425
        %v5427 = vrcp.pop %v5003
        %v5428 = vmul.f32 %v5003, %v5427
        %v5429 = vsub.f32 1.0, %v5428
        %v5430 = vmul.f32 %v5427, %v5429
        %v5431 = vadd.f32 %v5427, %v5430
        %vm5432 = vweird.f32 %v5003
        %vm5433 = vweird.f32 %v5427
        %vm5434 = vmor %vm5432, %vm5433
        %v5435 = vsel %vm5434, %v5427, %v5431
        %v5436 = vand.u32 2147483647, %v5003
        %vm5437 = vcmp.eq.f32.partialorder %v5436, 8.507059e+37
        %v5438 = vand.u32 %v5003, 2147483648
        %v5439 = vor.u32 1.1754944e-38, %v5438
        %v5440 = vsel %vm5437, %v5439, %v5435
        %v5441 = vmul.f32 1.0, %v5440
        %v5442 = vrcp.pop %v5004
        %v5443 = vmul.f32 %v5004, %v5442
        %v5444 = vsub.f32 1.0, %v5443
        %v5445 = vmul.f32 %v5442, %v5444
        %v5446 = vadd.f32 %v5442, %v5445
        %vm5447 = vweird.f32 %v5004
        %vm5448 = vweird.f32 %v5442
        %vm5449 = vmor %vm5447, %vm5448
        %v5450 = vsel %vm5449, %v5442, %v5446
        %v5451 = vand.u32 2147483647, %v5004
        %vm5452 = vcmp.eq.f32.partialorder %v5451, 8.507059e+37
        %v5453 = vand.u32 %v5004, 2147483648
        %v5454 = vor.u32 1.1754944e-38, %v5453
        %v5455 = vsel %vm5452, %v5454, %v5450
        %v5456 = vmul.f32 1.0, %v5455
        %v5457 = vrcp.pop %v5005
        %v5458 = vmul.f32 %v5005, %v5457
        %v5459 = vsub.f32 1.0, %v5458
        %v5460 = vmul.f32 %v5457, %v5459
        %v5461 = vadd.f32 %v5457, %v5460
        %vm5462 = vweird.f32 %v5005
        %vm5463 = vweird.f32 %v5457
        %vm5464 = vmor %vm5462, %vm5463
        %v5465 = vsel %vm5464, %v5457, %v5461
        %v5466 = vand.u32 2147483647, %v5005
        %vm5467 = vcmp.eq.f32.partialorder %v5466, 8.507059e+37
        %v5468 = vand.u32 %v5005, 2147483648
        %v5469 = vor.u32 1.1754944e-38, %v5468
        %v5470 = vsel %vm5467, %v5469, %v5465
        %v5471 = vmul.f32 1.0, %v5470
        %v5472 = vrcp.pop %v5006
        %v5473 = vmul.f32 %v5006, %v5472
        %v5474 = vsub.f32 1.0, %v5473
        %v5475 = vmul.f32 %v5472, %v5474
        %v5476 = vadd.f32 %v5472, %v5475
        %vm5477 = vweird.f32 %v5006
        %vm5478 = vweird.f32 %v5472
        %vm5479 = vmor %vm5477, %vm5478
        %v5480 = vsel %vm5479, %v5472, %v5476
        %v5481 = vand.u32 2147483647, %v5006
        %vm5482 = vcmp.eq.f32.partialorder %v5481, 8.507059e+37
        %v5483 = vand.u32 %v5006, 2147483648
        %v5484 = vor.u32 1.1754944e-38, %v5483
        %v5485 = vsel %vm5482, %v5484, %v5480
        %v5486 = vmul.f32 1.0, %v5485
        %v5487 = vmul.f32 %v360, %v5021
        %v5488 = vmul.f32 %v361, %v5036
        %v5489 = vmul.f32 %v362, %v5051
        %v5490 = vmul.f32 %v363, %v5066
        %v5491 = vmul.f32 %v364, %v5081
        %v5492 = vmul.f32 %v365, %v5096
        %v5493 = vmul.f32 %v366, %v5111
        %v5494 = vmul.f32 %v367, %v5126
        %v5495 = vmul.f32 %v368, %v5141
        %v5496 = vmul.f32 %v369, %v5156
        %v5497 = vmul.f32 %v370, %v5171
        %v5498 = vmul.f32 %v371, %v5186
        %v5499 = vmul.f32 %v372, %v5201
        %v5500 = vmul.f32 %v373, %v5216
        %v5501 = vmul.f32 %v374, %v5231
        %v5502 = vmul.f32 %v375, %v5246
        %v5503 = vmul.f32 %v376, %v5261
        %v5504 = vmul.f32 %v377, %v5276
        %v5505 = vmul.f32 %v378, %v5291
        %v5506 = vmul.f32 %v379, %v5306
        %v5507 = vmul.f32 %v380, %v5321
        %v5508 = vmul.f32 %v381, %v5336
        %v5509 = vmul.f32 %v382, %v5351
        %v5510 = vmul.f32 %v383, %v5366
        %v5511 = vmul.f32 %v384, %v5381
        %v5512 = vmul.f32 %v385, %v5396
        %v5513 = vmul.f32 %v386, %v5411
        %v5514 = vmul.f32 %v387, %v5426
        %v5515 = vmul.f32 %v388, %v5441
        %v5516 = vmul.f32 %v389, %v5456
        %v5517 = vmul.f32 %v390, %v5471
        %v5518 = vmul.f32 %v391, %v5486
        %5519 = vst [vmem:[%s244] sm:$0xff] %v5487
        %5520 = vst [vmem:[%s244 + $0x8] sm:$0xff] %v5488
        %5521 = vst [vmem:[%s244 + $0x10] sm:$0xff] %v5489
        %5522 = vst [vmem:[%s244 + $0x18] sm:$0xff] %v5490
        %5523 = vst [vmem:[%s244 + $0x20] sm:$0xff] %v5491
        %5524 = vst [vmem:[%s244 + $0x28] sm:$0xff] %v5492
        %5525 = vst [vmem:[%s244 + $0x30] sm:$0xff] %v5493
        %5526 = vst [vmem:[%s244 + $0x38] sm:$0xff] %v5494
        %5527 = vst [vmem:[%s244 + $0x40] sm:$0xff] %v5495
        %5528 = vst [vmem:[%s244 + $0x48] sm:$0xff] %v5496
        %5529 = vst [vmem:[%s244 + $0x50] sm:$0xff] %v5497
        %5530 = vst [vmem:[%s244 + $0x58] sm:$0xff] %v5498
        %5531 = vst [vmem:[%s244 + $0x60] sm:$0xff] %v5499
        %5532 = vst [vmem:[%s244 + $0x68] sm:$0xff] %v5500
        %5533 = vst [vmem:[%s244 + $0x70] sm:$0xff] %v5501
        %5534 = vst [vmem:[%s244 + $0x78] sm:$0xff] %v5502
        %5535 = vst [vmem:[%s244 + $0x80] sm:$0xff] %v5503
        %5536 = vst [vmem:[%s244 + $0x88] sm:$0xff] %v5504
        %5537 = vst [vmem:[%s244 + $0x90] sm:$0xff] %v5505
        %5538 = vst [vmem:[%s244 + $0x98] sm:$0xff] %v5506
        %5539 = vst [vmem:[%s244 + $0xa0] sm:$0xff] %v5507
        %5540 = vst [vmem:[%s244 + $0xa8] sm:$0xff] %v5508
        %5541 = vst [vmem:[%s244 + $0xb0] sm:$0xff] %v5509
        %5542 = vst [vmem:[%s244 + $0xb8] sm:$0xff] %v5510
        %5543 = vst [vmem:[%s244 + $0xc0] sm:$0xff] %v5511
        %5544 = vst [vmem:[%s244 + $0xc8] sm:$0xff] %v5512
        %5545 = vst [vmem:[%s244 + $0xd0] sm:$0xff] %v5513
        %5546 = vst [vmem:[%s244 + $0xd8] sm:$0xff] %v5514
        %5547 = vst [vmem:[%s244 + $0xe0] sm:$0xff] %v5515
        %5548 = vst [vmem:[%s244 + $0xe8] sm:$0xff] %v5516
        %5549 = vst [vmem:[%s244 + $0xf0] sm:$0xff] %v5517
        %5550 = vst [vmem:[%s244 + $0xf8] sm:$0xff] %v5518
        %s5551 = sand.u32 %s140, 1
        %s5552 = scalar_lea.sflag [#allocation6], %s5551
        %s5553 = sand.u32 %s140, 1
        %s5554 = smul.addr %s5553, 256
        %s5555 = scalar_lea.vmem [#allocation7], %s5554
        // Predicated region
        $region49: #{selayer_forward.1} parent=39 // pred_check
          %p5556 = pneg %p150
        $region50: #{selayer_forward.1} parent=39 // pred_check_branch
          %5558 = sbr.rel (%p5556) target = $region52
        $region51: #{selayer_forward.1} parent=39 // pred_region
          %5560 = vsyncadd %s5552, 0
          %s5561 = smul.addr %s22, 32
          %s5562 = smul.addr %s5561, 8
          %s5563 = scalar_lea.hbm %s5, %s5562
          %s5564 = sshll.u32 %s5555, 4
          %s5565 = int_to_ptr.vmem [resolvable:$true] %s5564
          %s5566 = sshll.u32 %s5563, 4
          %s5567 = int_to_ptr.hbm [resolvable:$true] %s5566
          %5572 = dma.vmem_to_hbm [thread:$0]  %s5565, 4096, %s5567, %s5552, 128, 128, 8
        $region52: #{selayer_forward.1} parent=39 // pred_fallthru
          _
      $region40: #{selayer_forward.1} parent=5 // pred_fallthru
        _
      %p5573 = scmp.le.s32.totalorder 2, %s17
      // Predicated region
      $region53: #{selayer_forward.1} parent=5 // pred_check
        %p5574 = pneg %p5573
      $region54: #{selayer_forward.1} parent=5 // pred_check_branch
        %5576 = sbr.rel (%p5574) target = $region56
      $region55: #{selayer_forward.1} parent=5 // pred_region
        %s5577 = ssub.s32 %s17, 2
        // Predicated region
        $region57: #{selayer_forward.1} parent=55 // pred_check
          %p5578 = pneg %p156
        $region58: #{selayer_forward.1} parent=55 // pred_check_branch
          %5580 = sbr.rel (%p5578) target = $region60
        $region59: #{selayer_forward.1} parent=55 // pred_region
          %s5581 = sand.u32 %s141, 1
          %s5582 = scalar_lea.sflag [#allocation6], %s5581
          %s5583 = sand.u32 %s141, 1
          %s5584 = smul.addr %s5583, 256
          %s5585 = scalar_lea.vmem [#allocation7], %s5584
          %5587 = dma.done %s5582, 4096
        $region60: #{selayer_forward.1} parent=55 // pred_fallthru
          _
      $region56: #{selayer_forward.1} parent=5 // pred_fallthru
        _
    $region6: #{selayer_forward.1} parent=1 // loop_footer
      %s21 = sadd.s32 1, %s17
    $region7: #{selayer_forward.1} parent=1 // loop_footer_branch
      %16 = sbr.rel target = $region3
    $region8: #{selayer_forward.1} parent=1 // loop_exit
      _
    %5588 = vsyncpa [#allocation5], 1
    %s5589 = scalar_lea.sflag [#allocation5], 1
    %5590 = vsyncpa %s5589, 1
    %5591 = vsyncpa [#allocation6], 1
    %s5592 = scalar_lea.sflag [#allocation6], 1
    %5593 = vsyncpa %s5592, 1

</llo_original>
